<compile_context>
chip_gen: v7x
topology: tpu7x:2x2x1
jax: 0.10.0
libtpu: 0.0.40
codegen_flags: <defaults>
</compile_context>

<pallas_src>
import functools

import jax
import jax.numpy as jnp
from jax import lax
from jax.experimental import pallas as pl
from jax.experimental.pallas import tpu as pltpu


# ----------------------------------------------------------------------------- fused kernel
def _fused_kernel(*refs, num_layers, T, Ts, B):
    lens_ref, lens_s_ref, xf_ref, xs_ref = refs[:4]
    nw = 4 * num_layers                                  # (w_ih, w_hh, b_i, b_hn) per layer
    fast_w = refs[4:4 + nw]
    slow_w = refs[4 + nw:4 + 2 * nw]
    wh_ref = refs[4 + 2 * nw]
    bh_ref = refs[5 + 2 * nw]
    o_ref = refs[6 + 2 * nw]
    seq_f_ref, seq_s_ref, fused_ref = refs[7 + 2 * nw:10 + 2 * nw]

    H = fast_w[1].shape[0]                               # layer-0 W_hh: (H, 3H)
    H2 = 2 * H

    # ---- validity masks, built once (broadcasted iota vs lengths) ----
    lens = lens_ref[...]                                 # (B, 1) int32; padded rows are 0
    lens_s = lens_s_ref[...]
    valid_f = lax.broadcasted_iota(jnp.int32, (T, B, 1), 0) < lens[None]
    valid_s = lax.broadcasted_iota(jnp.int32, (Ts, B, 1), 0) < lens_s[None]

    def input_proj(x_bf16, w_ih_ref, b_i_ref):
        # One (N, Din) @ (Din, 3H) MXU matmul for ALL timesteps (off the serial chain).
        # Biases (b_ir+b_hr | b_iz+b_hz | b_in) folded in once; lane split done once.
        a = jnp.dot(x_bf16, w_ih_ref[...],
                    preferred_element_type=jnp.float32) + b_i_ref[...]
        return a[:, :H2], a[:, H2:]                      # (N, 2H), (N, H)

    def cell(h, a_rz, a_n, w_hh, b_hn_b):
        # Single fused (B, H) @ (H, 3H) matmul on the recurrence chain; 3H=96 <= 128.
        g = jnp.dot(h.astype(jnp.bfloat16), w_hh,
                    preferred_element_type=jnp.float32)
        rz = jax.nn.sigmoid(a_rz + g[:, :H2])
        r = rz[:, :H]
        z = rz[:, H:]
        n = jnp.tanh(a_n + r * (g[:, H2:] + b_hn_b))     # b_hn inside r*(.)
        return (1.0 - z) * n + z * h

    zeros_bh = jnp.zeros((B, H), jnp.float32)
    seq_f = xf_ref[...]                                  # (T*B, Din) bf16, time-major
    seq_s = xs_ref[...]                                  # (Ts*B, Din) bf16
    last = num_layers - 1

    for layer in range(num_layers):
        w_ih_f, w_hh_f_ref, b_i_f, b_hn_f = fast_w[4 * layer:4 * layer + 4]
        w_ih_s, w_hh_s_ref, b_i_s, b_hn_s = slow_w[4 * layer:4 * layer + 4]

        a_f_rz, a_f_n = input_proj(seq_f, w_ih_f, b_i_f)
        a_s_rz, a_s_n = input_proj(seq_s, w_ih_s, b_i_s)
        w_hh_f = w_hh_f_ref[...]
        w_hh_s = w_hh_s_ref[...]
        b_hn_f_b = zeros_bh + b_hn_f[...]                # bias broadcasts hoisted
        b_hn_s_b = zeros_bh + b_hn_s[...]

        h_f = jnp.zeros((B, H), jnp.float32)
        h_s = jnp.zeros((B, H), jnp.float32)
        ys_last = []                                     # last layer: slow outputs for upsample
        for t in range(T):                               # fully unrolled (tiny T)
            lo = t * B                                   # B = 8 -> sublane-aligned slices
            if t < Ts:                                   # interleave slow & fast chains
                hs_new = cell(h_s, a_s_rz[lo:lo + B], a_s_n[lo:lo + B],
                              w_hh_s, b_hn_s_b)
                y_s = jnp.where(valid_s[t], hs_new, 0.0)
                h_s = jnp.where(valid_s[t], hs_new, h_s)          # freeze past length
                if layer == last:
                    ys_last.append(y_s)
                else:
                    seq_s_ref[pl.ds(lo, B), :] = y_s              # aligned scratch store
            hf_new = cell(h_f, a_f_rz[lo:lo + B], a_f_n[lo:lo + B],
                          w_hh_f, b_hn_f_b)
            if layer == last:
                # fast[t] + nearest-upsampled slow[t//2], zeroed past length.
                fused_ref[pl.ds(lo, B), :] = jnp.where(
                    valid_f[t], hf_new + ys_last[t // 2], 0.0)
            else:
                seq_f_ref[pl.ds(lo, B), :] = jnp.where(valid_f[t], hf_new, 0.0)
            h_f = jnp.where(valid_f[t], hf_new, h_f)

        if layer != last:
            seq_f = seq_f_ref[...].astype(jnp.bfloat16)  # next layer's (bf16) inputs
            seq_s = seq_s_ref[...].astype(jnp.bfloat16)

    # All output heads in one matmul; single lane-dense (T*B, 128-padded) store.
    o_ref[...] = (jnp.dot(fused_ref[...].astype(jnp.bfloat16), wh_ref[...],
                          preferred_element_type=jnp.float32)
                  + bh_ref[...]).astype(o_ref.dtype)


# ----------------------------------------------------------------------------- spec / param prep
def _full_spec(shape):
    nd = len(shape)
    return pl.BlockSpec(shape, lambda i, _nd=nd: (0,) * _nd)


def _prep_gru_layer(w_ih_t, w_hh_t, b_ih, b_hh):
    """Torch-style (transposed) GRU params -> fused-gate kernel layout (bf16 weights)."""
    H = w_hh_t.shape[0]
    b_i = jnp.concatenate([b_ih[:, :2 * H] + b_hh[:, :2 * H],   # r, z: fold both biases
                           b_ih[:, 2 * H:]], axis=1)            # n: b_in (outside r*(.))
    b_hn = b_hh[:, 2 * H:]                                      # n: b_hn (inside  r*(.))
    return (w_ih_t.astype(jnp.bfloat16),                        # (Din, 3H)
            w_hh_t.astype(jnp.bfloat16),                        # (H, 3H)
            b_i, b_hn)                                          # f32


def _prep_heads(heads):
    """Concatenate all head weights and lane-pad to a multiple of 128 (bf16 weights)."""
    w = jnp.concatenate([w_t for (w_t, _) in heads], axis=1)    # (H, Ctot)
    b = jnp.concatenate([bb for (_, bb) in heads], axis=1)      # (1, Ctot)
    c_tot = w.shape[1]
    c_pad = ((c_tot + 127) // 128) * 128
    w = jnp.pad(w, ((0, 0), (0, c_pad - c_tot))).astype(jnp.bfloat16)
    b = jnp.pad(b, ((0, 0), (0, c_pad - c_tot)))                # f32
    return w, b, c_pad


# ----------------------------------------------------------------------------- parameter init
def init_gru_params(key, input_dim, hidden_dim, num_layers):
    """Uniform init, PyTorch-style bound 1/sqrt(H). Gate order (r, z, n)."""
    params = []
    bound = 1.0 / jnp.sqrt(jnp.float32(hidden_dim))
    for layer in range(num_layers):
        d_in = input_dim if layer == 0 else hidden_dim
        key, k1, k2, k3, k4 = jax.random.split(key, 5)
        w_ih_t = jax.random.uniform(k1, (d_in, 3 * hidden_dim), jnp.float32, -bound, bound)
        w_hh_t = jax.random.uniform(k2, (hidden_dim, 3 * hidden_dim), jnp.float32, -bound, bound)
        b_ih = jax.random.uniform(k3, (1, 3 * hidden_dim), jnp.float32, -bound, bound)
        b_hh = jax.random.uniform(k4, (1, 3 * hidden_dim), jnp.float32, -bound, bound)
        params.append((w_ih_t, w_hh_t, b_ih, b_hh))
    return params, key


def init_head_params(key, hidden_dim, num_classes_list):
    heads = []
    bound = 1.0 / jnp.sqrt(jnp.float32(hidden_dim))
    for c in num_classes_list:
        key, k1, k2 = jax.random.split(key, 3)
        w_t = jax.random.uniform(k1, (hidden_dim, c), jnp.float32, -bound, bound)
        b = jax.random.uniform(k2, (1, c), jnp.float32, -bound, bound)
        heads.append((w_t, b))
    return heads, key


# ----------------------------------------------------------------------------- forward pass
def mt_rnn_slowfast_forward(rnn_inputs, lengths, params):
    """rnn_inputs: (B, input_dim, T); lengths: (B,) int32.
    Returns a list of (B, num_classes_s, T) arrays, one per output head."""
    gru_fast, gru_slow, heads = params
    num_layers = len(gru_fast)
    hidden = gru_fast[0][1].shape[0]

    # permute(0, 2, 1): (B, C, T) -> (B, T, C); dropout = identity (eval mode)
    x = jnp.transpose(rnn_inputs, (0, 2, 1)).astype(jnp.float32)
    B, T, D = x.shape

    # Pad batch to one sublane tile so every per-step slice / scratch store is aligned.
    B_pad = ((B + 7) // 8) * 8
    x = jnp.pad(x, ((0, B_pad - B), (0, 0), (0, 0)))
    x_slow = x[:, ::2, :]
    Ts = x_slow.shape[1]

    # time-major flattened (row = t*B_pad + b), bf16 matmul operands
    xf2d = jnp.transpose(x, (1, 0, 2)).reshape(T * B_pad, D).astype(jnp.bfloat16)
    xs2d = jnp.transpose(x_slow, (1, 0, 2)).reshape(Ts * B_pad, D).astype(jnp.bfloat16)

    lens = jnp.pad(lengths.astype(jnp.int32), (0, B_pad - B)).reshape(B_pad, 1)
    lens_slow = (lens + 1) // 2

    fast_w = [a for lp in gru_fast for a in _prep_gru_layer(*lp)]
    slow_w = [a for lp in gru_slow for a in _prep_gru_layer(*lp)]
    w_head, b_head, c_pad = _prep_heads(heads)

    inputs = [lens, lens_slow, xf2d, xs2d, *fast_w, *slow_w, w_head, b_head]

    out = pl.pallas_call(
        functools.partial(_fused_kernel, num_layers=num_layers, T=T, Ts=Ts, B=B_pad),
        out_shape=jax.ShapeDtypeStruct((T * B_pad, c_pad), jnp.float32),
        grid_spec=pltpu.PrefetchScalarGridSpec(
            num_scalar_prefetch=0,
            grid=(1,),
            in_specs=[_full_spec(a.shape) for a in inputs],
            out_specs=_full_spec((T * B_pad, c_pad)),
            scratch_shapes=[
                pltpu.VMEM((T * B_pad, hidden), jnp.float32),    # inter-layer fast seq
                pltpu.VMEM((Ts * B_pad, hidden), jnp.float32),   # inter-layer slow seq
                pltpu.VMEM((T * B_pad, hidden), jnp.float32),    # fused (fast + up-slow)
            ],
        ),
        compiler_params=pltpu.CompilerParams(dimension_semantics=("arbitrary",)),
    )(*inputs)
    # TODO(synk): for realistic T (hundreds), tile the time axis over the grid and use a
    # lightly-unrolled lax.fori_loop instead of the fully unrolled loop; and on v7x shard
    # a padded batch over a "parallel" grid axis to use the second TensorCore.

    # (T*B_pad, Cpad) -> (B, Cpad, T); drop batch padding; split per head (layout only).
    o_bct = jnp.transpose(out.reshape(T, B_pad, c_pad)[:, :B], (1, 2, 0))
    outputs, off = [], 0
    for (w_t, _) in heads:
        c = w_t.shape[1]
        outputs.append(o_bct[:, off:off + c, :])
        off += c
    return outputs


# ----------------------------------------------------------------------------- main
if __name__ == "__main__":
    B, INPUT_DIM, T = 2, 16, 8
    HIDDEN_DIM = 32
    NUM_CLASSES_LIST = [5, 7]
    NUM_LAYERS = 2

    key = jax.random.PRNGKey(0)
    key, kx = jax.random.split(key)
    rnn_inputs = jax.random.normal(kx, (B, INPUT_DIM, T), dtype=jnp.float32)
    lengths = jnp.array([8, 6], dtype=jnp.int32)

    gru_fast, key = init_gru_params(key, INPUT_DIM, HIDDEN_DIM, NUM_LAYERS)
    gru_slow, key = init_gru_params(key, INPUT_DIM, HIDDEN_DIM, NUM_LAYERS)
    heads, key = init_head_params(key, HIDDEN_DIM, NUM_CLASSES_LIST)
    params = (gru_fast, gru_slow, heads)

    fwd = jax.jit(functools.partial(mt_rnn_slowfast_forward, params=params))
    outputs = jax.block_until_ready(fwd(rnn_inputs, lengths))

    expected_shapes = [(B, c, T) for c in NUM_CLASSES_LIST]
    got_shapes = [tuple(o.shape) for o in outputs]
    assert got_shapes == expected_shapes, (got_shapes, expected_shapes)
    assert all(bool(jnp.all(jnp.isfinite(o))) for o in outputs)
    print("KERNEL_OK")
</pallas_src>

<mosaic_0001>
module attributes {stable_mosaic.version = 11 : i64} {
  func.func @_fused_kernel(%arg0: i32, %arg1: memref<8x1xi32, #tpu.memory_space<vmem>>, %arg2: memref<8x1xi32, #tpu.memory_space<vmem>>, %arg3: memref<64x16xbf16, #tpu.memory_space<vmem>>, %arg4: memref<32x16xbf16, #tpu.memory_space<vmem>>, %arg5: memref<16x96xbf16, #tpu.memory_space<vmem>>, %arg6: memref<32x96xbf16, #tpu.memory_space<vmem>>, %arg7: memref<1x96xf32, #tpu.memory_space<vmem>>, %arg8: memref<1x32xf32, #tpu.memory_space<vmem>>, %arg9: memref<32x96xbf16, #tpu.memory_space<vmem>>, %arg10: memref<32x96xbf16, #tpu.memory_space<vmem>>, %arg11: memref<1x96xf32, #tpu.memory_space<vmem>>, %arg12: memref<1x32xf32, #tpu.memory_space<vmem>>, %arg13: memref<16x96xbf16, #tpu.memory_space<vmem>>, %arg14: memref<32x96xbf16, #tpu.memory_space<vmem>>, %arg15: memref<1x96xf32, #tpu.memory_space<vmem>>, %arg16: memref<1x32xf32, #tpu.memory_space<vmem>>, %arg17: memref<32x96xbf16, #tpu.memory_space<vmem>>, %arg18: memref<32x96xbf16, #tpu.memory_space<vmem>>, %arg19: memref<1x96xf32, #tpu.memory_space<vmem>>, %arg20: memref<1x32xf32, #tpu.memory_space<vmem>>, %arg21: memref<32x128xbf16, #tpu.memory_space<vmem>>, %arg22: memref<1x128xf32, #tpu.memory_space<vmem>>, %arg23: memref<64x128xf32, #tpu.memory_space<vmem>>, %arg24: memref<64x32xf32, #tpu.memory_space<vmem>>, %arg25: memref<32x32xf32, #tpu.memory_space<vmem>>, %arg26: memref<64x32xf32, #tpu.memory_space<vmem>>) attributes {dimension_semantics = [#tpu.dimension_semantics<arbitrary>], iteration_bounds = array<i64: 1>, scalar_prefetch = 0 : i64, scratch_operands = 3 : i64, tpu.core_type = #tpu.core_type<tc>, window_params = [{pipeline_mode = #tpu.pipeline_mode<synchronous>, transform_indices = @transform_0, window_bounds = array<i64: 8, 1>}, {pipeline_mode = #tpu.pipeline_mode<synchronous>, transform_indices = @transform_1, window_bounds = array<i64: 8, 1>}, {pipeline_mode = #tpu.pipeline_mode<synchronous>, transform_indices = @transform_2, window_bounds = array<i64: 64, 16>}, {pipeline_mode = #tpu.pipeline_mode<synchronous>, transform_indices = @transform_3, window_bounds = array<i64: 32, 16>}, {pipeline_mode = #tpu.pipeline_mode<synchronous>, transform_indices = @transform_4, window_bounds = array<i64: 16, 96>}, {pipeline_mode = #tpu.pipeline_mode<synchronous>, transform_indices = @transform_5, window_bounds = array<i64: 32, 96>}, {pipeline_mode = #tpu.pipeline_mode<synchronous>, transform_indices = @transform_6, window_bounds = array<i64: 1, 96>}, {pipeline_mode = #tpu.pipeline_mode<synchronous>, transform_indices = @transform_7, window_bounds = array<i64: 1, 32>}, {pipeline_mode = #tpu.pipeline_mode<synchronous>, transform_indices = @transform_8, window_bounds = array<i64: 32, 96>}, {pipeline_mode = #tpu.pipeline_mode<synchronous>, transform_indices = @transform_9, window_bounds = array<i64: 32, 96>}, {pipeline_mode = #tpu.pipeline_mode<synchronous>, transform_indices = @transform_10, window_bounds = array<i64: 1, 96>}, {pipeline_mode = #tpu.pipeline_mode<synchronous>, transform_indices = @transform_11, window_bounds = array<i64: 1, 32>}, {pipeline_mode = #tpu.pipeline_mode<synchronous>, transform_indices = @transform_12, window_bounds = array<i64: 16, 96>}, {pipeline_mode = #tpu.pipeline_mode<synchronous>, transform_indices = @transform_13, window_bounds = array<i64: 32, 96>}, {pipeline_mode = #tpu.pipeline_mode<synchronous>, transform_indices = @transform_14, window_bounds = array<i64: 1, 96>}, {pipeline_mode = #tpu.pipeline_mode<synchronous>, transform_indices = @transform_15, window_bounds = array<i64: 1, 32>}, {pipeline_mode = #tpu.pipeline_mode<synchronous>, transform_indices = @transform_16, window_bounds = array<i64: 32, 96>}, {pipeline_mode = #tpu.pipeline_mode<synchronous>, transform_indices = @transform_17, window_bounds = array<i64: 32, 96>}, {pipeline_mode = #tpu.pipeline_mode<synchronous>, transform_indices = @transform_18, window_bounds = array<i64: 1, 96>}, {pipeline_mode = #tpu.pipeline_mode<synchronous>, transform_indices = @transform_19, window_bounds = array<i64: 1, 32>}, {pipeline_mode = #tpu.pipeline_mode<synchronous>, transform_indices = @transform_20, window_bounds = array<i64: 32, 128>}, {pipeline_mode = #tpu.pipeline_mode<synchronous>, transform_indices = @transform_21, window_bounds = array<i64: 1, 128>}, {pipeline_mode = #tpu.pipeline_mode<synchronous>, transform_indices = @transform_22, window_bounds = array<i64: 64, 128>}]} {
    %c0 = arith.constant 0 : index
    %c0_0 = arith.constant 0 : index
    %0 = vector.load %arg1[%c0, %c0_0] : memref<8x1xi32, #tpu.memory_space<vmem>>, vector<8x1xi32>
    %c0_1 = arith.constant 0 : index
    %c0_2 = arith.constant 0 : index
    %1 = vector.load %arg2[%c0_1, %c0_2] : memref<8x1xi32, #tpu.memory_space<vmem>>, vector<8x1xi32>
    %2 = tpu.iota {dimensions = array<i32: 0>} : vector<8x8x1xi32>
    %3 = vector.shape_cast %0 : vector<8x1xi32> to vector<1x8x1xi32>
    %4 = vector.broadcast %3 : vector<1x8x1xi32> to vector<8x8x1xi32>
    %5 = arith.cmpi slt, %2, %4 : vector<8x8x1xi32>
    %6 = tpu.iota {dimensions = array<i32: 0>} : vector<4x8x1xi32>
    %7 = vector.shape_cast %1 : vector<8x1xi32> to vector<1x8x1xi32>
    %8 = vector.broadcast %7 : vector<1x8x1xi32> to vector<4x8x1xi32>
    %9 = arith.cmpi slt, %6, %8 : vector<4x8x1xi32>
    %cst = arith.constant 0.000000e+00 : f32
    %10 = vector.broadcast %cst : f32 to vector<8x32xf32>
    %c0_3 = arith.constant 0 : index
    %c0_4 = arith.constant 0 : index
    %11 = vector.load %arg3[%c0_3, %c0_4] : memref<64x16xbf16, #tpu.memory_space<vmem>>, vector<64x16xbf16>
    %c0_5 = arith.constant 0 : index
    %c0_6 = arith.constant 0 : index
    %12 = vector.load %arg4[%c0_5, %c0_6] : memref<32x16xbf16, #tpu.memory_space<vmem>>, vector<32x16xbf16>
    %c0_7 = arith.constant 0 : index
    %c0_8 = arith.constant 0 : index
    %13 = vector.load %arg5[%c0_7, %c0_8] : memref<16x96xbf16, #tpu.memory_space<vmem>>, vector<16x96xbf16>
    %cst_9 = arith.constant dense<0.000000e+00> : vector<64x96xf32>
    %14 = tpu.matmul %11, %13, %cst_9 {dimension_numbers = #tpu.dot_dimension_numbers<[1], [0], [0], [1], [0, 0, 1, 1], [], []>} : vector<64x16xbf16>, vector<16x96xbf16>, vector<64x96xf32> -> vector<64x96xf32>
    %c0_10 = arith.constant 0 : index
    %c0_11 = arith.constant 0 : index
    %15 = vector.load %arg7[%c0_10, %c0_11] : memref<1x96xf32, #tpu.memory_space<vmem>>, vector<1x96xf32>
    %16 = vector.broadcast %15 : vector<1x96xf32> to vector<64x96xf32>
    %17 = arith.addf %14, %16 : vector<64x96xf32>
    %18 = vector.extract_strided_slice %17 {offsets = [0, 0], sizes = [64, 64], strides = [1, 1]} : vector<64x96xf32> to vector<64x64xf32>
    %19 = vector.extract_strided_slice %17 {offsets = [0, 64], sizes = [64, 32], strides = [1, 1]} : vector<64x96xf32> to vector<64x32xf32>
    %c0_12 = arith.constant 0 : index
    %c0_13 = arith.constant 0 : index
    %20 = vector.load %arg13[%c0_12, %c0_13] : memref<16x96xbf16, #tpu.memory_space<vmem>>, vector<16x96xbf16>
    %cst_14 = arith.constant dense<0.000000e+00> : vector<32x96xf32>
    %21 = tpu.matmul %12, %20, %cst_14 {dimension_numbers = #tpu.dot_dimension_numbers<[1], [0], [0], [1], [0, 0, 1, 1], [], []>} : vector<32x16xbf16>, vector<16x96xbf16>, vector<32x96xf32> -> vector<32x96xf32>
    %c0_15 = arith.constant 0 : index
    %c0_16 = arith.constant 0 : index
    %22 = vector.load %arg15[%c0_15, %c0_16] : memref<1x96xf32, #tpu.memory_space<vmem>>, vector<1x96xf32>
    %23 = vector.broadcast %22 : vector<1x96xf32> to vector<32x96xf32>
    %24 = arith.addf %21, %23 : vector<32x96xf32>
    %25 = vector.extract_strided_slice %24 {offsets = [0, 0], sizes = [32, 64], strides = [1, 1]} : vector<32x96xf32> to vector<32x64xf32>
    %26 = vector.extract_strided_slice %24 {offsets = [0, 64], sizes = [32, 32], strides = [1, 1]} : vector<32x96xf32> to vector<32x32xf32>
    %c0_17 = arith.constant 0 : index
    %c0_18 = arith.constant 0 : index
    %27 = vector.load %arg6[%c0_17, %c0_18] : memref<32x96xbf16, #tpu.memory_space<vmem>>, vector<32x96xbf16>
    %c0_19 = arith.constant 0 : index
    %c0_20 = arith.constant 0 : index
    %28 = vector.load %arg14[%c0_19, %c0_20] : memref<32x96xbf16, #tpu.memory_space<vmem>>, vector<32x96xbf16>
    %c0_21 = arith.constant 0 : index
    %c0_22 = arith.constant 0 : index
    %29 = vector.load %arg8[%c0_21, %c0_22] : memref<1x32xf32, #tpu.memory_space<vmem>>, vector<1x32xf32>
    %30 = vector.broadcast %29 : vector<1x32xf32> to vector<8x32xf32>
    %31 = arith.addf %10, %30 : vector<8x32xf32>
    %c0_23 = arith.constant 0 : index
    %c0_24 = arith.constant 0 : index
    %32 = vector.load %arg16[%c0_23, %c0_24] : memref<1x32xf32, #tpu.memory_space<vmem>>, vector<1x32xf32>
    %33 = vector.broadcast %32 : vector<1x32xf32> to vector<8x32xf32>
    %34 = arith.addf %10, %33 : vector<8x32xf32>
    %cst_25 = arith.constant 0.000000e+00 : f32
    %35 = vector.broadcast %cst_25 : f32 to vector<8x32xf32>
    %cst_26 = arith.constant 0.000000e+00 : f32
    %36 = vector.broadcast %cst_26 : f32 to vector<8x32xf32>
    %37 = vector.extract_strided_slice %25 {offsets = [0, 0], sizes = [8, 64], strides = [1, 1]} : vector<32x64xf32> to vector<8x64xf32>
    %38 = vector.extract_strided_slice %26 {offsets = [0, 0], sizes = [8, 32], strides = [1, 1]} : vector<32x32xf32> to vector<8x32xf32>
    %39 = arith.truncf %36 : vector<8x32xf32> to vector<8x32xbf16>
    %cst_27 = arith.constant dense<0.000000e+00> : vector<8x96xf32>
    %40 = tpu.matmul %39, %28, %cst_27 {dimension_numbers = #tpu.dot_dimension_numbers<[1], [0], [0], [1], [0, 0, 1, 1], [], []>} : vector<8x32xbf16>, vector<32x96xbf16>, vector<8x96xf32> -> vector<8x96xf32>
    %41 = vector.extract_strided_slice %40 {offsets = [0, 0], sizes = [8, 64], strides = [1, 1]} : vector<8x96xf32> to vector<8x64xf32>
    %42 = arith.addf %37, %41 : vector<8x64xf32>
    %43 = arith.negf %42 : vector<8x64xf32>
    %44 = math.exp %43 : vector<8x64xf32>
    %cst_28 = arith.constant 1.000000e+00 : f32
    %45 = vector.broadcast %cst_28 : f32 to vector<8x64xf32>
    %46 = arith.addf %45, %44 : vector<8x64xf32>
    %47 = arith.divf %45, %46 : vector<8x64xf32>
    %48 = vector.extract_strided_slice %47 {offsets = [0, 0], sizes = [8, 32], strides = [1, 1]} : vector<8x64xf32> to vector<8x32xf32>
    %49 = vector.extract_strided_slice %47 {offsets = [0, 32], sizes = [8, 32], strides = [1, 1]} : vector<8x64xf32> to vector<8x32xf32>
    %50 = vector.extract_strided_slice %40 {offsets = [0, 64], sizes = [8, 32], strides = [1, 1]} : vector<8x96xf32> to vector<8x32xf32>
    %51 = arith.addf %50, %34 : vector<8x32xf32>
    %52 = arith.mulf %48, %51 : vector<8x32xf32>
    %53 = arith.addf %38, %52 : vector<8x32xf32>
    %54 = math.tanh %53 : vector<8x32xf32>
    %cst_29 = arith.constant 1.000000e+00 : f32
    %55 = vector.broadcast %cst_29 : f32 to vector<8x32xf32>
    %56 = arith.subf %55, %49 : vector<8x32xf32>
    %57 = arith.mulf %56, %54 : vector<8x32xf32>
    %58 = arith.mulf %49, %36 : vector<8x32xf32>
    %59 = arith.addf %57, %58 : vector<8x32xf32>
    %60 = vector.extract_strided_slice %9 {offsets = [0, 0, 0], sizes = [1, 8, 1], strides = [1, 1, 1]} : vector<4x8x1xi1> to vector<1x8x1xi1>
    %61 = vector.shape_cast %60 : vector<1x8x1xi1> to vector<8x1xi1>
    %cst_30 = arith.constant 0.000000e+00 : f32
    %62 = vector.shape_cast %61 : vector<8x1xi1> to vector<8x1xi1>
    %63 = vector.broadcast %62 : vector<8x1xi1> to vector<8x32xi1>
    %64 = vector.broadcast %cst_30 : f32 to vector<8x32xf32>
    %65 = arith.select %63, %59, %64 : vector<8x32xi1>, vector<8x32xf32>
    %66 = vector.extract_strided_slice %9 {offsets = [0, 0, 0], sizes = [1, 8, 1], strides = [1, 1, 1]} : vector<4x8x1xi1> to vector<1x8x1xi1>
    %67 = vector.shape_cast %66 : vector<1x8x1xi1> to vector<8x1xi1>
    %68 = vector.shape_cast %67 : vector<8x1xi1> to vector<8x1xi1>
    %69 = vector.broadcast %68 : vector<8x1xi1> to vector<8x32xi1>
    %70 = arith.select %69, %59, %36 : vector<8x32xi1>, vector<8x32xf32>
    %c0_31 = arith.constant 0 : index
    %c0_32 = arith.constant 0 : index
    %71 = vector.load %arg25[%c0_31, %c0_32] : memref<32x32xf32, #tpu.memory_space<vmem>>, vector<8x32xf32>
    tpu.vector_store %arg25[%c0_31, %c0_32], %65 {strides = array<i32>} : memref<32x32xf32, #tpu.memory_space<vmem>>, vector<8x32xf32>,
    %72 = vector.extract_strided_slice %18 {offsets = [0, 0], sizes = [8, 64], strides = [1, 1]} : vector<64x64xf32> to vector<8x64xf32>
    %73 = vector.extract_strided_slice %19 {offsets = [0, 0], sizes = [8, 32], strides = [1, 1]} : vector<64x32xf32> to vector<8x32xf32>
    %74 = arith.truncf %35 : vector<8x32xf32> to vector<8x32xbf16>
    %cst_33 = arith.constant dense<0.000000e+00> : vector<8x96xf32>
    %75 = tpu.matmul %74, %27, %cst_33 {dimension_numbers = #tpu.dot_dimension_numbers<[1], [0], [0], [1], [0, 0, 1, 1], [], []>} : vector<8x32xbf16>, vector<32x96xbf16>, vector<8x96xf32> -> vector<8x96xf32>
    %76 = vector.extract_strided_slice %75 {offsets = [0, 0], sizes = [8, 64], strides = [1, 1]} : vector<8x96xf32> to vector<8x64xf32>
    %77 = arith.addf %72, %76 : vector<8x64xf32>
    %78 = arith.negf %77 : vector<8x64xf32>
    %79 = math.exp %78 : vector<8x64xf32>
    %cst_34 = arith.constant 1.000000e+00 : f32
    %80 = vector.broadcast %cst_34 : f32 to vector<8x64xf32>
    %81 = arith.addf %80, %79 : vector<8x64xf32>
    %82 = arith.divf %80, %81 : vector<8x64xf32>
    %83 = vector.extract_strided_slice %82 {offsets = [0, 0], sizes = [8, 32], strides = [1, 1]} : vector<8x64xf32> to vector<8x32xf32>
    %84 = vector.extract_strided_slice %82 {offsets = [0, 32], sizes = [8, 32], strides = [1, 1]} : vector<8x64xf32> to vector<8x32xf32>
    %85 = vector.extract_strided_slice %75 {offsets = [0, 64], sizes = [8, 32], strides = [1, 1]} : vector<8x96xf32> to vector<8x32xf32>
    %86 = arith.addf %85, %31 : vector<8x32xf32>
    %87 = arith.mulf %83, %86 : vector<8x32xf32>
    %88 = arith.addf %73, %87 : vector<8x32xf32>
    %89 = math.tanh %88 : vector<8x32xf32>
    %cst_35 = arith.constant 1.000000e+00 : f32
    %90 = vector.broadcast %cst_35 : f32 to vector<8x32xf32>
    %91 = arith.subf %90, %84 : vector<8x32xf32>
    %92 = arith.mulf %91, %89 : vector<8x32xf32>
    %93 = arith.mulf %84, %35 : vector<8x32xf32>
    %94 = arith.addf %92, %93 : vector<8x32xf32>
    %95 = vector.extract_strided_slice %5 {offsets = [0, 0, 0], sizes = [1, 8, 1], strides = [1, 1, 1]} : vector<8x8x1xi1> to vector<1x8x1xi1>
    %96 = vector.shape_cast %95 : vector<1x8x1xi1> to vector<8x1xi1>
    %cst_36 = arith.constant 0.000000e+00 : f32
    %97 = vector.shape_cast %96 : vector<8x1xi1> to vector<8x1xi1>
    %98 = vector.broadcast %97 : vector<8x1xi1> to vector<8x32xi1>
    %99 = vector.broadcast %cst_36 : f32 to vector<8x32xf32>
    %100 = arith.select %98, %94, %99 : vector<8x32xi1>, vector<8x32xf32>
    %c0_37 = arith.constant 0 : index
    %c0_38 = arith.constant 0 : index
    %101 = vector.load %arg24[%c0_37, %c0_38] : memref<64x32xf32, #tpu.memory_space<vmem>>, vector<8x32xf32>
    tpu.vector_store %arg24[%c0_37, %c0_38], %100 {strides = array<i32>} : memref<64x32xf32, #tpu.memory_space<vmem>>, vector<8x32xf32>,
    %102 = vector.extract_strided_slice %5 {offsets = [0, 0, 0], sizes = [1, 8, 1], strides = [1, 1, 1]} : vector<8x8x1xi1> to vector<1x8x1xi1>
    %103 = vector.shape_cast %102 : vector<1x8x1xi1> to vector<8x1xi1>
    %104 = vector.shape_cast %103 : vector<8x1xi1> to vector<8x1xi1>
    %105 = vector.broadcast %104 : vector<8x1xi1> to vector<8x32xi1>
    %106 = arith.select %105, %94, %35 : vector<8x32xi1>, vector<8x32xf32>
    %107 = vector.extract_strided_slice %25 {offsets = [8, 0], sizes = [8, 64], strides = [1, 1]} : vector<32x64xf32> to vector<8x64xf32>
    %108 = vector.extract_strided_slice %26 {offsets = [8, 0], sizes = [8, 32], strides = [1, 1]} : vector<32x32xf32> to vector<8x32xf32>
    %109 = arith.truncf %70 : vector<8x32xf32> to vector<8x32xbf16>
    %cst_39 = arith.constant dense<0.000000e+00> : vector<8x96xf32>
    %110 = tpu.matmul %109, %28, %cst_39 {dimension_numbers = #tpu.dot_dimension_numbers<[1], [0], [0], [1], [0, 0, 1, 1], [], []>} : vector<8x32xbf16>, vector<32x96xbf16>, vector<8x96xf32> -> vector<8x96xf32>
    %111 = vector.extract_strided_slice %110 {offsets = [0, 0], sizes = [8, 64], strides = [1, 1]} : vector<8x96xf32> to vector<8x64xf32>
    %112 = arith.addf %107, %111 : vector<8x64xf32>
    %113 = arith.negf %112 : vector<8x64xf32>
    %114 = math.exp %113 : vector<8x64xf32>
    %cst_40 = arith.constant 1.000000e+00 : f32
    %115 = vector.broadcast %cst_40 : f32 to vector<8x64xf32>
    %116 = arith.addf %115, %114 : vector<8x64xf32>
    %117 = arith.divf %115, %116 : vector<8x64xf32>
    %118 = vector.extract_strided_slice %117 {offsets = [0, 0], sizes = [8, 32], strides = [1, 1]} : vector<8x64xf32> to vector<8x32xf32>
    %119 = vector.extract_strided_slice %117 {offsets = [0, 32], sizes = [8, 32], strides = [1, 1]} : vector<8x64xf32> to vector<8x32xf32>
    %120 = vector.extract_strided_slice %110 {offsets = [0, 64], sizes = [8, 32], strides = [1, 1]} : vector<8x96xf32> to vector<8x32xf32>
    %121 = arith.addf %120, %34 : vector<8x32xf32>
    %122 = arith.mulf %118, %121 : vector<8x32xf32>
    %123 = arith.addf %108, %122 : vector<8x32xf32>
    %124 = math.tanh %123 : vector<8x32xf32>
    %cst_41 = arith.constant 1.000000e+00 : f32
    %125 = vector.broadcast %cst_41 : f32 to vector<8x32xf32>
    %126 = arith.subf %125, %119 : vector<8x32xf32>
    %127 = arith.mulf %126, %124 : vector<8x32xf32>
    %128 = arith.mulf %119, %70 : vector<8x32xf32>
    %129 = arith.addf %127, %128 : vector<8x32xf32>
    %130 = vector.extract_strided_slice %9 {offsets = [1, 0, 0], sizes = [1, 8, 1], strides = [1, 1, 1]} : vector<4x8x1xi1> to vector<1x8x1xi1>
    %131 = vector.shape_cast %130 : vector<1x8x1xi1> to vector<8x1xi1>
    %cst_42 = arith.constant 0.000000e+00 : f32
    %132 = vector.shape_cast %131 : vector<8x1xi1> to vector<8x1xi1>
    %133 = vector.broadcast %132 : vector<8x1xi1> to vector<8x32xi1>
    %134 = vector.broadcast %cst_42 : f32 to vector<8x32xf32>
    %135 = arith.select %133, %129, %134 : vector<8x32xi1>, vector<8x32xf32>
    %136 = vector.extract_strided_slice %9 {offsets = [1, 0, 0], sizes = [1, 8, 1], strides = [1, 1, 1]} : vector<4x8x1xi1> to vector<1x8x1xi1>
    %137 = vector.shape_cast %136 : vector<1x8x1xi1> to vector<8x1xi1>
    %138 = vector.shape_cast %137 : vector<8x1xi1> to vector<8x1xi1>
    %139 = vector.broadcast %138 : vector<8x1xi1> to vector<8x32xi1>
    %140 = arith.select %139, %129, %70 : vector<8x32xi1>, vector<8x32xf32>
    %c8 = arith.constant 8 : index
    %c0_43 = arith.constant 0 : index
    %141 = vector.load %arg25[%c8, %c0_43] : memref<32x32xf32, #tpu.memory_space<vmem>>, vector<8x32xf32>
    tpu.vector_store %arg25[%c8, %c0_43], %135 {strides = array<i32>} : memref<32x32xf32, #tpu.memory_space<vmem>>, vector<8x32xf32>,
    %142 = vector.extract_strided_slice %18 {offsets = [8, 0], sizes = [8, 64], strides = [1, 1]} : vector<64x64xf32> to vector<8x64xf32>
    %143 = vector.extract_strided_slice %19 {offsets = [8, 0], sizes = [8, 32], strides = [1, 1]} : vector<64x32xf32> to vector<8x32xf32>
    %144 = arith.truncf %106 : vector<8x32xf32> to vector<8x32xbf16>
    %cst_44 = arith.constant dense<0.000000e+00> : vector<8x96xf32>
    %145 = tpu.matmul %144, %27, %cst_44 {dimension_numbers = #tpu.dot_dimension_numbers<[1], [0], [0], [1], [0, 0, 1, 1], [], []>} : vector<8x32xbf16>, vector<32x96xbf16>, vector<8x96xf32> -> vector<8x96xf32>
    %146 = vector.extract_strided_slice %145 {offsets = [0, 0], sizes = [8, 64], strides = [1, 1]} : vector<8x96xf32> to vector<8x64xf32>
    %147 = arith.addf %142, %146 : vector<8x64xf32>
    %148 = arith.negf %147 : vector<8x64xf32>
    %149 = math.exp %148 : vector<8x64xf32>
    %cst_45 = arith.constant 1.000000e+00 : f32
    %150 = vector.broadcast %cst_45 : f32 to vector<8x64xf32>
    %151 = arith.addf %150, %149 : vector<8x64xf32>
    %152 = arith.divf %150, %151 : vector<8x64xf32>
    %153 = vector.extract_strided_slice %152 {offsets = [0, 0], sizes = [8, 32], strides = [1, 1]} : vector<8x64xf32> to vector<8x32xf32>
    %154 = vector.extract_strided_slice %152 {offsets = [0, 32], sizes = [8, 32], strides = [1, 1]} : vector<8x64xf32> to vector<8x32xf32>
    %155 = vector.extract_strided_slice %145 {offsets = [0, 64], sizes = [8, 32], strides = [1, 1]} : vector<8x96xf32> to vector<8x32xf32>
    %156 = arith.addf %155, %31 : vector<8x32xf32>
    %157 = arith.mulf %153, %156 : vector<8x32xf32>
    %158 = arith.addf %143, %157 : vector<8x32xf32>
    %159 = math.tanh %158 : vector<8x32xf32>
    %cst_46 = arith.constant 1.000000e+00 : f32
    %160 = vector.broadcast %cst_46 : f32 to vector<8x32xf32>
    %161 = arith.subf %160, %154 : vector<8x32xf32>
    %162 = arith.mulf %161, %159 : vector<8x32xf32>
    %163 = arith.mulf %154, %106 : vector<8x32xf32>
    %164 = arith.addf %162, %163 : vector<8x32xf32>
    %165 = vector.extract_strided_slice %5 {offsets = [1, 0, 0], sizes = [1, 8, 1], strides = [1, 1, 1]} : vector<8x8x1xi1> to vector<1x8x1xi1>
    %166 = vector.shape_cast %165 : vector<1x8x1xi1> to vector<8x1xi1>
    %cst_47 = arith.constant 0.000000e+00 : f32
    %167 = vector.shape_cast %166 : vector<8x1xi1> to vector<8x1xi1>
    %168 = vector.broadcast %167 : vector<8x1xi1> to vector<8x32xi1>
    %169 = vector.broadcast %cst_47 : f32 to vector<8x32xf32>
    %170 = arith.select %168, %164, %169 : vector<8x32xi1>, vector<8x32xf32>
    %c8_48 = arith.constant 8 : index
    %c0_49 = arith.constant 0 : index
    %171 = vector.load %arg24[%c8_48, %c0_49] : memref<64x32xf32, #tpu.memory_space<vmem>>, vector<8x32xf32>
    tpu.vector_store %arg24[%c8_48, %c0_49], %170 {strides = array<i32>} : memref<64x32xf32, #tpu.memory_space<vmem>>, vector<8x32xf32>,
    %172 = vector.extract_strided_slice %5 {offsets = [1, 0, 0], sizes = [1, 8, 1], strides = [1, 1, 1]} : vector<8x8x1xi1> to vector<1x8x1xi1>
    %173 = vector.shape_cast %172 : vector<1x8x1xi1> to vector<8x1xi1>
    %174 = vector.shape_cast %173 : vector<8x1xi1> to vector<8x1xi1>
    %175 = vector.broadcast %174 : vector<8x1xi1> to vector<8x32xi1>
    %176 = arith.select %175, %164, %106 : vector<8x32xi1>, vector<8x32xf32>
    %177 = vector.extract_strided_slice %25 {offsets = [16, 0], sizes = [8, 64], strides = [1, 1]} : vector<32x64xf32> to vector<8x64xf32>
    %178 = vector.extract_strided_slice %26 {offsets = [16, 0], sizes = [8, 32], strides = [1, 1]} : vector<32x32xf32> to vector<8x32xf32>
    %179 = arith.truncf %140 : vector<8x32xf32> to vector<8x32xbf16>
    %cst_50 = arith.constant dense<0.000000e+00> : vector<8x96xf32>
    %180 = tpu.matmul %179, %28, %cst_50 {dimension_numbers = #tpu.dot_dimension_numbers<[1], [0], [0], [1], [0, 0, 1, 1], [], []>} : vector<8x32xbf16>, vector<32x96xbf16>, vector<8x96xf32> -> vector<8x96xf32>
    %181 = vector.extract_strided_slice %180 {offsets = [0, 0], sizes = [8, 64], strides = [1, 1]} : vector<8x96xf32> to vector<8x64xf32>
    %182 = arith.addf %177, %181 : vector<8x64xf32>
    %183 = arith.negf %182 : vector<8x64xf32>
    %184 = math.exp %183 : vector<8x64xf32>
    %cst_51 = arith.constant 1.000000e+00 : f32
    %185 = vector.broadcast %cst_51 : f32 to vector<8x64xf32>
    %186 = arith.addf %185, %184 : vector<8x64xf32>
    %187 = arith.divf %185, %186 : vector<8x64xf32>
    %188 = vector.extract_strided_slice %187 {offsets = [0, 0], sizes = [8, 32], strides = [1, 1]} : vector<8x64xf32> to vector<8x32xf32>
    %189 = vector.extract_strided_slice %187 {offsets = [0, 32], sizes = [8, 32], strides = [1, 1]} : vector<8x64xf32> to vector<8x32xf32>
    %190 = vector.extract_strided_slice %180 {offsets = [0, 64], sizes = [8, 32], strides = [1, 1]} : vector<8x96xf32> to vector<8x32xf32>
    %191 = arith.addf %190, %34 : vector<8x32xf32>
    %192 = arith.mulf %188, %191 : vector<8x32xf32>
    %193 = arith.addf %178, %192 : vector<8x32xf32>
    %194 = math.tanh %193 : vector<8x32xf32>
    %cst_52 = arith.constant 1.000000e+00 : f32
    %195 = vector.broadcast %cst_52 : f32 to vector<8x32xf32>
    %196 = arith.subf %195, %189 : vector<8x32xf32>
    %197 = arith.mulf %196, %194 : vector<8x32xf32>
    %198 = arith.mulf %189, %140 : vector<8x32xf32>
    %199 = arith.addf %197, %198 : vector<8x32xf32>
    %200 = vector.extract_strided_slice %9 {offsets = [2, 0, 0], sizes = [1, 8, 1], strides = [1, 1, 1]} : vector<4x8x1xi1> to vector<1x8x1xi1>
    %201 = vector.shape_cast %200 : vector<1x8x1xi1> to vector<8x1xi1>
    %cst_53 = arith.constant 0.000000e+00 : f32
    %202 = vector.shape_cast %201 : vector<8x1xi1> to vector<8x1xi1>
    %203 = vector.broadcast %202 : vector<8x1xi1> to vector<8x32xi1>
    %204 = vector.broadcast %cst_53 : f32 to vector<8x32xf32>
    %205 = arith.select %203, %199, %204 : vector<8x32xi1>, vector<8x32xf32>
    %206 = vector.extract_strided_slice %9 {offsets = [2, 0, 0], sizes = [1, 8, 1], strides = [1, 1, 1]} : vector<4x8x1xi1> to vector<1x8x1xi1>
    %207 = vector.shape_cast %206 : vector<1x8x1xi1> to vector<8x1xi1>
    %208 = vector.shape_cast %207 : vector<8x1xi1> to vector<8x1xi1>
    %209 = vector.broadcast %208 : vector<8x1xi1> to vector<8x32xi1>
    %210 = arith.select %209, %199, %140 : vector<8x32xi1>, vector<8x32xf32>
    %c16 = arith.constant 16 : index
    %c0_54 = arith.constant 0 : index
    %211 = vector.load %arg25[%c16, %c0_54] : memref<32x32xf32, #tpu.memory_space<vmem>>, vector<8x32xf32>
    tpu.vector_store %arg25[%c16, %c0_54], %205 {strides = array<i32>} : memref<32x32xf32, #tpu.memory_space<vmem>>, vector<8x32xf32>,
    %212 = vector.extract_strided_slice %18 {offsets = [16, 0], sizes = [8, 64], strides = [1, 1]} : vector<64x64xf32> to vector<8x64xf32>
    %213 = vector.extract_strided_slice %19 {offsets = [16, 0], sizes = [8, 32], strides = [1, 1]} : vector<64x32xf32> to vector<8x32xf32>
    %214 = arith.truncf %176 : vector<8x32xf32> to vector<8x32xbf16>
    %cst_55 = arith.constant dense<0.000000e+00> : vector<8x96xf32>
    %215 = tpu.matmul %214, %27, %cst_55 {dimension_numbers = #tpu.dot_dimension_numbers<[1], [0], [0], [1], [0, 0, 1, 1], [], []>} : vector<8x32xbf16>, vector<32x96xbf16>, vector<8x96xf32> -> vector<8x96xf32>
    %216 = vector.extract_strided_slice %215 {offsets = [0, 0], sizes = [8, 64], strides = [1, 1]} : vector<8x96xf32> to vector<8x64xf32>
    %217 = arith.addf %212, %216 : vector<8x64xf32>
    %218 = arith.negf %217 : vector<8x64xf32>
    %219 = math.exp %218 : vector<8x64xf32>
    %cst_56 = arith.constant 1.000000e+00 : f32
    %220 = vector.broadcast %cst_56 : f32 to vector<8x64xf32>
    %221 = arith.addf %220, %219 : vector<8x64xf32>
    %222 = arith.divf %220, %221 : vector<8x64xf32>
    %223 = vector.extract_strided_slice %222 {offsets = [0, 0], sizes = [8, 32], strides = [1, 1]} : vector<8x64xf32> to vector<8x32xf32>
    %224 = vector.extract_strided_slice %222 {offsets = [0, 32], sizes = [8, 32], strides = [1, 1]} : vector<8x64xf32> to vector<8x32xf32>
    %225 = vector.extract_strided_slice %215 {offsets = [0, 64], sizes = [8, 32], strides = [1, 1]} : vector<8x96xf32> to vector<8x32xf32>
    %226 = arith.addf %225, %31 : vector<8x32xf32>
    %227 = arith.mulf %223, %226 : vector<8x32xf32>
    %228 = arith.addf %213, %227 : vector<8x32xf32>
    %229 = math.tanh %228 : vector<8x32xf32>
    %cst_57 = arith.constant 1.000000e+00 : f32
    %230 = vector.broadcast %cst_57 : f32 to vector<8x32xf32>
    %231 = arith.subf %230, %224 : vector<8x32xf32>
    %232 = arith.mulf %231, %229 : vector<8x32xf32>
    %233 = arith.mulf %224, %176 : vector<8x32xf32>
    %234 = arith.addf %232, %233 : vector<8x32xf32>
    %235 = vector.extract_strided_slice %5 {offsets = [2, 0, 0], sizes = [1, 8, 1], strides = [1, 1, 1]} : vector<8x8x1xi1> to vector<1x8x1xi1>
    %236 = vector.shape_cast %235 : vector<1x8x1xi1> to vector<8x1xi1>
    %cst_58 = arith.constant 0.000000e+00 : f32
    %237 = vector.shape_cast %236 : vector<8x1xi1> to vector<8x1xi1>
    %238 = vector.broadcast %237 : vector<8x1xi1> to vector<8x32xi1>
    %239 = vector.broadcast %cst_58 : f32 to vector<8x32xf32>
    %240 = arith.select %238, %234, %239 : vector<8x32xi1>, vector<8x32xf32>
    %c16_59 = arith.constant 16 : index
    %c0_60 = arith.constant 0 : index
    %241 = vector.load %arg24[%c16_59, %c0_60] : memref<64x32xf32, #tpu.memory_space<vmem>>, vector<8x32xf32>
    tpu.vector_store %arg24[%c16_59, %c0_60], %240 {strides = array<i32>} : memref<64x32xf32, #tpu.memory_space<vmem>>, vector<8x32xf32>,
    %242 = vector.extract_strided_slice %5 {offsets = [2, 0, 0], sizes = [1, 8, 1], strides = [1, 1, 1]} : vector<8x8x1xi1> to vector<1x8x1xi1>
    %243 = vector.shape_cast %242 : vector<1x8x1xi1> to vector<8x1xi1>
    %244 = vector.shape_cast %243 : vector<8x1xi1> to vector<8x1xi1>
    %245 = vector.broadcast %244 : vector<8x1xi1> to vector<8x32xi1>
    %246 = arith.select %245, %234, %176 : vector<8x32xi1>, vector<8x32xf32>
    %247 = vector.extract_strided_slice %25 {offsets = [24, 0], sizes = [8, 64], strides = [1, 1]} : vector<32x64xf32> to vector<8x64xf32>
    %248 = vector.extract_strided_slice %26 {offsets = [24, 0], sizes = [8, 32], strides = [1, 1]} : vector<32x32xf32> to vector<8x32xf32>
    %249 = arith.truncf %210 : vector<8x32xf32> to vector<8x32xbf16>
    %cst_61 = arith.constant dense<0.000000e+00> : vector<8x96xf32>
    %250 = tpu.matmul %249, %28, %cst_61 {dimension_numbers = #tpu.dot_dimension_numbers<[1], [0], [0], [1], [0, 0, 1, 1], [], []>} : vector<8x32xbf16>, vector<32x96xbf16>, vector<8x96xf32> -> vector<8x96xf32>
    %251 = vector.extract_strided_slice %250 {offsets = [0, 0], sizes = [8, 64], strides = [1, 1]} : vector<8x96xf32> to vector<8x64xf32>
    %252 = arith.addf %247, %251 : vector<8x64xf32>
    %253 = arith.negf %252 : vector<8x64xf32>
    %254 = math.exp %253 : vector<8x64xf32>
    %cst_62 = arith.constant 1.000000e+00 : f32
    %255 = vector.broadcast %cst_62 : f32 to vector<8x64xf32>
    %256 = arith.addf %255, %254 : vector<8x64xf32>
    %257 = arith.divf %255, %256 : vector<8x64xf32>
    %258 = vector.extract_strided_slice %257 {offsets = [0, 0], sizes = [8, 32], strides = [1, 1]} : vector<8x64xf32> to vector<8x32xf32>
    %259 = vector.extract_strided_slice %257 {offsets = [0, 32], sizes = [8, 32], strides = [1, 1]} : vector<8x64xf32> to vector<8x32xf32>
    %260 = vector.extract_strided_slice %250 {offsets = [0, 64], sizes = [8, 32], strides = [1, 1]} : vector<8x96xf32> to vector<8x32xf32>
    %261 = arith.addf %260, %34 : vector<8x32xf32>
    %262 = arith.mulf %258, %261 : vector<8x32xf32>
    %263 = arith.addf %248, %262 : vector<8x32xf32>
    %264 = math.tanh %263 : vector<8x32xf32>
    %cst_63 = arith.constant 1.000000e+00 : f32
    %265 = vector.broadcast %cst_63 : f32 to vector<8x32xf32>
    %266 = arith.subf %265, %259 : vector<8x32xf32>
    %267 = arith.mulf %266, %264 : vector<8x32xf32>
    %268 = arith.mulf %259, %210 : vector<8x32xf32>
    %269 = arith.addf %267, %268 : vector<8x32xf32>
    %270 = vector.extract_strided_slice %9 {offsets = [3, 0, 0], sizes = [1, 8, 1], strides = [1, 1, 1]} : vector<4x8x1xi1> to vector<1x8x1xi1>
    %271 = vector.shape_cast %270 : vector<1x8x1xi1> to vector<8x1xi1>
    %cst_64 = arith.constant 0.000000e+00 : f32
    %272 = vector.shape_cast %271 : vector<8x1xi1> to vector<8x1xi1>
    %273 = vector.broadcast %272 : vector<8x1xi1> to vector<8x32xi1>
    %274 = vector.broadcast %cst_64 : f32 to vector<8x32xf32>
    %275 = arith.select %273, %269, %274 : vector<8x32xi1>, vector<8x32xf32>
    %c24 = arith.constant 24 : index
    %c0_65 = arith.constant 0 : index
    %276 = vector.load %arg25[%c24, %c0_65] : memref<32x32xf32, #tpu.memory_space<vmem>>, vector<8x32xf32>
    tpu.vector_store %arg25[%c24, %c0_65], %275 {strides = array<i32>} : memref<32x32xf32, #tpu.memory_space<vmem>>, vector<8x32xf32>,
    %277 = vector.extract_strided_slice %18 {offsets = [24, 0], sizes = [8, 64], strides = [1, 1]} : vector<64x64xf32> to vector<8x64xf32>
    %278 = vector.extract_strided_slice %19 {offsets = [24, 0], sizes = [8, 32], strides = [1, 1]} : vector<64x32xf32> to vector<8x32xf32>
    %279 = arith.truncf %246 : vector<8x32xf32> to vector<8x32xbf16>
    %cst_66 = arith.constant dense<0.000000e+00> : vector<8x96xf32>
    %280 = tpu.matmul %279, %27, %cst_66 {dimension_numbers = #tpu.dot_dimension_numbers<[1], [0], [0], [1], [0, 0, 1, 1], [], []>} : vector<8x32xbf16>, vector<32x96xbf16>, vector<8x96xf32> -> vector<8x96xf32>
    %281 = vector.extract_strided_slice %280 {offsets = [0, 0], sizes = [8, 64], strides = [1, 1]} : vector<8x96xf32> to vector<8x64xf32>
    %282 = arith.addf %277, %281 : vector<8x64xf32>
    %283 = arith.negf %282 : vector<8x64xf32>
    %284 = math.exp %283 : vector<8x64xf32>
    %cst_67 = arith.constant 1.000000e+00 : f32
    %285 = vector.broadcast %cst_67 : f32 to vector<8x64xf32>
    %286 = arith.addf %285, %284 : vector<8x64xf32>
    %287 = arith.divf %285, %286 : vector<8x64xf32>
    %288 = vector.extract_strided_slice %287 {offsets = [0, 0], sizes = [8, 32], strides = [1, 1]} : vector<8x64xf32> to vector<8x32xf32>
    %289 = vector.extract_strided_slice %287 {offsets = [0, 32], sizes = [8, 32], strides = [1, 1]} : vector<8x64xf32> to vector<8x32xf32>
    %290 = vector.extract_strided_slice %280 {offsets = [0, 64], sizes = [8, 32], strides = [1, 1]} : vector<8x96xf32> to vector<8x32xf32>
    %291 = arith.addf %290, %31 : vector<8x32xf32>
    %292 = arith.mulf %288, %291 : vector<8x32xf32>
    %293 = arith.addf %278, %292 : vector<8x32xf32>
    %294 = math.tanh %293 : vector<8x32xf32>
    %cst_68 = arith.constant 1.000000e+00 : f32
    %295 = vector.broadcast %cst_68 : f32 to vector<8x32xf32>
    %296 = arith.subf %295, %289 : vector<8x32xf32>
    %297 = arith.mulf %296, %294 : vector<8x32xf32>
    %298 = arith.mulf %289, %246 : vector<8x32xf32>
    %299 = arith.addf %297, %298 : vector<8x32xf32>
    %300 = vector.extract_strided_slice %5 {offsets = [3, 0, 0], sizes = [1, 8, 1], strides = [1, 1, 1]} : vector<8x8x1xi1> to vector<1x8x1xi1>
    %301 = vector.shape_cast %300 : vector<1x8x1xi1> to vector<8x1xi1>
    %cst_69 = arith.constant 0.000000e+00 : f32
    %302 = vector.shape_cast %301 : vector<8x1xi1> to vector<8x1xi1>
    %303 = vector.broadcast %302 : vector<8x1xi1> to vector<8x32xi1>
    %304 = vector.broadcast %cst_69 : f32 to vector<8x32xf32>
    %305 = arith.select %303, %299, %304 : vector<8x32xi1>, vector<8x32xf32>
    %c24_70 = arith.constant 24 : index
    %c0_71 = arith.constant 0 : index
    %306 = vector.load %arg24[%c24_70, %c0_71] : memref<64x32xf32, #tpu.memory_space<vmem>>, vector<8x32xf32>
    tpu.vector_store %arg24[%c24_70, %c0_71], %305 {strides = array<i32>} : memref<64x32xf32, #tpu.memory_space<vmem>>, vector<8x32xf32>,
    %307 = vector.extract_strided_slice %5 {offsets = [3, 0, 0], sizes = [1, 8, 1], strides = [1, 1, 1]} : vector<8x8x1xi1> to vector<1x8x1xi1>
    %308 = vector.shape_cast %307 : vector<1x8x1xi1> to vector<8x1xi1>
    %309 = vector.shape_cast %308 : vector<8x1xi1> to vector<8x1xi1>
    %310 = vector.broadcast %309 : vector<8x1xi1> to vector<8x32xi1>
    %311 = arith.select %310, %299, %246 : vector<8x32xi1>, vector<8x32xf32>
    %312 = vector.extract_strided_slice %18 {offsets = [32, 0], sizes = [8, 64], strides = [1, 1]} : vector<64x64xf32> to vector<8x64xf32>
    %313 = vector.extract_strided_slice %19 {offsets = [32, 0], sizes = [8, 32], strides = [1, 1]} : vector<64x32xf32> to vector<8x32xf32>
    %314 = arith.truncf %311 : vector<8x32xf32> to vector<8x32xbf16>
    %cst_72 = arith.constant dense<0.000000e+00> : vector<8x96xf32>
    %315 = tpu.matmul %314, %27, %cst_72 {dimension_numbers = #tpu.dot_dimension_numbers<[1], [0], [0], [1], [0, 0, 1, 1], [], []>} : vector<8x32xbf16>, vector<32x96xbf16>, vector<8x96xf32> -> vector<8x96xf32>
    %316 = vector.extract_strided_slice %315 {offsets = [0, 0], sizes = [8, 64], strides = [1, 1]} : vector<8x96xf32> to vector<8x64xf32>
    %317 = arith.addf %312, %316 : vector<8x64xf32>
    %318 = arith.negf %317 : vector<8x64xf32>
    %319 = math.exp %318 : vector<8x64xf32>
    %cst_73 = arith.constant 1.000000e+00 : f32
    %320 = vector.broadcast %cst_73 : f32 to vector<8x64xf32>
    %321 = arith.addf %320, %319 : vector<8x64xf32>
    %322 = arith.divf %320, %321 : vector<8x64xf32>
    %323 = vector.extract_strided_slice %322 {offsets = [0, 0], sizes = [8, 32], strides = [1, 1]} : vector<8x64xf32> to vector<8x32xf32>
    %324 = vector.extract_strided_slice %322 {offsets = [0, 32], sizes = [8, 32], strides = [1, 1]} : vector<8x64xf32> to vector<8x32xf32>
    %325 = vector.extract_strided_slice %315 {offsets = [0, 64], sizes = [8, 32], strides = [1, 1]} : vector<8x96xf32> to vector<8x32xf32>
    %326 = arith.addf %325, %31 : vector<8x32xf32>
    %327 = arith.mulf %323, %326 : vector<8x32xf32>
    %328 = arith.addf %313, %327 : vector<8x32xf32>
    %329 = math.tanh %328 : vector<8x32xf32>
    %cst_74 = arith.constant 1.000000e+00 : f32
    %330 = vector.broadcast %cst_74 : f32 to vector<8x32xf32>
    %331 = arith.subf %330, %324 : vector<8x32xf32>
    %332 = arith.mulf %331, %329 : vector<8x32xf32>
    %333 = arith.mulf %324, %311 : vector<8x32xf32>
    %334 = arith.addf %332, %333 : vector<8x32xf32>
    %335 = vector.extract_strided_slice %5 {offsets = [4, 0, 0], sizes = [1, 8, 1], strides = [1, 1, 1]} : vector<8x8x1xi1> to vector<1x8x1xi1>
    %336 = vector.shape_cast %335 : vector<1x8x1xi1> to vector<8x1xi1>
    %cst_75 = arith.constant 0.000000e+00 : f32
    %337 = vector.shape_cast %336 : vector<8x1xi1> to vector<8x1xi1>
    %338 = vector.broadcast %337 : vector<8x1xi1> to vector<8x32xi1>
    %339 = vector.broadcast %cst_75 : f32 to vector<8x32xf32>
    %340 = arith.select %338, %334, %339 : vector<8x32xi1>, vector<8x32xf32>
    %c32 = arith.constant 32 : index
    %c0_76 = arith.constant 0 : index
    %341 = vector.load %arg24[%c32, %c0_76] : memref<64x32xf32, #tpu.memory_space<vmem>>, vector<8x32xf32>
    tpu.vector_store %arg24[%c32, %c0_76], %340 {strides = array<i32>} : memref<64x32xf32, #tpu.memory_space<vmem>>, vector<8x32xf32>,
    %342 = vector.extract_strided_slice %5 {offsets = [4, 0, 0], sizes = [1, 8, 1], strides = [1, 1, 1]} : vector<8x8x1xi1> to vector<1x8x1xi1>
    %343 = vector.shape_cast %342 : vector<1x8x1xi1> to vector<8x1xi1>
    %344 = vector.shape_cast %343 : vector<8x1xi1> to vector<8x1xi1>
    %345 = vector.broadcast %344 : vector<8x1xi1> to vector<8x32xi1>
    %346 = arith.select %345, %334, %311 : vector<8x32xi1>, vector<8x32xf32>
    %347 = vector.extract_strided_slice %18 {offsets = [40, 0], sizes = [8, 64], strides = [1, 1]} : vector<64x64xf32> to vector<8x64xf32>
    %348 = vector.extract_strided_slice %19 {offsets = [40, 0], sizes = [8, 32], strides = [1, 1]} : vector<64x32xf32> to vector<8x32xf32>
    %349 = arith.truncf %346 : vector<8x32xf32> to vector<8x32xbf16>
    %cst_77 = arith.constant dense<0.000000e+00> : vector<8x96xf32>
    %350 = tpu.matmul %349, %27, %cst_77 {dimension_numbers = #tpu.dot_dimension_numbers<[1], [0], [0], [1], [0, 0, 1, 1], [], []>} : vector<8x32xbf16>, vector<32x96xbf16>, vector<8x96xf32> -> vector<8x96xf32>
    %351 = vector.extract_strided_slice %350 {offsets = [0, 0], sizes = [8, 64], strides = [1, 1]} : vector<8x96xf32> to vector<8x64xf32>
    %352 = arith.addf %347, %351 : vector<8x64xf32>
    %353 = arith.negf %352 : vector<8x64xf32>
    %354 = math.exp %353 : vector<8x64xf32>
    %cst_78 = arith.constant 1.000000e+00 : f32
    %355 = vector.broadcast %cst_78 : f32 to vector<8x64xf32>
    %356 = arith.addf %355, %354 : vector<8x64xf32>
    %357 = arith.divf %355, %356 : vector<8x64xf32>
    %358 = vector.extract_strided_slice %357 {offsets = [0, 0], sizes = [8, 32], strides = [1, 1]} : vector<8x64xf32> to vector<8x32xf32>
    %359 = vector.extract_strided_slice %357 {offsets = [0, 32], sizes = [8, 32], strides = [1, 1]} : vector<8x64xf32> to vector<8x32xf32>
    %360 = vector.extract_strided_slice %350 {offsets = [0, 64], sizes = [8, 32], strides = [1, 1]} : vector<8x96xf32> to vector<8x32xf32>
    %361 = arith.addf %360, %31 : vector<8x32xf32>
    %362 = arith.mulf %358, %361 : vector<8x32xf32>
    %363 = arith.addf %348, %362 : vector<8x32xf32>
    %364 = math.tanh %363 : vector<8x32xf32>
    %cst_79 = arith.constant 1.000000e+00 : f32
    %365 = vector.broadcast %cst_79 : f32 to vector<8x32xf32>
    %366 = arith.subf %365, %359 : vector<8x32xf32>
    %367 = arith.mulf %366, %364 : vector<8x32xf32>
    %368 = arith.mulf %359, %346 : vector<8x32xf32>
    %369 = arith.addf %367, %368 : vector<8x32xf32>
    %370 = vector.extract_strided_slice %5 {offsets = [5, 0, 0], sizes = [1, 8, 1], strides = [1, 1, 1]} : vector<8x8x1xi1> to vector<1x8x1xi1>
    %371 = vector.shape_cast %370 : vector<1x8x1xi1> to vector<8x1xi1>
    %cst_80 = arith.constant 0.000000e+00 : f32
    %372 = vector.shape_cast %371 : vector<8x1xi1> to vector<8x1xi1>
    %373 = vector.broadcast %372 : vector<8x1xi1> to vector<8x32xi1>
    %374 = vector.broadcast %cst_80 : f32 to vector<8x32xf32>
    %375 = arith.select %373, %369, %374 : vector<8x32xi1>, vector<8x32xf32>
    %c40 = arith.constant 40 : index
    %c0_81 = arith.constant 0 : index
    %376 = vector.load %arg24[%c40, %c0_81] : memref<64x32xf32, #tpu.memory_space<vmem>>, vector<8x32xf32>
    tpu.vector_store %arg24[%c40, %c0_81], %375 {strides = array<i32>} : memref<64x32xf32, #tpu.memory_space<vmem>>, vector<8x32xf32>,
    %377 = vector.extract_strided_slice %5 {offsets = [5, 0, 0], sizes = [1, 8, 1], strides = [1, 1, 1]} : vector<8x8x1xi1> to vector<1x8x1xi1>
    %378 = vector.shape_cast %377 : vector<1x8x1xi1> to vector<8x1xi1>
    %379 = vector.shape_cast %378 : vector<8x1xi1> to vector<8x1xi1>
    %380 = vector.broadcast %379 : vector<8x1xi1> to vector<8x32xi1>
    %381 = arith.select %380, %369, %346 : vector<8x32xi1>, vector<8x32xf32>
    %382 = vector.extract_strided_slice %18 {offsets = [48, 0], sizes = [8, 64], strides = [1, 1]} : vector<64x64xf32> to vector<8x64xf32>
    %383 = vector.extract_strided_slice %19 {offsets = [48, 0], sizes = [8, 32], strides = [1, 1]} : vector<64x32xf32> to vector<8x32xf32>
    %384 = arith.truncf %381 : vector<8x32xf32> to vector<8x32xbf16>
    %cst_82 = arith.constant dense<0.000000e+00> : vector<8x96xf32>
    %385 = tpu.matmul %384, %27, %cst_82 {dimension_numbers = #tpu.dot_dimension_numbers<[1], [0], [0], [1], [0, 0, 1, 1], [], []>} : vector<8x32xbf16>, vector<32x96xbf16>, vector<8x96xf32> -> vector<8x96xf32>
    %386 = vector.extract_strided_slice %385 {offsets = [0, 0], sizes = [8, 64], strides = [1, 1]} : vector<8x96xf32> to vector<8x64xf32>
    %387 = arith.addf %382, %386 : vector<8x64xf32>
    %388 = arith.negf %387 : vector<8x64xf32>
    %389 = math.exp %388 : vector<8x64xf32>
    %cst_83 = arith.constant 1.000000e+00 : f32
    %390 = vector.broadcast %cst_83 : f32 to vector<8x64xf32>
    %391 = arith.addf %390, %389 : vector<8x64xf32>
    %392 = arith.divf %390, %391 : vector<8x64xf32>
    %393 = vector.extract_strided_slice %392 {offsets = [0, 0], sizes = [8, 32], strides = [1, 1]} : vector<8x64xf32> to vector<8x32xf32>
    %394 = vector.extract_strided_slice %392 {offsets = [0, 32], sizes = [8, 32], strides = [1, 1]} : vector<8x64xf32> to vector<8x32xf32>
    %395 = vector.extract_strided_slice %385 {offsets = [0, 64], sizes = [8, 32], strides = [1, 1]} : vector<8x96xf32> to vector<8x32xf32>
    %396 = arith.addf %395, %31 : vector<8x32xf32>
    %397 = arith.mulf %393, %396 : vector<8x32xf32>
    %398 = arith.addf %383, %397 : vector<8x32xf32>
    %399 = math.tanh %398 : vector<8x32xf32>
    %cst_84 = arith.constant 1.000000e+00 : f32
    %400 = vector.broadcast %cst_84 : f32 to vector<8x32xf32>
    %401 = arith.subf %400, %394 : vector<8x32xf32>
    %402 = arith.mulf %401, %399 : vector<8x32xf32>
    %403 = arith.mulf %394, %381 : vector<8x32xf32>
    %404 = arith.addf %402, %403 : vector<8x32xf32>
    %405 = vector.extract_strided_slice %5 {offsets = [6, 0, 0], sizes = [1, 8, 1], strides = [1, 1, 1]} : vector<8x8x1xi1> to vector<1x8x1xi1>
    %406 = vector.shape_cast %405 : vector<1x8x1xi1> to vector<8x1xi1>
    %cst_85 = arith.constant 0.000000e+00 : f32
    %407 = vector.shape_cast %406 : vector<8x1xi1> to vector<8x1xi1>
    %408 = vector.broadcast %407 : vector<8x1xi1> to vector<8x32xi1>
    %409 = vector.broadcast %cst_85 : f32 to vector<8x32xf32>
    %410 = arith.select %408, %404, %409 : vector<8x32xi1>, vector<8x32xf32>
    %c48 = arith.constant 48 : index
    %c0_86 = arith.constant 0 : index
    %411 = vector.load %arg24[%c48, %c0_86] : memref<64x32xf32, #tpu.memory_space<vmem>>, vector<8x32xf32>
    tpu.vector_store %arg24[%c48, %c0_86], %410 {strides = array<i32>} : memref<64x32xf32, #tpu.memory_space<vmem>>, vector<8x32xf32>,
    %412 = vector.extract_strided_slice %5 {offsets = [6, 0, 0], sizes = [1, 8, 1], strides = [1, 1, 1]} : vector<8x8x1xi1> to vector<1x8x1xi1>
    %413 = vector.shape_cast %412 : vector<1x8x1xi1> to vector<8x1xi1>
    %414 = vector.shape_cast %413 : vector<8x1xi1> to vector<8x1xi1>
    %415 = vector.broadcast %414 : vector<8x1xi1> to vector<8x32xi1>
    %416 = arith.select %415, %404, %381 : vector<8x32xi1>, vector<8x32xf32>
    %417 = vector.extract_strided_slice %18 {offsets = [56, 0], sizes = [8, 64], strides = [1, 1]} : vector<64x64xf32> to vector<8x64xf32>
    %418 = vector.extract_strided_slice %19 {offsets = [56, 0], sizes = [8, 32], strides = [1, 1]} : vector<64x32xf32> to vector<8x32xf32>
    %419 = arith.truncf %416 : vector<8x32xf32> to vector<8x32xbf16>
    %cst_87 = arith.constant dense<0.000000e+00> : vector<8x96xf32>
    %420 = tpu.matmul %419, %27, %cst_87 {dimension_numbers = #tpu.dot_dimension_numbers<[1], [0], [0], [1], [0, 0, 1, 1], [], []>} : vector<8x32xbf16>, vector<32x96xbf16>, vector<8x96xf32> -> vector<8x96xf32>
    %421 = vector.extract_strided_slice %420 {offsets = [0, 0], sizes = [8, 64], strides = [1, 1]} : vector<8x96xf32> to vector<8x64xf32>
    %422 = arith.addf %417, %421 : vector<8x64xf32>
    %423 = arith.negf %422 : vector<8x64xf32>
    %424 = math.exp %423 : vector<8x64xf32>
    %cst_88 = arith.constant 1.000000e+00 : f32
    %425 = vector.broadcast %cst_88 : f32 to vector<8x64xf32>
    %426 = arith.addf %425, %424 : vector<8x64xf32>
    %427 = arith.divf %425, %426 : vector<8x64xf32>
    %428 = vector.extract_strided_slice %427 {offsets = [0, 0], sizes = [8, 32], strides = [1, 1]} : vector<8x64xf32> to vector<8x32xf32>
    %429 = vector.extract_strided_slice %427 {offsets = [0, 32], sizes = [8, 32], strides = [1, 1]} : vector<8x64xf32> to vector<8x32xf32>
    %430 = vector.extract_strided_slice %420 {offsets = [0, 64], sizes = [8, 32], strides = [1, 1]} : vector<8x96xf32> to vector<8x32xf32>
    %431 = arith.addf %430, %31 : vector<8x32xf32>
    %432 = arith.mulf %428, %431 : vector<8x32xf32>
    %433 = arith.addf %418, %432 : vector<8x32xf32>
    %434 = math.tanh %433 : vector<8x32xf32>
    %cst_89 = arith.constant 1.000000e+00 : f32
    %435 = vector.broadcast %cst_89 : f32 to vector<8x32xf32>
    %436 = arith.subf %435, %429 : vector<8x32xf32>
    %437 = arith.mulf %436, %434 : vector<8x32xf32>
    %438 = arith.mulf %429, %416 : vector<8x32xf32>
    %439 = arith.addf %437, %438 : vector<8x32xf32>
    %440 = vector.extract_strided_slice %5 {offsets = [7, 0, 0], sizes = [1, 8, 1], strides = [1, 1, 1]} : vector<8x8x1xi1> to vector<1x8x1xi1>
    %441 = vector.shape_cast %440 : vector<1x8x1xi1> to vector<8x1xi1>
    %cst_90 = arith.constant 0.000000e+00 : f32
    %442 = vector.shape_cast %441 : vector<8x1xi1> to vector<8x1xi1>
    %443 = vector.broadcast %442 : vector<8x1xi1> to vector<8x32xi1>
    %444 = vector.broadcast %cst_90 : f32 to vector<8x32xf32>
    %445 = arith.select %443, %439, %444 : vector<8x32xi1>, vector<8x32xf32>
    %c56 = arith.constant 56 : index
    %c0_91 = arith.constant 0 : index
    %446 = vector.load %arg24[%c56, %c0_91] : memref<64x32xf32, #tpu.memory_space<vmem>>, vector<8x32xf32>
    tpu.vector_store %arg24[%c56, %c0_91], %445 {strides = array<i32>} : memref<64x32xf32, #tpu.memory_space<vmem>>, vector<8x32xf32>,
    %c0_92 = arith.constant 0 : index
    %c0_93 = arith.constant 0 : index
    %447 = vector.load %arg24[%c0_92, %c0_93] : memref<64x32xf32, #tpu.memory_space<vmem>>, vector<64x32xf32>
    %448 = arith.truncf %447 : vector<64x32xf32> to vector<64x32xbf16>
    %c0_94 = arith.constant 0 : index
    %c0_95 = arith.constant 0 : index
    %449 = vector.load %arg25[%c0_94, %c0_95] : memref<32x32xf32, #tpu.memory_space<vmem>>, vector<32x32xf32>
    %450 = arith.truncf %449 : vector<32x32xf32> to vector<32x32xbf16>
    %c0_96 = arith.constant 0 : index
    %c0_97 = arith.constant 0 : index
    %451 = vector.load %arg9[%c0_96, %c0_97] : memref<32x96xbf16, #tpu.memory_space<vmem>>, vector<32x96xbf16>
    %cst_98 = arith.constant dense<0.000000e+00> : vector<64x96xf32>
    %452 = tpu.matmul %448, %451, %cst_98 {dimension_numbers = #tpu.dot_dimension_numbers<[1], [0], [0], [1], [0, 0, 1, 1], [], []>} : vector<64x32xbf16>, vector<32x96xbf16>, vector<64x96xf32> -> vector<64x96xf32>
    %c0_99 = arith.constant 0 : index
    %c0_100 = arith.constant 0 : index
    %453 = vector.load %arg11[%c0_99, %c0_100] : memref<1x96xf32, #tpu.memory_space<vmem>>, vector<1x96xf32>
    %454 = vector.broadcast %453 : vector<1x96xf32> to vector<64x96xf32>
    %455 = arith.addf %452, %454 : vector<64x96xf32>
    %456 = vector.extract_strided_slice %455 {offsets = [0, 0], sizes = [64, 64], strides = [1, 1]} : vector<64x96xf32> to vector<64x64xf32>
    %457 = vector.extract_strided_slice %455 {offsets = [0, 64], sizes = [64, 32], strides = [1, 1]} : vector<64x96xf32> to vector<64x32xf32>
    %c0_101 = arith.constant 0 : index
    %c0_102 = arith.constant 0 : index
    %458 = vector.load %arg17[%c0_101, %c0_102] : memref<32x96xbf16, #tpu.memory_space<vmem>>, vector<32x96xbf16>
    %cst_103 = arith.constant dense<0.000000e+00> : vector<32x96xf32>
    %459 = tpu.matmul %450, %458, %cst_103 {dimension_numbers = #tpu.dot_dimension_numbers<[1], [0], [0], [1], [0, 0, 1, 1], [], []>} : vector<32x32xbf16>, vector<32x96xbf16>, vector<32x96xf32> -> vector<32x96xf32>
    %c0_104 = arith.constant 0 : index
    %c0_105 = arith.constant 0 : index
    %460 = vector.load %arg19[%c0_104, %c0_105] : memref<1x96xf32, #tpu.memory_space<vmem>>, vector<1x96xf32>
    %461 = vector.broadcast %460 : vector<1x96xf32> to vector<32x96xf32>
    %462 = arith.addf %459, %461 : vector<32x96xf32>
    %463 = vector.extract_strided_slice %462 {offsets = [0, 0], sizes = [32, 64], strides = [1, 1]} : vector<32x96xf32> to vector<32x64xf32>
    %464 = vector.extract_strided_slice %462 {offsets = [0, 64], sizes = [32, 32], strides = [1, 1]} : vector<32x96xf32> to vector<32x32xf32>
    %c0_106 = arith.constant 0 : index
    %c0_107 = arith.constant 0 : index
    %465 = vector.load %arg10[%c0_106, %c0_107] : memref<32x96xbf16, #tpu.memory_space<vmem>>, vector<32x96xbf16>
    %c0_108 = arith.constant 0 : index
    %c0_109 = arith.constant 0 : index
    %466 = vector.load %arg18[%c0_108, %c0_109] : memref<32x96xbf16, #tpu.memory_space<vmem>>, vector<32x96xbf16>
    %c0_110 = arith.constant 0 : index
    %c0_111 = arith.constant 0 : index
    %467 = vector.load %arg12[%c0_110, %c0_111] : memref<1x32xf32, #tpu.memory_space<vmem>>, vector<1x32xf32>
    %468 = vector.broadcast %467 : vector<1x32xf32> to vector<8x32xf32>
    %469 = arith.addf %10, %468 : vector<8x32xf32>
    %c0_112 = arith.constant 0 : index
    %c0_113 = arith.constant 0 : index
    %470 = vector.load %arg20[%c0_112, %c0_113] : memref<1x32xf32, #tpu.memory_space<vmem>>, vector<1x32xf32>
    %471 = vector.broadcast %470 : vector<1x32xf32> to vector<8x32xf32>
    %472 = arith.addf %10, %471 : vector<8x32xf32>
    %cst_114 = arith.constant 0.000000e+00 : f32
    %473 = vector.broadcast %cst_114 : f32 to vector<8x32xf32>
    %cst_115 = arith.constant 0.000000e+00 : f32
    %474 = vector.broadcast %cst_115 : f32 to vector<8x32xf32>
    %475 = vector.extract_strided_slice %463 {offsets = [0, 0], sizes = [8, 64], strides = [1, 1]} : vector<32x64xf32> to vector<8x64xf32>
    %476 = vector.extract_strided_slice %464 {offsets = [0, 0], sizes = [8, 32], strides = [1, 1]} : vector<32x32xf32> to vector<8x32xf32>
    %477 = arith.truncf %474 : vector<8x32xf32> to vector<8x32xbf16>
    %cst_116 = arith.constant dense<0.000000e+00> : vector<8x96xf32>
    %478 = tpu.matmul %477, %466, %cst_116 {dimension_numbers = #tpu.dot_dimension_numbers<[1], [0], [0], [1], [0, 0, 1, 1], [], []>} : vector<8x32xbf16>, vector<32x96xbf16>, vector<8x96xf32> -> vector<8x96xf32>
    %479 = vector.extract_strided_slice %478 {offsets = [0, 0], sizes = [8, 64], strides = [1, 1]} : vector<8x96xf32> to vector<8x64xf32>
    %480 = arith.addf %475, %479 : vector<8x64xf32>
    %481 = arith.negf %480 : vector<8x64xf32>
    %482 = math.exp %481 : vector<8x64xf32>
    %cst_117 = arith.constant 1.000000e+00 : f32
    %483 = vector.broadcast %cst_117 : f32 to vector<8x64xf32>
    %484 = arith.addf %483, %482 : vector<8x64xf32>
    %485 = arith.divf %483, %484 : vector<8x64xf32>
    %486 = vector.extract_strided_slice %485 {offsets = [0, 0], sizes = [8, 32], strides = [1, 1]} : vector<8x64xf32> to vector<8x32xf32>
    %487 = vector.extract_strided_slice %485 {offsets = [0, 32], sizes = [8, 32], strides = [1, 1]} : vector<8x64xf32> to vector<8x32xf32>
    %488 = vector.extract_strided_slice %478 {offsets = [0, 64], sizes = [8, 32], strides = [1, 1]} : vector<8x96xf32> to vector<8x32xf32>
    %489 = arith.addf %488, %472 : vector<8x32xf32>
    %490 = arith.mulf %486, %489 : vector<8x32xf32>
    %491 = arith.addf %476, %490 : vector<8x32xf32>
    %492 = math.tanh %491 : vector<8x32xf32>
    %cst_118 = arith.constant 1.000000e+00 : f32
    %493 = vector.broadcast %cst_118 : f32 to vector<8x32xf32>
    %494 = arith.subf %493, %487 : vector<8x32xf32>
    %495 = arith.mulf %494, %492 : vector<8x32xf32>
    %496 = arith.mulf %487, %474 : vector<8x32xf32>
    %497 = arith.addf %495, %496 : vector<8x32xf32>
    %498 = vector.extract_strided_slice %9 {offsets = [0, 0, 0], sizes = [1, 8, 1], strides = [1, 1, 1]} : vector<4x8x1xi1> to vector<1x8x1xi1>
    %499 = vector.shape_cast %498 : vector<1x8x1xi1> to vector<8x1xi1>
    %cst_119 = arith.constant 0.000000e+00 : f32
    %500 = vector.shape_cast %499 : vector<8x1xi1> to vector<8x1xi1>
    %501 = vector.broadcast %500 : vector<8x1xi1> to vector<8x32xi1>
    %502 = vector.broadcast %cst_119 : f32 to vector<8x32xf32>
    %503 = arith.select %501, %497, %502 : vector<8x32xi1>, vector<8x32xf32>
    %504 = vector.extract_strided_slice %9 {offsets = [0, 0, 0], sizes = [1, 8, 1], strides = [1, 1, 1]} : vector<4x8x1xi1> to vector<1x8x1xi1>
    %505 = vector.shape_cast %504 : vector<1x8x1xi1> to vector<8x1xi1>
    %506 = vector.shape_cast %505 : vector<8x1xi1> to vector<8x1xi1>
    %507 = vector.broadcast %506 : vector<8x1xi1> to vector<8x32xi1>
    %508 = arith.select %507, %497, %474 : vector<8x32xi1>, vector<8x32xf32>
    %509 = vector.extract_strided_slice %456 {offsets = [0, 0], sizes = [8, 64], strides = [1, 1]} : vector<64x64xf32> to vector<8x64xf32>
    %510 = vector.extract_strided_slice %457 {offsets = [0, 0], sizes = [8, 32], strides = [1, 1]} : vector<64x32xf32> to vector<8x32xf32>
    %511 = arith.truncf %473 : vector<8x32xf32> to vector<8x32xbf16>
    %cst_120 = arith.constant dense<0.000000e+00> : vector<8x96xf32>
    %512 = tpu.matmul %511, %465, %cst_120 {dimension_numbers = #tpu.dot_dimension_numbers<[1], [0], [0], [1], [0, 0, 1, 1], [], []>} : vector<8x32xbf16>, vector<32x96xbf16>, vector<8x96xf32> -> vector<8x96xf32>
    %513 = vector.extract_strided_slice %512 {offsets = [0, 0], sizes = [8, 64], strides = [1, 1]} : vector<8x96xf32> to vector<8x64xf32>
    %514 = arith.addf %509, %513 : vector<8x64xf32>
    %515 = arith.negf %514 : vector<8x64xf32>
    %516 = math.exp %515 : vector<8x64xf32>
    %cst_121 = arith.constant 1.000000e+00 : f32
    %517 = vector.broadcast %cst_121 : f32 to vector<8x64xf32>
    %518 = arith.addf %517, %516 : vector<8x64xf32>
    %519 = arith.divf %517, %518 : vector<8x64xf32>
    %520 = vector.extract_strided_slice %519 {offsets = [0, 0], sizes = [8, 32], strides = [1, 1]} : vector<8x64xf32> to vector<8x32xf32>
    %521 = vector.extract_strided_slice %519 {offsets = [0, 32], sizes = [8, 32], strides = [1, 1]} : vector<8x64xf32> to vector<8x32xf32>
    %522 = vector.extract_strided_slice %512 {offsets = [0, 64], sizes = [8, 32], strides = [1, 1]} : vector<8x96xf32> to vector<8x32xf32>
    %523 = arith.addf %522, %469 : vector<8x32xf32>
    %524 = arith.mulf %520, %523 : vector<8x32xf32>
    %525 = arith.addf %510, %524 : vector<8x32xf32>
    %526 = math.tanh %525 : vector<8x32xf32>
    %cst_122 = arith.constant 1.000000e+00 : f32
    %527 = vector.broadcast %cst_122 : f32 to vector<8x32xf32>
    %528 = arith.subf %527, %521 : vector<8x32xf32>
    %529 = arith.mulf %528, %526 : vector<8x32xf32>
    %530 = arith.mulf %521, %473 : vector<8x32xf32>
    %531 = arith.addf %529, %530 : vector<8x32xf32>
    %532 = vector.extract_strided_slice %5 {offsets = [0, 0, 0], sizes = [1, 8, 1], strides = [1, 1, 1]} : vector<8x8x1xi1> to vector<1x8x1xi1>
    %533 = vector.shape_cast %532 : vector<1x8x1xi1> to vector<8x1xi1>
    %534 = arith.addf %531, %503 : vector<8x32xf32>
    %cst_123 = arith.constant 0.000000e+00 : f32
    %535 = vector.shape_cast %533 : vector<8x1xi1> to vector<8x1xi1>
    %536 = vector.broadcast %535 : vector<8x1xi1> to vector<8x32xi1>
    %537 = vector.broadcast %cst_123 : f32 to vector<8x32xf32>
    %538 = arith.select %536, %534, %537 : vector<8x32xi1>, vector<8x32xf32>
    %c0_124 = arith.constant 0 : index
    %c0_125 = arith.constant 0 : index
    %539 = vector.load %arg26[%c0_124, %c0_125] : memref<64x32xf32, #tpu.memory_space<vmem>>, vector<8x32xf32>
    tpu.vector_store %arg26[%c0_124, %c0_125], %538 {strides = array<i32>} : memref<64x32xf32, #tpu.memory_space<vmem>>, vector<8x32xf32>,
    %540 = vector.extract_strided_slice %5 {offsets = [0, 0, 0], sizes = [1, 8, 1], strides = [1, 1, 1]} : vector<8x8x1xi1> to vector<1x8x1xi1>
    %541 = vector.shape_cast %540 : vector<1x8x1xi1> to vector<8x1xi1>
    %542 = vector.shape_cast %541 : vector<8x1xi1> to vector<8x1xi1>
    %543 = vector.broadcast %542 : vector<8x1xi1> to vector<8x32xi1>
    %544 = arith.select %543, %531, %473 : vector<8x32xi1>, vector<8x32xf32>
    %545 = vector.extract_strided_slice %463 {offsets = [8, 0], sizes = [8, 64], strides = [1, 1]} : vector<32x64xf32> to vector<8x64xf32>
    %546 = vector.extract_strided_slice %464 {offsets = [8, 0], sizes = [8, 32], strides = [1, 1]} : vector<32x32xf32> to vector<8x32xf32>
    %547 = arith.truncf %508 : vector<8x32xf32> to vector<8x32xbf16>
    %cst_126 = arith.constant dense<0.000000e+00> : vector<8x96xf32>
    %548 = tpu.matmul %547, %466, %cst_126 {dimension_numbers = #tpu.dot_dimension_numbers<[1], [0], [0], [1], [0, 0, 1, 1], [], []>} : vector<8x32xbf16>, vector<32x96xbf16>, vector<8x96xf32> -> vector<8x96xf32>
    %549 = vector.extract_strided_slice %548 {offsets = [0, 0], sizes = [8, 64], strides = [1, 1]} : vector<8x96xf32> to vector<8x64xf32>
    %550 = arith.addf %545, %549 : vector<8x64xf32>
    %551 = arith.negf %550 : vector<8x64xf32>
    %552 = math.exp %551 : vector<8x64xf32>
    %cst_127 = arith.constant 1.000000e+00 : f32
    %553 = vector.broadcast %cst_127 : f32 to vector<8x64xf32>
    %554 = arith.addf %553, %552 : vector<8x64xf32>
    %555 = arith.divf %553, %554 : vector<8x64xf32>
    %556 = vector.extract_strided_slice %555 {offsets = [0, 0], sizes = [8, 32], strides = [1, 1]} : vector<8x64xf32> to vector<8x32xf32>
    %557 = vector.extract_strided_slice %555 {offsets = [0, 32], sizes = [8, 32], strides = [1, 1]} : vector<8x64xf32> to vector<8x32xf32>
    %558 = vector.extract_strided_slice %548 {offsets = [0, 64], sizes = [8, 32], strides = [1, 1]} : vector<8x96xf32> to vector<8x32xf32>
    %559 = arith.addf %558, %472 : vector<8x32xf32>
    %560 = arith.mulf %556, %559 : vector<8x32xf32>
    %561 = arith.addf %546, %560 : vector<8x32xf32>
    %562 = math.tanh %561 : vector<8x32xf32>
    %cst_128 = arith.constant 1.000000e+00 : f32
    %563 = vector.broadcast %cst_128 : f32 to vector<8x32xf32>
    %564 = arith.subf %563, %557 : vector<8x32xf32>
    %565 = arith.mulf %564, %562 : vector<8x32xf32>
    %566 = arith.mulf %557, %508 : vector<8x32xf32>
    %567 = arith.addf %565, %566 : vector<8x32xf32>
    %568 = vector.extract_strided_slice %9 {offsets = [1, 0, 0], sizes = [1, 8, 1], strides = [1, 1, 1]} : vector<4x8x1xi1> to vector<1x8x1xi1>
    %569 = vector.shape_cast %568 : vector<1x8x1xi1> to vector<8x1xi1>
    %cst_129 = arith.constant 0.000000e+00 : f32
    %570 = vector.shape_cast %569 : vector<8x1xi1> to vector<8x1xi1>
    %571 = vector.broadcast %570 : vector<8x1xi1> to vector<8x32xi1>
    %572 = vector.broadcast %cst_129 : f32 to vector<8x32xf32>
    %573 = arith.select %571, %567, %572 : vector<8x32xi1>, vector<8x32xf32>
    %574 = vector.extract_strided_slice %9 {offsets = [1, 0, 0], sizes = [1, 8, 1], strides = [1, 1, 1]} : vector<4x8x1xi1> to vector<1x8x1xi1>
    %575 = vector.shape_cast %574 : vector<1x8x1xi1> to vector<8x1xi1>
    %576 = vector.shape_cast %575 : vector<8x1xi1> to vector<8x1xi1>
    %577 = vector.broadcast %576 : vector<8x1xi1> to vector<8x32xi1>
    %578 = arith.select %577, %567, %508 : vector<8x32xi1>, vector<8x32xf32>
    %579 = vector.extract_strided_slice %456 {offsets = [8, 0], sizes = [8, 64], strides = [1, 1]} : vector<64x64xf32> to vector<8x64xf32>
    %580 = vector.extract_strided_slice %457 {offsets = [8, 0], sizes = [8, 32], strides = [1, 1]} : vector<64x32xf32> to vector<8x32xf32>
    %581 = arith.truncf %544 : vector<8x32xf32> to vector<8x32xbf16>
    %cst_130 = arith.constant dense<0.000000e+00> : vector<8x96xf32>
    %582 = tpu.matmul %581, %465, %cst_130 {dimension_numbers = #tpu.dot_dimension_numbers<[1], [0], [0], [1], [0, 0, 1, 1], [], []>} : vector<8x32xbf16>, vector<32x96xbf16>, vector<8x96xf32> -> vector<8x96xf32>
    %583 = vector.extract_strided_slice %582 {offsets = [0, 0], sizes = [8, 64], strides = [1, 1]} : vector<8x96xf32> to vector<8x64xf32>
    %584 = arith.addf %579, %583 : vector<8x64xf32>
    %585 = arith.negf %584 : vector<8x64xf32>
    %586 = math.exp %585 : vector<8x64xf32>
    %cst_131 = arith.constant 1.000000e+00 : f32
    %587 = vector.broadcast %cst_131 : f32 to vector<8x64xf32>
    %588 = arith.addf %587, %586 : vector<8x64xf32>
    %589 = arith.divf %587, %588 : vector<8x64xf32>
    %590 = vector.extract_strided_slice %589 {offsets = [0, 0], sizes = [8, 32], strides = [1, 1]} : vector<8x64xf32> to vector<8x32xf32>
    %591 = vector.extract_strided_slice %589 {offsets = [0, 32], sizes = [8, 32], strides = [1, 1]} : vector<8x64xf32> to vector<8x32xf32>
    %592 = vector.extract_strided_slice %582 {offsets = [0, 64], sizes = [8, 32], strides = [1, 1]} : vector<8x96xf32> to vector<8x32xf32>
    %593 = arith.addf %592, %469 : vector<8x32xf32>
    %594 = arith.mulf %590, %593 : vector<8x32xf32>
    %595 = arith.addf %580, %594 : vector<8x32xf32>
    %596 = math.tanh %595 : vector<8x32xf32>
    %cst_132 = arith.constant 1.000000e+00 : f32
    %597 = vector.broadcast %cst_132 : f32 to vector<8x32xf32>
    %598 = arith.subf %597, %591 : vector<8x32xf32>
    %599 = arith.mulf %598, %596 : vector<8x32xf32>
    %600 = arith.mulf %591, %544 : vector<8x32xf32>
    %601 = arith.addf %599, %600 : vector<8x32xf32>
    %602 = vector.extract_strided_slice %5 {offsets = [1, 0, 0], sizes = [1, 8, 1], strides = [1, 1, 1]} : vector<8x8x1xi1> to vector<1x8x1xi1>
    %603 = vector.shape_cast %602 : vector<1x8x1xi1> to vector<8x1xi1>
    %604 = arith.addf %601, %503 : vector<8x32xf32>
    %cst_133 = arith.constant 0.000000e+00 : f32
    %605 = vector.shape_cast %603 : vector<8x1xi1> to vector<8x1xi1>
    %606 = vector.broadcast %605 : vector<8x1xi1> to vector<8x32xi1>
    %607 = vector.broadcast %cst_133 : f32 to vector<8x32xf32>
    %608 = arith.select %606, %604, %607 : vector<8x32xi1>, vector<8x32xf32>
    %c8_134 = arith.constant 8 : index
    %c0_135 = arith.constant 0 : index
    %609 = vector.load %arg26[%c8_134, %c0_135] : memref<64x32xf32, #tpu.memory_space<vmem>>, vector<8x32xf32>
    tpu.vector_store %arg26[%c8_134, %c0_135], %608 {strides = array<i32>} : memref<64x32xf32, #tpu.memory_space<vmem>>, vector<8x32xf32>,
    %610 = vector.extract_strided_slice %5 {offsets = [1, 0, 0], sizes = [1, 8, 1], strides = [1, 1, 1]} : vector<8x8x1xi1> to vector<1x8x1xi1>
    %611 = vector.shape_cast %610 : vector<1x8x1xi1> to vector<8x1xi1>
    %612 = vector.shape_cast %611 : vector<8x1xi1> to vector<8x1xi1>
    %613 = vector.broadcast %612 : vector<8x1xi1> to vector<8x32xi1>
    %614 = arith.select %613, %601, %544 : vector<8x32xi1>, vector<8x32xf32>
    %615 = vector.extract_strided_slice %463 {offsets = [16, 0], sizes = [8, 64], strides = [1, 1]} : vector<32x64xf32> to vector<8x64xf32>
    %616 = vector.extract_strided_slice %464 {offsets = [16, 0], sizes = [8, 32], strides = [1, 1]} : vector<32x32xf32> to vector<8x32xf32>
    %617 = arith.truncf %578 : vector<8x32xf32> to vector<8x32xbf16>
    %cst_136 = arith.constant dense<0.000000e+00> : vector<8x96xf32>
    %618 = tpu.matmul %617, %466, %cst_136 {dimension_numbers = #tpu.dot_dimension_numbers<[1], [0], [0], [1], [0, 0, 1, 1], [], []>} : vector<8x32xbf16>, vector<32x96xbf16>, vector<8x96xf32> -> vector<8x96xf32>
    %619 = vector.extract_strided_slice %618 {offsets = [0, 0], sizes = [8, 64], strides = [1, 1]} : vector<8x96xf32> to vector<8x64xf32>
    %620 = arith.addf %615, %619 : vector<8x64xf32>
    %621 = arith.negf %620 : vector<8x64xf32>
    %622 = math.exp %621 : vector<8x64xf32>
    %cst_137 = arith.constant 1.000000e+00 : f32
    %623 = vector.broadcast %cst_137 : f32 to vector<8x64xf32>
    %624 = arith.addf %623, %622 : vector<8x64xf32>
    %625 = arith.divf %623, %624 : vector<8x64xf32>
    %626 = vector.extract_strided_slice %625 {offsets = [0, 0], sizes = [8, 32], strides = [1, 1]} : vector<8x64xf32> to vector<8x32xf32>
    %627 = vector.extract_strided_slice %625 {offsets = [0, 32], sizes = [8, 32], strides = [1, 1]} : vector<8x64xf32> to vector<8x32xf32>
    %628 = vector.extract_strided_slice %618 {offsets = [0, 64], sizes = [8, 32], strides = [1, 1]} : vector<8x96xf32> to vector<8x32xf32>
    %629 = arith.addf %628, %472 : vector<8x32xf32>
    %630 = arith.mulf %626, %629 : vector<8x32xf32>
    %631 = arith.addf %616, %630 : vector<8x32xf32>
    %632 = math.tanh %631 : vector<8x32xf32>
    %cst_138 = arith.constant 1.000000e+00 : f32
    %633 = vector.broadcast %cst_138 : f32 to vector<8x32xf32>
    %634 = arith.subf %633, %627 : vector<8x32xf32>
    %635 = arith.mulf %634, %632 : vector<8x32xf32>
    %636 = arith.mulf %627, %578 : vector<8x32xf32>
    %637 = arith.addf %635, %636 : vector<8x32xf32>
    %638 = vector.extract_strided_slice %9 {offsets = [2, 0, 0], sizes = [1, 8, 1], strides = [1, 1, 1]} : vector<4x8x1xi1> to vector<1x8x1xi1>
    %639 = vector.shape_cast %638 : vector<1x8x1xi1> to vector<8x1xi1>
    %cst_139 = arith.constant 0.000000e+00 : f32
    %640 = vector.shape_cast %639 : vector<8x1xi1> to vector<8x1xi1>
    %641 = vector.broadcast %640 : vector<8x1xi1> to vector<8x32xi1>
    %642 = vector.broadcast %cst_139 : f32 to vector<8x32xf32>
    %643 = arith.select %641, %637, %642 : vector<8x32xi1>, vector<8x32xf32>
    %644 = vector.extract_strided_slice %9 {offsets = [2, 0, 0], sizes = [1, 8, 1], strides = [1, 1, 1]} : vector<4x8x1xi1> to vector<1x8x1xi1>
    %645 = vector.shape_cast %644 : vector<1x8x1xi1> to vector<8x1xi1>
    %646 = vector.shape_cast %645 : vector<8x1xi1> to vector<8x1xi1>
    %647 = vector.broadcast %646 : vector<8x1xi1> to vector<8x32xi1>
    %648 = arith.select %647, %637, %578 : vector<8x32xi1>, vector<8x32xf32>
    %649 = vector.extract_strided_slice %456 {offsets = [16, 0], sizes = [8, 64], strides = [1, 1]} : vector<64x64xf32> to vector<8x64xf32>
    %650 = vector.extract_strided_slice %457 {offsets = [16, 0], sizes = [8, 32], strides = [1, 1]} : vector<64x32xf32> to vector<8x32xf32>
    %651 = arith.truncf %614 : vector<8x32xf32> to vector<8x32xbf16>
    %cst_140 = arith.constant dense<0.000000e+00> : vector<8x96xf32>
    %652 = tpu.matmul %651, %465, %cst_140 {dimension_numbers = #tpu.dot_dimension_numbers<[1], [0], [0], [1], [0, 0, 1, 1], [], []>} : vector<8x32xbf16>, vector<32x96xbf16>, vector<8x96xf32> -> vector<8x96xf32>
    %653 = vector.extract_strided_slice %652 {offsets = [0, 0], sizes = [8, 64], strides = [1, 1]} : vector<8x96xf32> to vector<8x64xf32>
    %654 = arith.addf %649, %653 : vector<8x64xf32>
    %655 = arith.negf %654 : vector<8x64xf32>
    %656 = math.exp %655 : vector<8x64xf32>
    %cst_141 = arith.constant 1.000000e+00 : f32
    %657 = vector.broadcast %cst_141 : f32 to vector<8x64xf32>
    %658 = arith.addf %657, %656 : vector<8x64xf32>
    %659 = arith.divf %657, %658 : vector<8x64xf32>
    %660 = vector.extract_strided_slice %659 {offsets = [0, 0], sizes = [8, 32], strides = [1, 1]} : vector<8x64xf32> to vector<8x32xf32>
    %661 = vector.extract_strided_slice %659 {offsets = [0, 32], sizes = [8, 32], strides = [1, 1]} : vector<8x64xf32> to vector<8x32xf32>
    %662 = vector.extract_strided_slice %652 {offsets = [0, 64], sizes = [8, 32], strides = [1, 1]} : vector<8x96xf32> to vector<8x32xf32>
    %663 = arith.addf %662, %469 : vector<8x32xf32>
    %664 = arith.mulf %660, %663 : vector<8x32xf32>
    %665 = arith.addf %650, %664 : vector<8x32xf32>
    %666 = math.tanh %665 : vector<8x32xf32>
    %cst_142 = arith.constant 1.000000e+00 : f32
    %667 = vector.broadcast %cst_142 : f32 to vector<8x32xf32>
    %668 = arith.subf %667, %661 : vector<8x32xf32>
    %669 = arith.mulf %668, %666 : vector<8x32xf32>
    %670 = arith.mulf %661, %614 : vector<8x32xf32>
    %671 = arith.addf %669, %670 : vector<8x32xf32>
    %672 = vector.extract_strided_slice %5 {offsets = [2, 0, 0], sizes = [1, 8, 1], strides = [1, 1, 1]} : vector<8x8x1xi1> to vector<1x8x1xi1>
    %673 = vector.shape_cast %672 : vector<1x8x1xi1> to vector<8x1xi1>
    %674 = arith.addf %671, %573 : vector<8x32xf32>
    %cst_143 = arith.constant 0.000000e+00 : f32
    %675 = vector.shape_cast %673 : vector<8x1xi1> to vector<8x1xi1>
    %676 = vector.broadcast %675 : vector<8x1xi1> to vector<8x32xi1>
    %677 = vector.broadcast %cst_143 : f32 to vector<8x32xf32>
    %678 = arith.select %676, %674, %677 : vector<8x32xi1>, vector<8x32xf32>
    %c16_144 = arith.constant 16 : index
    %c0_145 = arith.constant 0 : index
    %679 = vector.load %arg26[%c16_144, %c0_145] : memref<64x32xf32, #tpu.memory_space<vmem>>, vector<8x32xf32>
    tpu.vector_store %arg26[%c16_144, %c0_145], %678 {strides = array<i32>} : memref<64x32xf32, #tpu.memory_space<vmem>>, vector<8x32xf32>,
    %680 = vector.extract_strided_slice %5 {offsets = [2, 0, 0], sizes = [1, 8, 1], strides = [1, 1, 1]} : vector<8x8x1xi1> to vector<1x8x1xi1>
    %681 = vector.shape_cast %680 : vector<1x8x1xi1> to vector<8x1xi1>
    %682 = vector.shape_cast %681 : vector<8x1xi1> to vector<8x1xi1>
    %683 = vector.broadcast %682 : vector<8x1xi1> to vector<8x32xi1>
    %684 = arith.select %683, %671, %614 : vector<8x32xi1>, vector<8x32xf32>
    %685 = vector.extract_strided_slice %463 {offsets = [24, 0], sizes = [8, 64], strides = [1, 1]} : vector<32x64xf32> to vector<8x64xf32>
    %686 = vector.extract_strided_slice %464 {offsets = [24, 0], sizes = [8, 32], strides = [1, 1]} : vector<32x32xf32> to vector<8x32xf32>
    %687 = arith.truncf %648 : vector<8x32xf32> to vector<8x32xbf16>
    %cst_146 = arith.constant dense<0.000000e+00> : vector<8x96xf32>
    %688 = tpu.matmul %687, %466, %cst_146 {dimension_numbers = #tpu.dot_dimension_numbers<[1], [0], [0], [1], [0, 0, 1, 1], [], []>} : vector<8x32xbf16>, vector<32x96xbf16>, vector<8x96xf32> -> vector<8x96xf32>
    %689 = vector.extract_strided_slice %688 {offsets = [0, 0], sizes = [8, 64], strides = [1, 1]} : vector<8x96xf32> to vector<8x64xf32>
    %690 = arith.addf %685, %689 : vector<8x64xf32>
    %691 = arith.negf %690 : vector<8x64xf32>
    %692 = math.exp %691 : vector<8x64xf32>
    %cst_147 = arith.constant 1.000000e+00 : f32
    %693 = vector.broadcast %cst_147 : f32 to vector<8x64xf32>
    %694 = arith.addf %693, %692 : vector<8x64xf32>
    %695 = arith.divf %693, %694 : vector<8x64xf32>
    %696 = vector.extract_strided_slice %695 {offsets = [0, 0], sizes = [8, 32], strides = [1, 1]} : vector<8x64xf32> to vector<8x32xf32>
    %697 = vector.extract_strided_slice %695 {offsets = [0, 32], sizes = [8, 32], strides = [1, 1]} : vector<8x64xf32> to vector<8x32xf32>
    %698 = vector.extract_strided_slice %688 {offsets = [0, 64], sizes = [8, 32], strides = [1, 1]} : vector<8x96xf32> to vector<8x32xf32>
    %699 = arith.addf %698, %472 : vector<8x32xf32>
    %700 = arith.mulf %696, %699 : vector<8x32xf32>
    %701 = arith.addf %686, %700 : vector<8x32xf32>
    %702 = math.tanh %701 : vector<8x32xf32>
    %cst_148 = arith.constant 1.000000e+00 : f32
    %703 = vector.broadcast %cst_148 : f32 to vector<8x32xf32>
    %704 = arith.subf %703, %697 : vector<8x32xf32>
    %705 = arith.mulf %704, %702 : vector<8x32xf32>
    %706 = arith.mulf %697, %648 : vector<8x32xf32>
    %707 = arith.addf %705, %706 : vector<8x32xf32>
    %708 = vector.extract_strided_slice %9 {offsets = [3, 0, 0], sizes = [1, 8, 1], strides = [1, 1, 1]} : vector<4x8x1xi1> to vector<1x8x1xi1>
    %709 = vector.shape_cast %708 : vector<1x8x1xi1> to vector<8x1xi1>
    %cst_149 = arith.constant 0.000000e+00 : f32
    %710 = vector.shape_cast %709 : vector<8x1xi1> to vector<8x1xi1>
    %711 = vector.broadcast %710 : vector<8x1xi1> to vector<8x32xi1>
    %712 = vector.broadcast %cst_149 : f32 to vector<8x32xf32>
    %713 = arith.select %711, %707, %712 : vector<8x32xi1>, vector<8x32xf32>
    %714 = vector.extract_strided_slice %456 {offsets = [24, 0], sizes = [8, 64], strides = [1, 1]} : vector<64x64xf32> to vector<8x64xf32>
    %715 = vector.extract_strided_slice %457 {offsets = [24, 0], sizes = [8, 32], strides = [1, 1]} : vector<64x32xf32> to vector<8x32xf32>
    %716 = arith.truncf %684 : vector<8x32xf32> to vector<8x32xbf16>
    %cst_150 = arith.constant dense<0.000000e+00> : vector<8x96xf32>
    %717 = tpu.matmul %716, %465, %cst_150 {dimension_numbers = #tpu.dot_dimension_numbers<[1], [0], [0], [1], [0, 0, 1, 1], [], []>} : vector<8x32xbf16>, vector<32x96xbf16>, vector<8x96xf32> -> vector<8x96xf32>
    %718 = vector.extract_strided_slice %717 {offsets = [0, 0], sizes = [8, 64], strides = [1, 1]} : vector<8x96xf32> to vector<8x64xf32>
    %719 = arith.addf %714, %718 : vector<8x64xf32>
    %720 = arith.negf %719 : vector<8x64xf32>
    %721 = math.exp %720 : vector<8x64xf32>
    %cst_151 = arith.constant 1.000000e+00 : f32
    %722 = vector.broadcast %cst_151 : f32 to vector<8x64xf32>
    %723 = arith.addf %722, %721 : vector<8x64xf32>
    %724 = arith.divf %722, %723 : vector<8x64xf32>
    %725 = vector.extract_strided_slice %724 {offsets = [0, 0], sizes = [8, 32], strides = [1, 1]} : vector<8x64xf32> to vector<8x32xf32>
    %726 = vector.extract_strided_slice %724 {offsets = [0, 32], sizes = [8, 32], strides = [1, 1]} : vector<8x64xf32> to vector<8x32xf32>
    %727 = vector.extract_strided_slice %717 {offsets = [0, 64], sizes = [8, 32], strides = [1, 1]} : vector<8x96xf32> to vector<8x32xf32>
    %728 = arith.addf %727, %469 : vector<8x32xf32>
    %729 = arith.mulf %725, %728 : vector<8x32xf32>
    %730 = arith.addf %715, %729 : vector<8x32xf32>
    %731 = math.tanh %730 : vector<8x32xf32>
    %cst_152 = arith.constant 1.000000e+00 : f32
    %732 = vector.broadcast %cst_152 : f32 to vector<8x32xf32>
    %733 = arith.subf %732, %726 : vector<8x32xf32>
    %734 = arith.mulf %733, %731 : vector<8x32xf32>
    %735 = arith.mulf %726, %684 : vector<8x32xf32>
    %736 = arith.addf %734, %735 : vector<8x32xf32>
    %737 = vector.extract_strided_slice %5 {offsets = [3, 0, 0], sizes = [1, 8, 1], strides = [1, 1, 1]} : vector<8x8x1xi1> to vector<1x8x1xi1>
    %738 = vector.shape_cast %737 : vector<1x8x1xi1> to vector<8x1xi1>
    %739 = arith.addf %736, %573 : vector<8x32xf32>
    %cst_153 = arith.constant 0.000000e+00 : f32
    %740 = vector.shape_cast %738 : vector<8x1xi1> to vector<8x1xi1>
    %741 = vector.broadcast %740 : vector<8x1xi1> to vector<8x32xi1>
    %742 = vector.broadcast %cst_153 : f32 to vector<8x32xf32>
    %743 = arith.select %741, %739, %742 : vector<8x32xi1>, vector<8x32xf32>
    %c24_154 = arith.constant 24 : index
    %c0_155 = arith.constant 0 : index
    %744 = vector.load %arg26[%c24_154, %c0_155] : memref<64x32xf32, #tpu.memory_space<vmem>>, vector<8x32xf32>
    tpu.vector_store %arg26[%c24_154, %c0_155], %743 {strides = array<i32>} : memref<64x32xf32, #tpu.memory_space<vmem>>, vector<8x32xf32>,
    %745 = vector.extract_strided_slice %5 {offsets = [3, 0, 0], sizes = [1, 8, 1], strides = [1, 1, 1]} : vector<8x8x1xi1> to vector<1x8x1xi1>
    %746 = vector.shape_cast %745 : vector<1x8x1xi1> to vector<8x1xi1>
    %747 = vector.shape_cast %746 : vector<8x1xi1> to vector<8x1xi1>
    %748 = vector.broadcast %747 : vector<8x1xi1> to vector<8x32xi1>
    %749 = arith.select %748, %736, %684 : vector<8x32xi1>, vector<8x32xf32>
    %750 = vector.extract_strided_slice %456 {offsets = [32, 0], sizes = [8, 64], strides = [1, 1]} : vector<64x64xf32> to vector<8x64xf32>
    %751 = vector.extract_strided_slice %457 {offsets = [32, 0], sizes = [8, 32], strides = [1, 1]} : vector<64x32xf32> to vector<8x32xf32>
    %752 = arith.truncf %749 : vector<8x32xf32> to vector<8x32xbf16>
    %cst_156 = arith.constant dense<0.000000e+00> : vector<8x96xf32>
    %753 = tpu.matmul %752, %465, %cst_156 {dimension_numbers = #tpu.dot_dimension_numbers<[1], [0], [0], [1], [0, 0, 1, 1], [], []>} : vector<8x32xbf16>, vector<32x96xbf16>, vector<8x96xf32> -> vector<8x96xf32>
    %754 = vector.extract_strided_slice %753 {offsets = [0, 0], sizes = [8, 64], strides = [1, 1]} : vector<8x96xf32> to vector<8x64xf32>
    %755 = arith.addf %750, %754 : vector<8x64xf32>
    %756 = arith.negf %755 : vector<8x64xf32>
    %757 = math.exp %756 : vector<8x64xf32>
    %cst_157 = arith.constant 1.000000e+00 : f32
    %758 = vector.broadcast %cst_157 : f32 to vector<8x64xf32>
    %759 = arith.addf %758, %757 : vector<8x64xf32>
    %760 = arith.divf %758, %759 : vector<8x64xf32>
    %761 = vector.extract_strided_slice %760 {offsets = [0, 0], sizes = [8, 32], strides = [1, 1]} : vector<8x64xf32> to vector<8x32xf32>
    %762 = vector.extract_strided_slice %760 {offsets = [0, 32], sizes = [8, 32], strides = [1, 1]} : vector<8x64xf32> to vector<8x32xf32>
    %763 = vector.extract_strided_slice %753 {offsets = [0, 64], sizes = [8, 32], strides = [1, 1]} : vector<8x96xf32> to vector<8x32xf32>
    %764 = arith.addf %763, %469 : vector<8x32xf32>
    %765 = arith.mulf %761, %764 : vector<8x32xf32>
    %766 = arith.addf %751, %765 : vector<8x32xf32>
    %767 = math.tanh %766 : vector<8x32xf32>
    %cst_158 = arith.constant 1.000000e+00 : f32
    %768 = vector.broadcast %cst_158 : f32 to vector<8x32xf32>
    %769 = arith.subf %768, %762 : vector<8x32xf32>
    %770 = arith.mulf %769, %767 : vector<8x32xf32>
    %771 = arith.mulf %762, %749 : vector<8x32xf32>
    %772 = arith.addf %770, %771 : vector<8x32xf32>
    %773 = vector.extract_strided_slice %5 {offsets = [4, 0, 0], sizes = [1, 8, 1], strides = [1, 1, 1]} : vector<8x8x1xi1> to vector<1x8x1xi1>
    %774 = vector.shape_cast %773 : vector<1x8x1xi1> to vector<8x1xi1>
    %775 = arith.addf %772, %643 : vector<8x32xf32>
    %cst_159 = arith.constant 0.000000e+00 : f32
    %776 = vector.shape_cast %774 : vector<8x1xi1> to vector<8x1xi1>
    %777 = vector.broadcast %776 : vector<8x1xi1> to vector<8x32xi1>
    %778 = vector.broadcast %cst_159 : f32 to vector<8x32xf32>
    %779 = arith.select %777, %775, %778 : vector<8x32xi1>, vector<8x32xf32>
    %c32_160 = arith.constant 32 : index
    %c0_161 = arith.constant 0 : index
    %780 = vector.load %arg26[%c32_160, %c0_161] : memref<64x32xf32, #tpu.memory_space<vmem>>, vector<8x32xf32>
    tpu.vector_store %arg26[%c32_160, %c0_161], %779 {strides = array<i32>} : memref<64x32xf32, #tpu.memory_space<vmem>>, vector<8x32xf32>,
    %781 = vector.extract_strided_slice %5 {offsets = [4, 0, 0], sizes = [1, 8, 1], strides = [1, 1, 1]} : vector<8x8x1xi1> to vector<1x8x1xi1>
    %782 = vector.shape_cast %781 : vector<1x8x1xi1> to vector<8x1xi1>
    %783 = vector.shape_cast %782 : vector<8x1xi1> to vector<8x1xi1>
    %784 = vector.broadcast %783 : vector<8x1xi1> to vector<8x32xi1>
    %785 = arith.select %784, %772, %749 : vector<8x32xi1>, vector<8x32xf32>
    %786 = vector.extract_strided_slice %456 {offsets = [40, 0], sizes = [8, 64], strides = [1, 1]} : vector<64x64xf32> to vector<8x64xf32>
    %787 = vector.extract_strided_slice %457 {offsets = [40, 0], sizes = [8, 32], strides = [1, 1]} : vector<64x32xf32> to vector<8x32xf32>
    %788 = arith.truncf %785 : vector<8x32xf32> to vector<8x32xbf16>
    %cst_162 = arith.constant dense<0.000000e+00> : vector<8x96xf32>
    %789 = tpu.matmul %788, %465, %cst_162 {dimension_numbers = #tpu.dot_dimension_numbers<[1], [0], [0], [1], [0, 0, 1, 1], [], []>} : vector<8x32xbf16>, vector<32x96xbf16>, vector<8x96xf32> -> vector<8x96xf32>
    %790 = vector.extract_strided_slice %789 {offsets = [0, 0], sizes = [8, 64], strides = [1, 1]} : vector<8x96xf32> to vector<8x64xf32>
    %791 = arith.addf %786, %790 : vector<8x64xf32>
    %792 = arith.negf %791 : vector<8x64xf32>
    %793 = math.exp %792 : vector<8x64xf32>
    %cst_163 = arith.constant 1.000000e+00 : f32
    %794 = vector.broadcast %cst_163 : f32 to vector<8x64xf32>
    %795 = arith.addf %794, %793 : vector<8x64xf32>
    %796 = arith.divf %794, %795 : vector<8x64xf32>
    %797 = vector.extract_strided_slice %796 {offsets = [0, 0], sizes = [8, 32], strides = [1, 1]} : vector<8x64xf32> to vector<8x32xf32>
    %798 = vector.extract_strided_slice %796 {offsets = [0, 32], sizes = [8, 32], strides = [1, 1]} : vector<8x64xf32> to vector<8x32xf32>
    %799 = vector.extract_strided_slice %789 {offsets = [0, 64], sizes = [8, 32], strides = [1, 1]} : vector<8x96xf32> to vector<8x32xf32>
    %800 = arith.addf %799, %469 : vector<8x32xf32>
    %801 = arith.mulf %797, %800 : vector<8x32xf32>
    %802 = arith.addf %787, %801 : vector<8x32xf32>
    %803 = math.tanh %802 : vector<8x32xf32>
    %cst_164 = arith.constant 1.000000e+00 : f32
    %804 = vector.broadcast %cst_164 : f32 to vector<8x32xf32>
    %805 = arith.subf %804, %798 : vector<8x32xf32>
    %806 = arith.mulf %805, %803 : vector<8x32xf32>
    %807 = arith.mulf %798, %785 : vector<8x32xf32>
    %808 = arith.addf %806, %807 : vector<8x32xf32>
    %809 = vector.extract_strided_slice %5 {offsets = [5, 0, 0], sizes = [1, 8, 1], strides = [1, 1, 1]} : vector<8x8x1xi1> to vector<1x8x1xi1>
    %810 = vector.shape_cast %809 : vector<1x8x1xi1> to vector<8x1xi1>
    %811 = arith.addf %808, %643 : vector<8x32xf32>
    %cst_165 = arith.constant 0.000000e+00 : f32
    %812 = vector.shape_cast %810 : vector<8x1xi1> to vector<8x1xi1>
    %813 = vector.broadcast %812 : vector<8x1xi1> to vector<8x32xi1>
    %814 = vector.broadcast %cst_165 : f32 to vector<8x32xf32>
    %815 = arith.select %813, %811, %814 : vector<8x32xi1>, vector<8x32xf32>
    %c40_166 = arith.constant 40 : index
    %c0_167 = arith.constant 0 : index
    %816 = vector.load %arg26[%c40_166, %c0_167] : memref<64x32xf32, #tpu.memory_space<vmem>>, vector<8x32xf32>
    tpu.vector_store %arg26[%c40_166, %c0_167], %815 {strides = array<i32>} : memref<64x32xf32, #tpu.memory_space<vmem>>, vector<8x32xf32>,
    %817 = vector.extract_strided_slice %5 {offsets = [5, 0, 0], sizes = [1, 8, 1], strides = [1, 1, 1]} : vector<8x8x1xi1> to vector<1x8x1xi1>
    %818 = vector.shape_cast %817 : vector<1x8x1xi1> to vector<8x1xi1>
    %819 = vector.shape_cast %818 : vector<8x1xi1> to vector<8x1xi1>
    %820 = vector.broadcast %819 : vector<8x1xi1> to vector<8x32xi1>
    %821 = arith.select %820, %808, %785 : vector<8x32xi1>, vector<8x32xf32>
    %822 = vector.extract_strided_slice %456 {offsets = [48, 0], sizes = [8, 64], strides = [1, 1]} : vector<64x64xf32> to vector<8x64xf32>
    %823 = vector.extract_strided_slice %457 {offsets = [48, 0], sizes = [8, 32], strides = [1, 1]} : vector<64x32xf32> to vector<8x32xf32>
    %824 = arith.truncf %821 : vector<8x32xf32> to vector<8x32xbf16>
    %cst_168 = arith.constant dense<0.000000e+00> : vector<8x96xf32>
    %825 = tpu.matmul %824, %465, %cst_168 {dimension_numbers = #tpu.dot_dimension_numbers<[1], [0], [0], [1], [0, 0, 1, 1], [], []>} : vector<8x32xbf16>, vector<32x96xbf16>, vector<8x96xf32> -> vector<8x96xf32>
    %826 = vector.extract_strided_slice %825 {offsets = [0, 0], sizes = [8, 64], strides = [1, 1]} : vector<8x96xf32> to vector<8x64xf32>
    %827 = arith.addf %822, %826 : vector<8x64xf32>
    %828 = arith.negf %827 : vector<8x64xf32>
    %829 = math.exp %828 : vector<8x64xf32>
    %cst_169 = arith.constant 1.000000e+00 : f32
    %830 = vector.broadcast %cst_169 : f32 to vector<8x64xf32>
    %831 = arith.addf %830, %829 : vector<8x64xf32>
    %832 = arith.divf %830, %831 : vector<8x64xf32>
    %833 = vector.extract_strided_slice %832 {offsets = [0, 0], sizes = [8, 32], strides = [1, 1]} : vector<8x64xf32> to vector<8x32xf32>
    %834 = vector.extract_strided_slice %832 {offsets = [0, 32], sizes = [8, 32], strides = [1, 1]} : vector<8x64xf32> to vector<8x32xf32>
    %835 = vector.extract_strided_slice %825 {offsets = [0, 64], sizes = [8, 32], strides = [1, 1]} : vector<8x96xf32> to vector<8x32xf32>
    %836 = arith.addf %835, %469 : vector<8x32xf32>
    %837 = arith.mulf %833, %836 : vector<8x32xf32>
    %838 = arith.addf %823, %837 : vector<8x32xf32>
    %839 = math.tanh %838 : vector<8x32xf32>
    %cst_170 = arith.constant 1.000000e+00 : f32
    %840 = vector.broadcast %cst_170 : f32 to vector<8x32xf32>
    %841 = arith.subf %840, %834 : vector<8x32xf32>
    %842 = arith.mulf %841, %839 : vector<8x32xf32>
    %843 = arith.mulf %834, %821 : vector<8x32xf32>
    %844 = arith.addf %842, %843 : vector<8x32xf32>
    %845 = vector.extract_strided_slice %5 {offsets = [6, 0, 0], sizes = [1, 8, 1], strides = [1, 1, 1]} : vector<8x8x1xi1> to vector<1x8x1xi1>
    %846 = vector.shape_cast %845 : vector<1x8x1xi1> to vector<8x1xi1>
    %847 = arith.addf %844, %713 : vector<8x32xf32>
    %cst_171 = arith.constant 0.000000e+00 : f32
    %848 = vector.shape_cast %846 : vector<8x1xi1> to vector<8x1xi1>
    %849 = vector.broadcast %848 : vector<8x1xi1> to vector<8x32xi1>
    %850 = vector.broadcast %cst_171 : f32 to vector<8x32xf32>
    %851 = arith.select %849, %847, %850 : vector<8x32xi1>, vector<8x32xf32>
    %c48_172 = arith.constant 48 : index
    %c0_173 = arith.constant 0 : index
    %852 = vector.load %arg26[%c48_172, %c0_173] : memref<64x32xf32, #tpu.memory_space<vmem>>, vector<8x32xf32>
    tpu.vector_store %arg26[%c48_172, %c0_173], %851 {strides = array<i32>} : memref<64x32xf32, #tpu.memory_space<vmem>>, vector<8x32xf32>,
    %853 = vector.extract_strided_slice %5 {offsets = [6, 0, 0], sizes = [1, 8, 1], strides = [1, 1, 1]} : vector<8x8x1xi1> to vector<1x8x1xi1>
    %854 = vector.shape_cast %853 : vector<1x8x1xi1> to vector<8x1xi1>
    %855 = vector.shape_cast %854 : vector<8x1xi1> to vector<8x1xi1>
    %856 = vector.broadcast %855 : vector<8x1xi1> to vector<8x32xi1>
    %857 = arith.select %856, %844, %821 : vector<8x32xi1>, vector<8x32xf32>
    %858 = vector.extract_strided_slice %456 {offsets = [56, 0], sizes = [8, 64], strides = [1, 1]} : vector<64x64xf32> to vector<8x64xf32>
    %859 = vector.extract_strided_slice %457 {offsets = [56, 0], sizes = [8, 32], strides = [1, 1]} : vector<64x32xf32> to vector<8x32xf32>
    %860 = arith.truncf %857 : vector<8x32xf32> to vector<8x32xbf16>
    %cst_174 = arith.constant dense<0.000000e+00> : vector<8x96xf32>
    %861 = tpu.matmul %860, %465, %cst_174 {dimension_numbers = #tpu.dot_dimension_numbers<[1], [0], [0], [1], [0, 0, 1, 1], [], []>} : vector<8x32xbf16>, vector<32x96xbf16>, vector<8x96xf32> -> vector<8x96xf32>
    %862 = vector.extract_strided_slice %861 {offsets = [0, 0], sizes = [8, 64], strides = [1, 1]} : vector<8x96xf32> to vector<8x64xf32>
    %863 = arith.addf %858, %862 : vector<8x64xf32>
    %864 = arith.negf %863 : vector<8x64xf32>
    %865 = math.exp %864 : vector<8x64xf32>
    %cst_175 = arith.constant 1.000000e+00 : f32
    %866 = vector.broadcast %cst_175 : f32 to vector<8x64xf32>
    %867 = arith.addf %866, %865 : vector<8x64xf32>
    %868 = arith.divf %866, %867 : vector<8x64xf32>
    %869 = vector.extract_strided_slice %868 {offsets = [0, 0], sizes = [8, 32], strides = [1, 1]} : vector<8x64xf32> to vector<8x32xf32>
    %870 = vector.extract_strided_slice %868 {offsets = [0, 32], sizes = [8, 32], strides = [1, 1]} : vector<8x64xf32> to vector<8x32xf32>
    %871 = vector.extract_strided_slice %861 {offsets = [0, 64], sizes = [8, 32], strides = [1, 1]} : vector<8x96xf32> to vector<8x32xf32>
    %872 = arith.addf %871, %469 : vector<8x32xf32>
    %873 = arith.mulf %869, %872 : vector<8x32xf32>
    %874 = arith.addf %859, %873 : vector<8x32xf32>
    %875 = math.tanh %874 : vector<8x32xf32>
    %cst_176 = arith.constant 1.000000e+00 : f32
    %876 = vector.broadcast %cst_176 : f32 to vector<8x32xf32>
    %877 = arith.subf %876, %870 : vector<8x32xf32>
    %878 = arith.mulf %877, %875 : vector<8x32xf32>
    %879 = arith.mulf %870, %857 : vector<8x32xf32>
    %880 = arith.addf %878, %879 : vector<8x32xf32>
    %881 = vector.extract_strided_slice %5 {offsets = [7, 0, 0], sizes = [1, 8, 1], strides = [1, 1, 1]} : vector<8x8x1xi1> to vector<1x8x1xi1>
    %882 = vector.shape_cast %881 : vector<1x8x1xi1> to vector<8x1xi1>
    %883 = arith.addf %880, %713 : vector<8x32xf32>
    %cst_177 = arith.constant 0.000000e+00 : f32
    %884 = vector.shape_cast %882 : vector<8x1xi1> to vector<8x1xi1>
    %885 = vector.broadcast %884 : vector<8x1xi1> to vector<8x32xi1>
    %886 = vector.broadcast %cst_177 : f32 to vector<8x32xf32>
    %887 = arith.select %885, %883, %886 : vector<8x32xi1>, vector<8x32xf32>
    %c56_178 = arith.constant 56 : index
    %c0_179 = arith.constant 0 : index
    %888 = vector.load %arg26[%c56_178, %c0_179] : memref<64x32xf32, #tpu.memory_space<vmem>>, vector<8x32xf32>
    tpu.vector_store %arg26[%c56_178, %c0_179], %887 {strides = array<i32>} : memref<64x32xf32, #tpu.memory_space<vmem>>, vector<8x32xf32>,
    %c0_180 = arith.constant 0 : index
    %c0_181 = arith.constant 0 : index
    %889 = vector.load %arg26[%c0_180, %c0_181] : memref<64x32xf32, #tpu.memory_space<vmem>>, vector<64x32xf32>
    %890 = arith.truncf %889 : vector<64x32xf32> to vector<64x32xbf16>
    %c0_182 = arith.constant 0 : index
    %c0_183 = arith.constant 0 : index
    %891 = vector.load %arg21[%c0_182, %c0_183] : memref<32x128xbf16, #tpu.memory_space<vmem>>, vector<32x128xbf16>
    %cst_184 = arith.constant dense<0.000000e+00> : vector<64x128xf32>
    %892 = tpu.matmul %890, %891, %cst_184 {dimension_numbers = #tpu.dot_dimension_numbers<[1], [0], [0], [1], [0, 0, 1, 1], [], []>} : vector<64x32xbf16>, vector<32x128xbf16>, vector<64x128xf32> -> vector<64x128xf32>
    %c0_185 = arith.constant 0 : index
    %c0_186 = arith.constant 0 : index
    %893 = vector.load %arg22[%c0_185, %c0_186] : memref<1x128xf32, #tpu.memory_space<vmem>>, vector<1x128xf32>
    %894 = vector.broadcast %893 : vector<1x128xf32> to vector<64x128xf32>
    %895 = arith.addf %892, %894 : vector<64x128xf32>
    %c0_187 = arith.constant 0 : index
    %c0_188 = arith.constant 0 : index
    %896 = vector.load %arg23[%c0_187, %c0_188] : memref<64x128xf32, #tpu.memory_space<vmem>>, vector<64x128xf32>
    tpu.vector_store %arg23[%c0_187, %c0_188], %895 {strides = array<i32>} : memref<64x128xf32, #tpu.memory_space<vmem>>, vector<64x128xf32>,
    return
  }
  func.func @transform_0(%arg0: i32) -> (i32, i32) {
    %c0_i32 = arith.constant 0 : i32
    %c0_i32_0 = arith.constant 0 : i32
    %c0_i32_1 = arith.constant 0 : i32
    return %c0_i32, %c0_i32_0 : i32, i32
  }
  func.func @transform_1(%arg0: i32) -> (i32, i32) {
    %c0_i32 = arith.constant 0 : i32
    %c0_i32_0 = arith.constant 0 : i32
    %c0_i32_1 = arith.constant 0 : i32
    return %c0_i32, %c0_i32_0 : i32, i32
  }
  func.func @transform_2(%arg0: i32) -> (i32, i32) {
    %c0_i32 = arith.constant 0 : i32
    %c0_i32_0 = arith.constant 0 : i32
    %c0_i32_1 = arith.constant 0 : i32
    return %c0_i32, %c0_i32_0 : i32, i32
  }
  func.func @transform_3(%arg0: i32) -> (i32, i32) {
    %c0_i32 = arith.constant 0 : i32
    %c0_i32_0 = arith.constant 0 : i32
    %c0_i32_1 = arith.constant 0 : i32
    return %c0_i32, %c0_i32_0 : i32, i32
  }
  func.func @transform_4(%arg0: i32) -> (i32, i32) {
    %c0_i32 = arith.constant 0 : i32
    %c0_i32_0 = arith.constant 0 : i32
    %c0_i32_1 = arith.constant 0 : i32
    return %c0_i32, %c0_i32_0 : i32, i32
  }
  func.func @transform_5(%arg0: i32) -> (i32, i32) {
    %c0_i32 = arith.constant 0 : i32
    %c0_i32_0 = arith.constant 0 : i32
    %c0_i32_1 = arith.constant 0 : i32
    return %c0_i32, %c0_i32_0 : i32, i32
  }
  func.func @transform_6(%arg0: i32) -> (i32, i32) {
    %c0_i32 = arith.constant 0 : i32
    %c0_i32_0 = arith.constant 0 : i32
    %c0_i32_1 = arith.constant 0 : i32
    return %c0_i32, %c0_i32_0 : i32, i32
  }
  func.func @transform_7(%arg0: i32) -> (i32, i32) {
    %c0_i32 = arith.constant 0 : i32
    %c0_i32_0 = arith.constant 0 : i32
    %c0_i32_1 = arith.constant 0 : i32
    return %c0_i32, %c0_i32_0 : i32, i32
  }
  func.func @transform_8(%arg0: i32) -> (i32, i32) {
    %c0_i32 = arith.constant 0 : i32
    %c0_i32_0 = arith.constant 0 : i32
    %c0_i32_1 = arith.constant 0 : i32
    return %c0_i32, %c0_i32_0 : i32, i32
  }
  func.func @transform_9(%arg0: i32) -> (i32, i32) {
    %c0_i32 = arith.constant 0 : i32
    %c0_i32_0 = arith.constant 0 : i32
    %c0_i32_1 = arith.constant 0 : i32
    return %c0_i32, %c0_i32_0 : i32, i32
  }
  func.func @transform_10(%arg0: i32) -> (i32, i32) {
    %c0_i32 = arith.constant 0 : i32
    %c0_i32_0 = arith.constant 0 : i32
    %c0_i32_1 = arith.constant 0 : i32
    return %c0_i32, %c0_i32_0 : i32, i32
  }
  func.func @transform_11(%arg0: i32) -> (i32, i32) {
    %c0_i32 = arith.constant 0 : i32
    %c0_i32_0 = arith.constant 0 : i32
    %c0_i32_1 = arith.constant 0 : i32
    return %c0_i32, %c0_i32_0 : i32, i32
  }
  func.func @transform_12(%arg0: i32) -> (i32, i32) {
    %c0_i32 = arith.constant 0 : i32
    %c0_i32_0 = arith.constant 0 : i32
    %c0_i32_1 = arith.constant 0 : i32
    return %c0_i32, %c0_i32_0 : i32, i32
  }
  func.func @transform_13(%arg0: i32) -> (i32, i32) {
    %c0_i32 = arith.constant 0 : i32
    %c0_i32_0 = arith.constant 0 : i32
    %c0_i32_1 = arith.constant 0 : i32
    return %c0_i32, %c0_i32_0 : i32, i32
  }
  func.func @transform_14(%arg0: i32) -> (i32, i32) {
    %c0_i32 = arith.constant 0 : i32
    %c0_i32_0 = arith.constant 0 : i32
    %c0_i32_1 = arith.constant 0 : i32
    return %c0_i32, %c0_i32_0 : i32, i32
  }
  func.func @transform_15(%arg0: i32) -> (i32, i32) {
    %c0_i32 = arith.constant 0 : i32
    %c0_i32_0 = arith.constant 0 : i32
    %c0_i32_1 = arith.constant 0 : i32
    return %c0_i32, %c0_i32_0 : i32, i32
  }
  func.func @transform_16(%arg0: i32) -> (i32, i32) {
    %c0_i32 = arith.constant 0 : i32
    %c0_i32_0 = arith.constant 0 : i32
    %c0_i32_1 = arith.constant 0 : i32
    return %c0_i32, %c0_i32_0 : i32, i32
  }
  func.func @transform_17(%arg0: i32) -> (i32, i32) {
    %c0_i32 = arith.constant 0 : i32
    %c0_i32_0 = arith.constant 0 : i32
    %c0_i32_1 = arith.constant 0 : i32
    return %c0_i32, %c0_i32_0 : i32, i32
  }
  func.func @transform_18(%arg0: i32) -> (i32, i32) {
    %c0_i32 = arith.constant 0 : i32
    %c0_i32_0 = arith.constant 0 : i32
    %c0_i32_1 = arith.constant 0 : i32
    return %c0_i32, %c0_i32_0 : i32, i32
  }
  func.func @transform_19(%arg0: i32) -> (i32, i32) {
    %c0_i32 = arith.constant 0 : i32
    %c0_i32_0 = arith.constant 0 : i32
    %c0_i32_1 = arith.constant 0 : i32
    return %c0_i32, %c0_i32_0 : i32, i32
  }
  func.func @transform_20(%arg0: i32) -> (i32, i32) {
    %c0_i32 = arith.constant 0 : i32
    %c0_i32_0 = arith.constant 0 : i32
    %c0_i32_1 = arith.constant 0 : i32
    return %c0_i32, %c0_i32_0 : i32, i32
  }
  func.func @transform_21(%arg0: i32) -> (i32, i32) {
    %c0_i32 = arith.constant 0 : i32
    %c0_i32_0 = arith.constant 0 : i32
    %c0_i32_1 = arith.constant 0 : i32
    return %c0_i32, %c0_i32_0 : i32, i32
  }
  func.func @transform_22(%arg0: i32) -> (i32, i32) {
    %c0_i32 = arith.constant 0 : i32
    %c0_i32_0 = arith.constant 0 : i32
    %c0_i32_1 = arith.constant 0 : i32
    return %c0_i32, %c0_i32_0 : i32, i32
  }
}

</mosaic_0001>

<llo_original>
// kernel: mt_rnn_slowfast_forward.1
$region0: #{mt_rnn_slowfast_forward.1}
  #allocation0 [shape = 'u32[]', space=smem, size = 0x4, offset = 0x4, fixed_abs, tag = 'smem constant byte address 0x4 - core index']
  #allocation1 [shape = 'u32[144,128]{1,0:T(1,128)}', space=vmem, size = 0x12000, scoped, tag = 'internal scratch']
  #allocation2 [shape = 'f32[64,32]{1,0:T(8,128)}', space=vmem, size = 0x8000, scoped, tag = 'scratch operand']
  #allocation3 [shape = 'f32[32,32]{1,0:T(8,128)}', space=vmem, size = 0x4000, scoped, tag = 'scratch operand']
  #allocation4 [shape = 'f32[64,32]{1,0:T(8,128)}', space=vmem, size = 0x8000, scoped, tag = 'scratch operand']
  %s0 = inlined_call_operand.vmem [shape: s32[8,1], index: 0, kind: input, shape index: {}]
  %s1 = inlined_call_operand.vmem [shape: s32[8,1], index: 1, kind: input, shape index: {}]
  %s2 = inlined_call_operand.vmem [shape: bf16[64,16], index: 2, kind: input, shape index: {}]
  %s3 = inlined_call_operand.vmem [shape: bf16[32,16], index: 3, kind: input, shape index: {}]
  %s4 = inlined_call_operand.vmem [shape: bf16[16,96], index: 4, kind: input, shape index: {}]
  %s5 = inlined_call_operand.vmem [shape: bf16[32,96], index: 5, kind: input, shape index: {}]
  %s6 = inlined_call_operand.vmem [shape: f32[1,96], index: 6, kind: input, shape index: {}]
  %s7 = inlined_call_operand.vmem [shape: f32[1,32], index: 7, kind: input, shape index: {}]
  %s8 = inlined_call_operand.vmem [shape: bf16[32,96], index: 8, kind: input, shape index: {}]
  %s9 = inlined_call_operand.vmem [shape: bf16[32,96], index: 9, kind: input, shape index: {}]
  %s10 = inlined_call_operand.vmem [shape: f32[1,96], index: 10, kind: input, shape index: {}]
  %s11 = inlined_call_operand.vmem [shape: f32[1,32], index: 11, kind: input, shape index: {}]
  %s12 = inlined_call_operand.vmem [shape: bf16[16,96], index: 12, kind: input, shape index: {}]
  %s13 = inlined_call_operand.vmem [shape: bf16[32,96], index: 13, kind: input, shape index: {}]
  %s14 = inlined_call_operand.vmem [shape: f32[1,96], index: 14, kind: input, shape index: {}]
  %s15 = inlined_call_operand.vmem [shape: f32[1,32], index: 15, kind: input, shape index: {}]
  %s16 = inlined_call_operand.vmem [shape: bf16[32,96], index: 16, kind: input, shape index: {}]
  %s17 = inlined_call_operand.vmem [shape: bf16[32,96], index: 17, kind: input, shape index: {}]
  %s18 = inlined_call_operand.vmem [shape: f32[1,96], index: 18, kind: input, shape index: {}]
  %s19 = inlined_call_operand.vmem [shape: f32[1,32], index: 19, kind: input, shape index: {}]
  %s20 = inlined_call_operand.vmem [shape: bf16[32,128], index: 20, kind: input, shape index: {}]
  %s21 = inlined_call_operand.vmem [shape: f32[1,128], index: 21, kind: input, shape index: {}]
  %s22 = inlined_call_operand.vmem [shape: f32[64,128], index: 22, kind: output, shape index: {}]
  %s23 = sld [smem:[#allocation0]]
  $region98: #{mt_rnn_slowfast_forward.1} parent=0
    _
  %s25 = ssub.s32 1, %s23
  %s26 = scalar_select 0, %s25, %s23
  // Predicated region
  $region2: #{mt_rnn_slowfast_forward.1} parent=0 // pred_check
    _
  $region3: #{mt_rnn_slowfast_forward.1} parent=0 // pred_check_branch
    %28 = sbr.rel (0) target = $region5
  $region4: #{mt_rnn_slowfast_forward.1} parent=0 // pred_region
    _
  $region5: #{mt_rnn_slowfast_forward.1} parent=0 // pred_fallthru
    _
  // Predicated region
  $region6: #{mt_rnn_slowfast_forward.1} parent=0 // pred_check
    _
  $region7: #{mt_rnn_slowfast_forward.1} parent=0 // pred_check_branch
    %30 = sbr.rel (0) target = $region9
  $region8: #{mt_rnn_slowfast_forward.1} parent=0 // pred_region
    _
  $region9: #{mt_rnn_slowfast_forward.1} parent=0 // pred_fallthru
    _
  // Predicated region
  $region10: #{mt_rnn_slowfast_forward.1} parent=0 // pred_check
    _
  $region11: #{mt_rnn_slowfast_forward.1} parent=0 // pred_check_branch
    %32 = sbr.rel (0) target = $region13
  $region12: #{mt_rnn_slowfast_forward.1} parent=0 // pred_region
    _
  $region13: #{mt_rnn_slowfast_forward.1} parent=0 // pred_fallthru
    _
  // Predicated region
  $region14: #{mt_rnn_slowfast_forward.1} parent=0 // pred_check
    _
  $region15: #{mt_rnn_slowfast_forward.1} parent=0 // pred_check_branch
    %34 = sbr.rel (0) target = $region17
  $region16: #{mt_rnn_slowfast_forward.1} parent=0 // pred_region
    _
  $region17: #{mt_rnn_slowfast_forward.1} parent=0 // pred_fallthru
    _
  // Predicated region
  $region18: #{mt_rnn_slowfast_forward.1} parent=0 // pred_check
    _
  $region19: #{mt_rnn_slowfast_forward.1} parent=0 // pred_check_branch
    %36 = sbr.rel (0) target = $region21
  $region20: #{mt_rnn_slowfast_forward.1} parent=0 // pred_region
    _
  $region21: #{mt_rnn_slowfast_forward.1} parent=0 // pred_fallthru
    _
  // Predicated region
  $region22: #{mt_rnn_slowfast_forward.1} parent=0 // pred_check
    _
  $region23: #{mt_rnn_slowfast_forward.1} parent=0 // pred_check_branch
    %38 = sbr.rel (0) target = $region25
  $region24: #{mt_rnn_slowfast_forward.1} parent=0 // pred_region
    _
  $region25: #{mt_rnn_slowfast_forward.1} parent=0 // pred_fallthru
    _
  // Predicated region
  $region26: #{mt_rnn_slowfast_forward.1} parent=0 // pred_check
    _
  $region27: #{mt_rnn_slowfast_forward.1} parent=0 // pred_check_branch
    %40 = sbr.rel (0) target = $region29
  $region28: #{mt_rnn_slowfast_forward.1} parent=0 // pred_region
    _
  $region29: #{mt_rnn_slowfast_forward.1} parent=0 // pred_fallthru
    _
  // Predicated region
  $region30: #{mt_rnn_slowfast_forward.1} parent=0 // pred_check
    _
  $region31: #{mt_rnn_slowfast_forward.1} parent=0 // pred_check_branch
    %42 = sbr.rel (0) target = $region33
  $region32: #{mt_rnn_slowfast_forward.1} parent=0 // pred_region
    _
  $region33: #{mt_rnn_slowfast_forward.1} parent=0 // pred_fallthru
    _
  // Predicated region
  $region34: #{mt_rnn_slowfast_forward.1} parent=0 // pred_check
    _
  $region35: #{mt_rnn_slowfast_forward.1} parent=0 // pred_check_branch
    %44 = sbr.rel (0) target = $region37
  $region36: #{mt_rnn_slowfast_forward.1} parent=0 // pred_region
    _
  $region37: #{mt_rnn_slowfast_forward.1} parent=0 // pred_fallthru
    _
  // Predicated region
  $region38: #{mt_rnn_slowfast_forward.1} parent=0 // pred_check
    _
  $region39: #{mt_rnn_slowfast_forward.1} parent=0 // pred_check_branch
    %46 = sbr.rel (0) target = $region41
  $region40: #{mt_rnn_slowfast_forward.1} parent=0 // pred_region
    _
  $region41: #{mt_rnn_slowfast_forward.1} parent=0 // pred_fallthru
    _
  // Predicated region
  $region42: #{mt_rnn_slowfast_forward.1} parent=0 // pred_check
    _
  $region43: #{mt_rnn_slowfast_forward.1} parent=0 // pred_check_branch
    %48 = sbr.rel (0) target = $region45
  $region44: #{mt_rnn_slowfast_forward.1} parent=0 // pred_region
    _
  $region45: #{mt_rnn_slowfast_forward.1} parent=0 // pred_fallthru
    _
  // Predicated region
  $region46: #{mt_rnn_slowfast_forward.1} parent=0 // pred_check
    _
  $region47: #{mt_rnn_slowfast_forward.1} parent=0 // pred_check_branch
    %50 = sbr.rel (0) target = $region49
  $region48: #{mt_rnn_slowfast_forward.1} parent=0 // pred_region
    _
  $region49: #{mt_rnn_slowfast_forward.1} parent=0 // pred_fallthru
    _
  // Predicated region
  $region50: #{mt_rnn_slowfast_forward.1} parent=0 // pred_check
    _
  $region51: #{mt_rnn_slowfast_forward.1} parent=0 // pred_check_branch
    %52 = sbr.rel (0) target = $region53
  $region52: #{mt_rnn_slowfast_forward.1} parent=0 // pred_region
    _
  $region53: #{mt_rnn_slowfast_forward.1} parent=0 // pred_fallthru
    _
  // Predicated region
  $region54: #{mt_rnn_slowfast_forward.1} parent=0 // pred_check
    _
  $region55: #{mt_rnn_slowfast_forward.1} parent=0 // pred_check_branch
    %54 = sbr.rel (0) target = $region57
  $region56: #{mt_rnn_slowfast_forward.1} parent=0 // pred_region
    _
  $region57: #{mt_rnn_slowfast_forward.1} parent=0 // pred_fallthru
    _
  // Predicated region
  $region58: #{mt_rnn_slowfast_forward.1} parent=0 // pred_check
    _
  $region59: #{mt_rnn_slowfast_forward.1} parent=0 // pred_check_branch
    %56 = sbr.rel (0) target = $region61
  $region60: #{mt_rnn_slowfast_forward.1} parent=0 // pred_region
    _
  $region61: #{mt_rnn_slowfast_forward.1} parent=0 // pred_fallthru
    _
  // Predicated region
  $region62: #{mt_rnn_slowfast_forward.1} parent=0 // pred_check
    _
  $region63: #{mt_rnn_slowfast_forward.1} parent=0 // pred_check_branch
    %58 = sbr.rel (0) target = $region65
  $region64: #{mt_rnn_slowfast_forward.1} parent=0 // pred_region
    _
  $region65: #{mt_rnn_slowfast_forward.1} parent=0 // pred_fallthru
    _
  // Predicated region
  $region66: #{mt_rnn_slowfast_forward.1} parent=0 // pred_check
    _
  $region67: #{mt_rnn_slowfast_forward.1} parent=0 // pred_check_branch
    %60 = sbr.rel (0) target = $region69
  $region68: #{mt_rnn_slowfast_forward.1} parent=0 // pred_region
    _
  $region69: #{mt_rnn_slowfast_forward.1} parent=0 // pred_fallthru
    _
  // Predicated region
  $region70: #{mt_rnn_slowfast_forward.1} parent=0 // pred_check
    _
  $region71: #{mt_rnn_slowfast_forward.1} parent=0 // pred_check_branch
    %62 = sbr.rel (0) target = $region73
  $region72: #{mt_rnn_slowfast_forward.1} parent=0 // pred_region
    _
  $region73: #{mt_rnn_slowfast_forward.1} parent=0 // pred_fallthru
    _
  // Predicated region
  $region74: #{mt_rnn_slowfast_forward.1} parent=0 // pred_check
    _
  $region75: #{mt_rnn_slowfast_forward.1} parent=0 // pred_check_branch
    %64 = sbr.rel (0) target = $region77
  $region76: #{mt_rnn_slowfast_forward.1} parent=0 // pred_region
    _
  $region77: #{mt_rnn_slowfast_forward.1} parent=0 // pred_fallthru
    _
  // Predicated region
  $region78: #{mt_rnn_slowfast_forward.1} parent=0 // pred_check
    _
  $region79: #{mt_rnn_slowfast_forward.1} parent=0 // pred_check_branch
    %66 = sbr.rel (0) target = $region81
  $region80: #{mt_rnn_slowfast_forward.1} parent=0 // pred_region
    _
  $region81: #{mt_rnn_slowfast_forward.1} parent=0 // pred_fallthru
    _
  // Predicated region
  $region82: #{mt_rnn_slowfast_forward.1} parent=0 // pred_check
    _
  $region83: #{mt_rnn_slowfast_forward.1} parent=0 // pred_check_branch
    %68 = sbr.rel (0) target = $region85
  $region84: #{mt_rnn_slowfast_forward.1} parent=0 // pred_region
    _
  $region85: #{mt_rnn_slowfast_forward.1} parent=0 // pred_fallthru
    _
  // Predicated region
  $region86: #{mt_rnn_slowfast_forward.1} parent=0 // pred_check
    _
  $region87: #{mt_rnn_slowfast_forward.1} parent=0 // pred_check_branch
    %70 = sbr.rel (0) target = $region89
  $region88: #{mt_rnn_slowfast_forward.1} parent=0 // pred_region
    _
  $region89: #{mt_rnn_slowfast_forward.1} parent=0 // pred_fallthru
    _
  %v72 = vld [vmem:[%s0] sm:$0xff]
  %v73 = vld [vmem:[%s1] sm:$0xff]
  %vm74 = vcmp.gt.s32.totalorder %v72, 0
  %vm75 = vcmp.gt.s32.totalorder %v72, 1
  %vm76 = vcmp.gt.s32.totalorder %v72, 2
  %vm77 = vcmp.gt.s32.totalorder %v72, 3
  %vm78 = vcmp.gt.s32.totalorder %v72, 4
  %vm79 = vcmp.gt.s32.totalorder %v72, 5
  %vm80 = vcmp.gt.s32.totalorder %v72, 6
  %vm81 = vcmp.gt.s32.totalorder %v72, 7
  %vm82 = vcmp.gt.s32.totalorder %v73, 0
  %vm83 = vcmp.gt.s32.totalorder %v73, 1
  %vm84 = vcmp.gt.s32.totalorder %v73, 2
  %vm85 = vcmp.gt.s32.totalorder %v73, 3
  %v86 = vld [vmem:[%s2] sm:$0xf]
  %v87 = vld [vmem:[%s2 + $0x4] sm:$0xf]
  %v88 = vld [vmem:[%s2 + $0x8] sm:$0xf]
  %v89 = vld [vmem:[%s2 + $0xc] sm:$0xf]
  %v90 = vld [vmem:[%s2 + $0x10] sm:$0xf]
  %v91 = vld [vmem:[%s2 + $0x14] sm:$0xf]
  %v92 = vld [vmem:[%s2 + $0x18] sm:$0xf]
  %v93 = vld [vmem:[%s2 + $0x1c] sm:$0xf]
  %v94 = vld [vmem:[%s3] sm:$0xf]
  %v95 = vld [vmem:[%s3 + $0x4] sm:$0xf]
  %v96 = vld [vmem:[%s3 + $0x8] sm:$0xf]
  %v97 = vld [vmem:[%s3 + $0xc] sm:$0xf]
  %v98 = vld [vmem:[%s4] sm:$0xf]
  %v99 = vld [vmem:[%s4 + $0x4] sm:$0xf]
  %v100 = vld [vmem:[%s6] sm:$0x1]
  %v102 = vlaneseq
  %v103 = vshrl.u32 %v102, 7
  %v104 = vsub.s32 0, %v103
  %v105 = vrot.slane %v100, %v104
  %v115 = vunpack.c.l.b16 %v86
  %v116 = vunpack.c.l.b16 %v87
  %v117 = vunpack.c.l.b16 %v88
  %v118 = vunpack.c.l.b16 %v89
  %v119 = vunpack.c.l.b16 %v90
  %v120 = vunpack.c.l.b16 %v91
  %v121 = vunpack.c.l.b16 %v92
  %v122 = vunpack.c.l.b16 %v93
  %v123 = vpack.c.b16 %v116, %v115
  %v124 = vpack.c.b16 %v118, %v117
  %v125 = vpack.c.b16 %v120, %v119
  %v126 = vpack.c.b16 %v122, %v121
  %v129 = vunpack.c.l.b16 %v98
  %v130 = vunpack.c.l.b16 %v99
  %v131 = vpack.c.b16 %v130, %v129
  %vm133 = vcmask 130048
  %v135 = vsel %vm133, %v123, 0
  %v138 = vsel %vm133, %v124, 0
  %v141 = vsel %vm133, %v125, 0
  %v144 = vsel %vm133, %v126, 0
  %146 = vmatprep.subr.bf16.mxu0 0
  %147 = vmatpush1.bf16.msra.mxu0 %v131
  %148 = vmatprep.subr.bf16.mxu0 0
  %149 = vmatpush1.bf16.msra.mxu0 0
  %150 = vmatprep.subr.bf16.mxu0 0
  %151 = vmatpush1.bf16.msra.mxu0 0
  %152 = vmatprep.subr.bf16.mxu0 0
  %153 = vmatpush1.bf16.msra.mxu0 0
  %154 = vmatprep.subr.bf16.mxu0 0
  %155 = vmatpush1.bf16.msra.mxu0 0
  %156 = vmatprep.subr.bf16.mxu0 0
  %157 = vmatpush1.bf16.msra.mxu0 0
  %158 = vmatprep.subr.bf16.mxu0 0
  %159 = vmatpush1.bf16.msra.mxu0 0
  %160 = vmatprep.subr.bf16.mxu0 0
  %161 = vmatpush1.bf16.msra.mxu0 0
  %162 = vmatprep.subr.bf16.mxu0 0
  %163 = vmatpush1.bf16.msra.mxu0 0
  %164 = vmatprep.subr.bf16.mxu0 0
  %165 = vmatpush1.bf16.msra.mxu0 0
  %166 = vmatprep.subr.bf16.mxu0 0
  %167 = vmatpush1.bf16.msra.mxu0 0
  %168 = vmatprep.subr.bf16.mxu0 0
  %169 = vmatpush1.bf16.msra.mxu0 0
  %170 = vmatprep.subr.bf16.mxu0 0
  %171 = vmatpush1.bf16.msra.mxu0 0
  %172 = vmatprep.subr.bf16.mxu0 0
  %173 = vmatpush1.bf16.msra.mxu0 0
  %174 = vmatprep.subr.bf16.mxu0 0
  %175 = vmatpush1.bf16.msra.mxu0 0
  %176 = vmatprep.subr.bf16.mxu0 0
  %177 = vmatpush1.bf16.msra.mxu0 0
  %178 = vmatprep.mubr.bf16.mxu0 0
  %179 = vmatmul.mubr.bf16.gmra.mrb[0].mxu0 %v135
  %v180 = vpop.f32.mrb[0].mxu0
  %v181 = vadd.f32 %v105, %v180
  %v182 = vpop.f32.mrb[0].mxu0
  %v183 = vpop.f32.mrb[0].mxu0
  %v184 = vadd.f32 %v105, %v183
  %v185 = vpop.f32.mrb[0].mxu0
  %186 = vmatprep.mubr.bf16.mxu0 0
  %187 = vmatmul.mubr.bf16.gmra.mrb[0].mxu0 %v138
  %v188 = vpop.f32.mrb[0].mxu0
  %v189 = vadd.f32 %v105, %v188
  %v190 = vpop.f32.mrb[0].mxu0
  %v191 = vpop.f32.mrb[0].mxu0
  %v192 = vadd.f32 %v105, %v191
  %v193 = vpop.f32.mrb[0].mxu0
  %194 = vmatprep.mubr.bf16.mxu0 0
  %195 = vmatmul.mubr.bf16.gmra.mrb[0].mxu0 %v141
  %v196 = vpop.f32.mrb[0].mxu0
  %v197 = vadd.f32 %v105, %v196
  %v198 = vpop.f32.mrb[0].mxu0
  %v199 = vpop.f32.mrb[0].mxu0
  %v200 = vadd.f32 %v105, %v199
  %v201 = vpop.f32.mrb[0].mxu0
  %202 = vmatprep.mubr.bf16.mxu0 0
  %203 = vmatmul.mubr.bf16.gmra.mrb[0].mxu0 %v144
  %v204 = vpop.f32.mrb[0].mxu0
  %v205 = vadd.f32 %v105, %v204
  %v206 = vpop.f32.mrb[0].mxu0
  %v207 = vpop.f32.mrb[0].mxu0
  %v208 = vadd.f32 %v105, %v207
  %v209 = vpop.f32.mrb[0].mxu0
  %210 = vdwg.mxu0
  %v211 = vld [vmem:[%s12] sm:$0xf]
  %v212 = vld [vmem:[%s12 + $0x4] sm:$0xf]
  %v213 = vld [vmem:[%s14] sm:$0x1]
  %v215 = vlaneseq
  %v216 = vshrl.u32 %v215, 7
  %v217 = vsub.s32 0, %v216
  %v218 = vrot.slane %v213, %v217
  %v224 = vunpack.c.l.b16 %v94
  %v225 = vunpack.c.l.b16 %v95
  %v226 = vunpack.c.l.b16 %v96
  %v227 = vunpack.c.l.b16 %v97
  %v228 = vpack.c.b16 %v225, %v224
  %v229 = vpack.c.b16 %v227, %v226
  %v232 = vunpack.c.l.b16 %v211
  %v233 = vunpack.c.l.b16 %v212
  %v234 = vpack.c.b16 %v233, %v232
  %v237 = vsel %vm133, %v228, 0
  %v240 = vsel %vm133, %v229, 0
  %242 = vmatprep.subr.bf16.mxu0 0
  %243 = vmatpush1.bf16.msra.mxu0 %v234
  %244 = vmatprep.subr.bf16.mxu0 0
  %245 = vmatpush1.bf16.msra.mxu0 0
  %246 = vmatprep.subr.bf16.mxu0 0
  %247 = vmatpush1.bf16.msra.mxu0 0
  %248 = vmatprep.subr.bf16.mxu0 0
  %249 = vmatpush1.bf16.msra.mxu0 0
  %250 = vmatprep.subr.bf16.mxu0 0
  %251 = vmatpush1.bf16.msra.mxu0 0
  %252 = vmatprep.subr.bf16.mxu0 0
  %253 = vmatpush1.bf16.msra.mxu0 0
  %254 = vmatprep.subr.bf16.mxu0 0
  %255 = vmatpush1.bf16.msra.mxu0 0
  %256 = vmatprep.subr.bf16.mxu0 0
  %257 = vmatpush1.bf16.msra.mxu0 0
  %258 = vmatprep.subr.bf16.mxu0 0
  %259 = vmatpush1.bf16.msra.mxu0 0
  %260 = vmatprep.subr.bf16.mxu0 0
  %261 = vmatpush1.bf16.msra.mxu0 0
  %262 = vmatprep.subr.bf16.mxu0 0
  %263 = vmatpush1.bf16.msra.mxu0 0
  %264 = vmatprep.subr.bf16.mxu0 0
  %265 = vmatpush1.bf16.msra.mxu0 0
  %266 = vmatprep.subr.bf16.mxu0 0
  %267 = vmatpush1.bf16.msra.mxu0 0
  %268 = vmatprep.subr.bf16.mxu0 0
  %269 = vmatpush1.bf16.msra.mxu0 0
  %270 = vmatprep.subr.bf16.mxu0 0
  %271 = vmatpush1.bf16.msra.mxu0 0
  %272 = vmatprep.subr.bf16.mxu0 0
  %273 = vmatpush1.bf16.msra.mxu0 0
  %274 = vmatprep.mubr.bf16.mxu0 0
  %275 = vmatmul.mubr.bf16.gmra.mrb[0].mxu0 %v237
  %v276 = vpop.f32.mrb[0].mxu0
  %v277 = vadd.f32 %v218, %v276
  %v278 = vpop.f32.mrb[0].mxu0
  %v279 = vpop.f32.mrb[0].mxu0
  %v280 = vadd.f32 %v218, %v279
  %v281 = vpop.f32.mrb[0].mxu0
  %282 = vmatprep.mubr.bf16.mxu0 0
  %283 = vmatmul.mubr.bf16.gmra.mrb[0].mxu0 %v240
  %v284 = vpop.f32.mrb[0].mxu0
  %v285 = vadd.f32 %v218, %v284
  %v286 = vpop.f32.mrb[0].mxu0
  %v287 = vpop.f32.mrb[0].mxu0
  %v288 = vadd.f32 %v218, %v287
  %v289 = vpop.f32.mrb[0].mxu0
  %290 = vdwg.mxu0
  %v291 = vld [vmem:[%s5] sm:$0xf]
  %v292 = vld [vmem:[%s5 + $0x4] sm:$0xf]
  %v293 = vld [vmem:[%s5 + $0x8] sm:$0xf]
  %v294 = vld [vmem:[%s5 + $0xc] sm:$0xf]
  %v295 = vld [vmem:[%s13] sm:$0xf]
  %v296 = vld [vmem:[%s13 + $0x4] sm:$0xf]
  %v297 = vld [vmem:[%s13 + $0x8] sm:$0xf]
  %v298 = vld [vmem:[%s13 + $0xc] sm:$0xf]
  %v299 = vld [vmem:[%s7] sm:$0x1]
  %v301 = vlaneseq
  %v302 = vshrl.u32 %v301, 7
  %v303 = vsub.s32 0, %v302
  %v304 = vrot.slane %v299, %v303
  %v306 = vadd.f32 %v304, 0.0
  %v307 = vld [vmem:[%s15] sm:$0x1]
  %v309 = vlaneseq
  %v310 = vshrl.u32 %v309, 7
  %v311 = vsub.s32 0, %v310
  %v312 = vrot.slane %v307, %v311
  %v314 = vadd.f32 %v312, 0.0
  %v319 = vunpack.c.l.b16 %v295
  %v320 = vunpack.c.l.b16 %v296
  %v321 = vunpack.c.l.b16 %v297
  %v322 = vunpack.c.l.b16 %v298
  %v323 = vpack.c.b16 %v320, %v319
  %v324 = vpack.c.b16 %v322, %v321
  %vm327 = vcmask 261120
  %v329 = vsel %vm327, 0, 0
  %331 = vmatprep.subr.bf16.mxu0 0
  %332 = vmatpush1.bf16.msra.mxu0 %v323
  %333 = vmatprep.subr.bf16.mxu0 0
  %334 = vmatpush1.bf16.msra.mxu0 %v324
  %335 = vmatprep.subr.bf16.mxu0 0
  %336 = vmatpush1.bf16.msra.mxu0 0
  %337 = vmatprep.subr.bf16.mxu0 0
  %338 = vmatpush1.bf16.msra.mxu0 0
  %339 = vmatprep.subr.bf16.mxu0 0
  %340 = vmatpush1.bf16.msra.mxu0 0
  %341 = vmatprep.subr.bf16.mxu0 0
  %342 = vmatpush1.bf16.msra.mxu0 0
  %343 = vmatprep.subr.bf16.mxu0 0
  %344 = vmatpush1.bf16.msra.mxu0 0
  %345 = vmatprep.subr.bf16.mxu0 0
  %346 = vmatpush1.bf16.msra.mxu0 0
  %347 = vmatprep.subr.bf16.mxu0 0
  %348 = vmatpush1.bf16.msra.mxu0 0
  %349 = vmatprep.subr.bf16.mxu0 0
  %350 = vmatpush1.bf16.msra.mxu0 0
  %351 = vmatprep.subr.bf16.mxu0 0
  %352 = vmatpush1.bf16.msra.mxu0 0
  %353 = vmatprep.subr.bf16.mxu0 0
  %354 = vmatpush1.bf16.msra.mxu0 0
  %355 = vmatprep.subr.bf16.mxu0 0
  %356 = vmatpush1.bf16.msra.mxu0 0
  %357 = vmatprep.subr.bf16.mxu0 0
  %358 = vmatpush1.bf16.msra.mxu0 0
  %359 = vmatprep.subr.bf16.mxu0 0
  %360 = vmatpush1.bf16.msra.mxu0 0
  %361 = vmatprep.subr.bf16.mxu0 0
  %362 = vmatpush1.bf16.msra.mxu0 0
  %363 = vmatprep.mubr.bf16.mxu0 0
  %364 = vmatmul.mubr.bf16.gmra.mrb[0].mxu0 %v329
  %v365 = vpop.f32.mrb[0].mxu0
  %v366 = vadd.f32 0.0, %v365
  %v367 = vpop.f32.mrb[0].mxu0
  %v368 = vpop.f32.mrb[0].mxu0
  %v369 = vpop.f32.mrb[0].mxu0
  %370 = vdwg.mxu0
  %v371 = vadd.f32 %v277, %v366
  %v372 = vxor.u32 %v371, 2147483648
  %v373 = vmul.f32 %v372, 1.442695
  %v374 = vpow.pop %v373
  %v375 = vadd.f32 %v374, 1.0
  %v376 = vrcp.pop %v375
  %v377 = vmul.f32 1.0, %v376
  %379 = vrot.lane.b32.xlu0 %v314, 64
  %v380 = vpop.permute.xlu0 %379
  %v382 = vadd.f32 %v366, %v380
  %384 = vrot.lane.b32.xlu0 %v382, 64
  %v385 = vpop.permute.xlu0 %384
  %v387 = vmul.f32 %v377, %v385
  %389 = vrot.lane.b32.xlu0 %v387, 64
  %v390 = vpop.permute.xlu0 %389
  %v392 = vadd.f32 %v277, %v390
  %v393 = vtanh.pop %v392
  %v394 = vsub.f32 1.0, %v377
  %396 = vrot.lane.b32.xlu0 %v393, 96
  %v397 = vpop.permute.xlu0 %396
  %v399 = vmul.f32 %v394, %v397
  %v400 = vmul.f32 %v377, 0.0
  %v401 = vadd.f32 %v399, %v400
  %v402 = vsel %vm82, 1, 0
  %403 = vset.pattern.permute.xlu0 0
  %404 = vperm.xlu0 %403, %v402
  %v405 = vpop.permute.xlu0 %404
  %vm406 = vcmp.eq.s32.totalorder %v405, 1
  %v407 = vsel %vm406, %v401, 0.0
  %409 = vrot.lane.b32.xlu0 %v407, 96
  %v410 = vpop.permute.xlu0 %409
  %412 = vst.msk [vmem:[#allocation3] sm:$0xff] %vm327, %v410
  %v417 = vunpack.c.l.b16 %v291
  %v418 = vunpack.c.l.b16 %v292
  %v419 = vunpack.c.l.b16 %v293
  %v420 = vunpack.c.l.b16 %v294
  %v421 = vpack.c.b16 %v418, %v417
  %v422 = vpack.c.b16 %v420, %v419
  %425 = vmatprep.subr.bf16.mxu0 0
  %426 = vmatpush1.bf16.msra.mxu0 %v421
  %427 = vmatprep.subr.bf16.mxu0 0
  %428 = vmatpush1.bf16.msra.mxu0 %v422
  %429 = vmatprep.subr.bf16.mxu0 0
  %430 = vmatpush1.bf16.msra.mxu0 0
  %431 = vmatprep.subr.bf16.mxu0 0
  %432 = vmatpush1.bf16.msra.mxu0 0
  %433 = vmatprep.subr.bf16.mxu0 0
  %434 = vmatpush1.bf16.msra.mxu0 0
  %435 = vmatprep.subr.bf16.mxu0 0
  %436 = vmatpush1.bf16.msra.mxu0 0
  %437 = vmatprep.subr.bf16.mxu0 0
  %438 = vmatpush1.bf16.msra.mxu0 0
  %439 = vmatprep.subr.bf16.mxu0 0
  %440 = vmatpush1.bf16.msra.mxu0 0
  %441 = vmatprep.subr.bf16.mxu0 0
  %442 = vmatpush1.bf16.msra.mxu0 0
  %443 = vmatprep.subr.bf16.mxu0 0
  %444 = vmatpush1.bf16.msra.mxu0 0
  %445 = vmatprep.subr.bf16.mxu0 0
  %446 = vmatpush1.bf16.msra.mxu0 0
  %447 = vmatprep.subr.bf16.mxu0 0
  %448 = vmatpush1.bf16.msra.mxu0 0
  %449 = vmatprep.subr.bf16.mxu0 0
  %450 = vmatpush1.bf16.msra.mxu0 0
  %451 = vmatprep.subr.bf16.mxu0 0
  %452 = vmatpush1.bf16.msra.mxu0 0
  %453 = vmatprep.subr.bf16.mxu0 0
  %454 = vmatpush1.bf16.msra.mxu0 0
  %455 = vmatprep.subr.bf16.mxu0 0
  %456 = vmatpush1.bf16.msra.mxu0 0
  %457 = vmatprep.mubr.bf16.mxu0 0
  %458 = vmatmul.mubr.bf16.gmra.mrb[0].mxu0 %v329
  %v459 = vpop.f32.mrb[0].mxu0
  %v460 = vadd.f32 0.0, %v459
  %v461 = vpop.f32.mrb[0].mxu0
  %v462 = vpop.f32.mrb[0].mxu0
  %v463 = vpop.f32.mrb[0].mxu0
  %464 = vdwg.mxu0
  %v465 = vadd.f32 %v181, %v460
  %v466 = vxor.u32 %v465, 2147483648
  %v467 = vmul.f32 %v466, 1.442695
  %v468 = vpow.pop %v467
  %v469 = vadd.f32 %v468, 1.0
  %v470 = vrcp.pop %v469
  %v471 = vmul.f32 1.0, %v470
  %473 = vrot.lane.b32.xlu0 %v306, 64
  %v474 = vpop.permute.xlu0 %473
  %v476 = vadd.f32 %v460, %v474
  %478 = vrot.lane.b32.xlu0 %v476, 64
  %v479 = vpop.permute.xlu0 %478
  %v481 = vmul.f32 %v471, %v479
  %483 = vrot.lane.b32.xlu0 %v481, 64
  %v484 = vpop.permute.xlu0 %483
  %v486 = vadd.f32 %v181, %v484
  %v487 = vtanh.pop %v486
  %v488 = vsub.f32 1.0, %v471
  %490 = vrot.lane.b32.xlu0 %v487, 96
  %v491 = vpop.permute.xlu0 %490
  %v493 = vmul.f32 %v488, %v491
  %v494 = vmul.f32 %v471, 0.0
  %v495 = vadd.f32 %v493, %v494
  %v496 = vsel %vm74, 1, 0
  %497 = vset.pattern.permute.xlu0 0
  %498 = vperm.xlu0 %497, %v496
  %v499 = vpop.permute.xlu0 %498
  %vm500 = vcmp.eq.s32.totalorder %v499, 1
  %v501 = vsel %vm500, %v495, 0.0
  %503 = vrot.lane.b32.xlu0 %v501, 96
  %v504 = vpop.permute.xlu0 %503
  %506 = vst.msk [vmem:[#allocation2] sm:$0xff] %vm327, %v504
  %v507 = vpack.c.bf16 %v407, %v407
  %509 = vrot.lane.b32.xlu0 %v507, 96
  %v510 = vpop.permute.xlu0 %509
  %v512 = vsel %vm327, %v510, 0
  %514 = vmatprep.subr.bf16.mxu0 0
  %515 = vmatpush1.bf16.msra.mxu0 %v323
  %516 = vmatprep.subr.bf16.mxu0 0
  %517 = vmatpush1.bf16.msra.mxu0 %v324
  %518 = vmatprep.subr.bf16.mxu0 0
  %519 = vmatpush1.bf16.msra.mxu0 0
  %520 = vmatprep.subr.bf16.mxu0 0
  %521 = vmatpush1.bf16.msra.mxu0 0
  %522 = vmatprep.subr.bf16.mxu0 0
  %523 = vmatpush1.bf16.msra.mxu0 0
  %524 = vmatprep.subr.bf16.mxu0 0
  %525 = vmatpush1.bf16.msra.mxu0 0
  %526 = vmatprep.subr.bf16.mxu0 0
  %527 = vmatpush1.bf16.msra.mxu0 0
  %528 = vmatprep.subr.bf16.mxu0 0
  %529 = vmatpush1.bf16.msra.mxu0 0
  %530 = vmatprep.subr.bf16.mxu0 0
  %531 = vmatpush1.bf16.msra.mxu0 0
  %532 = vmatprep.subr.bf16.mxu0 0
  %533 = vmatpush1.bf16.msra.mxu0 0
  %534 = vmatprep.subr.bf16.mxu0 0
  %535 = vmatpush1.bf16.msra.mxu0 0
  %536 = vmatprep.subr.bf16.mxu0 0
  %537 = vmatpush1.bf16.msra.mxu0 0
  %538 = vmatprep.subr.bf16.mxu0 0
  %539 = vmatpush1.bf16.msra.mxu0 0
  %540 = vmatprep.subr.bf16.mxu0 0
  %541 = vmatpush1.bf16.msra.mxu0 0
  %542 = vmatprep.subr.bf16.mxu0 0
  %543 = vmatpush1.bf16.msra.mxu0 0
  %544 = vmatprep.subr.bf16.mxu0 0
  %545 = vmatpush1.bf16.msra.mxu0 0
  %546 = vmatprep.mubr.bf16.mxu0 0
  %547 = vmatmul.mubr.bf16.gmra.mrb[0].mxu0 %v512
  %v548 = vpop.f32.mrb[0].mxu0
  %v549 = vadd.f32 0.0, %v548
  %v550 = vpop.f32.mrb[0].mxu0
  %v551 = vpop.f32.mrb[0].mxu0
  %v552 = vpop.f32.mrb[0].mxu0
  %553 = vdwg.mxu0
  %v554 = vadd.f32 %v280, %v549
  %v555 = vxor.u32 %v554, 2147483648
  %v556 = vmul.f32 %v555, 1.442695
  %v557 = vpow.pop %v556
  %v558 = vadd.f32 %v557, 1.0
  %v559 = vrcp.pop %v558
  %v560 = vmul.f32 1.0, %v559
  %v561 = vadd.f32 %v549, %v380
  %563 = vrot.lane.b32.xlu0 %v561, 64
  %v564 = vpop.permute.xlu0 %563
  %v566 = vmul.f32 %v560, %v564
  %568 = vrot.lane.b32.xlu0 %v566, 64
  %v569 = vpop.permute.xlu0 %568
  %v571 = vadd.f32 %v280, %v569
  %v572 = vtanh.pop %v571
  %v573 = vsub.f32 1.0, %v560
  %575 = vrot.lane.b32.xlu0 %v572, 96
  %v576 = vpop.permute.xlu0 %575
  %v578 = vmul.f32 %v573, %v576
  %v579 = vmul.f32 %v560, %v407
  %v580 = vadd.f32 %v578, %v579
  %v581 = vsel %vm83, 1, 0
  %582 = vset.pattern.permute.xlu0 0
  %583 = vperm.xlu0 %582, %v581
  %v584 = vpop.permute.xlu0 %583
  %vm585 = vcmp.eq.s32.totalorder %v584, 1
  %v586 = vsel %vm585, %v580, 0.0
  %v587 = vsel %vm585, %v580, %v407
  %589 = vrot.lane.b32.xlu0 %v586, 96
  %v590 = vpop.permute.xlu0 %589
  %592 = vst.msk [vmem:[#allocation3 + $0x8] sm:$0xff] %vm327, %v590
  %v593 = vpack.c.bf16 %v501, %v501
  %595 = vrot.lane.b32.xlu0 %v593, 96
  %v596 = vpop.permute.xlu0 %595
  %v598 = vsel %vm327, %v596, 0
  %600 = vmatprep.subr.bf16.mxu0 0
  %601 = vmatpush1.bf16.msra.mxu0 %v421
  %602 = vmatprep.subr.bf16.mxu0 0
  %603 = vmatpush1.bf16.msra.mxu0 %v422
  %604 = vmatprep.subr.bf16.mxu0 0
  %605 = vmatpush1.bf16.msra.mxu0 0
  %606 = vmatprep.subr.bf16.mxu0 0
  %607 = vmatpush1.bf16.msra.mxu0 0
  %608 = vmatprep.subr.bf16.mxu0 0
  %609 = vmatpush1.bf16.msra.mxu0 0
  %610 = vmatprep.subr.bf16.mxu0 0
  %611 = vmatpush1.bf16.msra.mxu0 0
  %612 = vmatprep.subr.bf16.mxu0 0
  %613 = vmatpush1.bf16.msra.mxu0 0
  %614 = vmatprep.subr.bf16.mxu0 0
  %615 = vmatpush1.bf16.msra.mxu0 0
  %616 = vmatprep.subr.bf16.mxu0 0
  %617 = vmatpush1.bf16.msra.mxu0 0
  %618 = vmatprep.subr.bf16.mxu0 0
  %619 = vmatpush1.bf16.msra.mxu0 0
  %620 = vmatprep.subr.bf16.mxu0 0
  %621 = vmatpush1.bf16.msra.mxu0 0
  %622 = vmatprep.subr.bf16.mxu0 0
  %623 = vmatpush1.bf16.msra.mxu0 0
  %624 = vmatprep.subr.bf16.mxu0 0
  %625 = vmatpush1.bf16.msra.mxu0 0
  %626 = vmatprep.subr.bf16.mxu0 0
  %627 = vmatpush1.bf16.msra.mxu0 0
  %628 = vmatprep.subr.bf16.mxu0 0
  %629 = vmatpush1.bf16.msra.mxu0 0
  %630 = vmatprep.subr.bf16.mxu0 0
  %631 = vmatpush1.bf16.msra.mxu0 0
  %632 = vmatprep.mubr.bf16.mxu0 0
  %633 = vmatmul.mubr.bf16.gmra.mrb[0].mxu0 %v598
  %v634 = vpop.f32.mrb[0].mxu0
  %v635 = vadd.f32 0.0, %v634
  %v636 = vpop.f32.mrb[0].mxu0
  %v637 = vpop.f32.mrb[0].mxu0
  %v638 = vpop.f32.mrb[0].mxu0
  %639 = vdwg.mxu0
  %v640 = vadd.f32 %v184, %v635
  %v641 = vxor.u32 %v640, 2147483648
  %v642 = vmul.f32 %v641, 1.442695
  %v643 = vpow.pop %v642
  %v644 = vadd.f32 %v643, 1.0
  %v645 = vrcp.pop %v644
  %v646 = vmul.f32 1.0, %v645
  %v647 = vadd.f32 %v635, %v474
  %649 = vrot.lane.b32.xlu0 %v647, 64
  %v650 = vpop.permute.xlu0 %649
  %v652 = vmul.f32 %v646, %v650
  %654 = vrot.lane.b32.xlu0 %v652, 64
  %v655 = vpop.permute.xlu0 %654
  %v657 = vadd.f32 %v184, %v655
  %v658 = vtanh.pop %v657
  %v659 = vsub.f32 1.0, %v646
  %661 = vrot.lane.b32.xlu0 %v658, 96
  %v662 = vpop.permute.xlu0 %661
  %v664 = vmul.f32 %v659, %v662
  %v665 = vmul.f32 %v646, %v501
  %v666 = vadd.f32 %v664, %v665
  %v667 = vsel %vm75, 1, 0
  %668 = vset.pattern.permute.xlu0 0
  %669 = vperm.xlu0 %668, %v667
  %v670 = vpop.permute.xlu0 %669
  %vm671 = vcmp.eq.s32.totalorder %v670, 1
  %v672 = vsel %vm671, %v666, 0.0
  %674 = vrot.lane.b32.xlu0 %v672, 96
  %v675 = vpop.permute.xlu0 %674
  %677 = vst.msk [vmem:[#allocation2 + $0x8] sm:$0xff] %vm327, %v675
  %v678 = vsel %vm671, %v666, %v501
  %v679 = vpack.c.bf16 %v587, %v587
  %681 = vrot.lane.b32.xlu0 %v679, 96
  %v682 = vpop.permute.xlu0 %681
  %v684 = vsel %vm327, %v682, 0
  %686 = vmatprep.subr.bf16.mxu0 0
  %687 = vmatpush1.bf16.msra.mxu0 %v323
  %688 = vmatprep.subr.bf16.mxu0 0
  %689 = vmatpush1.bf16.msra.mxu0 %v324
  %690 = vmatprep.subr.bf16.mxu0 0
  %691 = vmatpush1.bf16.msra.mxu0 0
  %692 = vmatprep.subr.bf16.mxu0 0
  %693 = vmatpush1.bf16.msra.mxu0 0
  %694 = vmatprep.subr.bf16.mxu0 0
  %695 = vmatpush1.bf16.msra.mxu0 0
  %696 = vmatprep.subr.bf16.mxu0 0
  %697 = vmatpush1.bf16.msra.mxu0 0
  %698 = vmatprep.subr.bf16.mxu0 0
  %699 = vmatpush1.bf16.msra.mxu0 0
  %700 = vmatprep.subr.bf16.mxu0 0
  %701 = vmatpush1.bf16.msra.mxu0 0
  %702 = vmatprep.subr.bf16.mxu0 0
  %703 = vmatpush1.bf16.msra.mxu0 0
  %704 = vmatprep.subr.bf16.mxu0 0
  %705 = vmatpush1.bf16.msra.mxu0 0
  %706 = vmatprep.subr.bf16.mxu0 0
  %707 = vmatpush1.bf16.msra.mxu0 0
  %708 = vmatprep.subr.bf16.mxu0 0
  %709 = vmatpush1.bf16.msra.mxu0 0
  %710 = vmatprep.subr.bf16.mxu0 0
  %711 = vmatpush1.bf16.msra.mxu0 0
  %712 = vmatprep.subr.bf16.mxu0 0
  %713 = vmatpush1.bf16.msra.mxu0 0
  %714 = vmatprep.subr.bf16.mxu0 0
  %715 = vmatpush1.bf16.msra.mxu0 0
  %716 = vmatprep.subr.bf16.mxu0 0
  %717 = vmatpush1.bf16.msra.mxu0 0
  %718 = vmatprep.mubr.bf16.mxu0 0
  %719 = vmatmul.mubr.bf16.gmra.mrb[0].mxu0 %v684
  %v720 = vpop.f32.mrb[0].mxu0
  %v721 = vadd.f32 0.0, %v720
  %v722 = vpop.f32.mrb[0].mxu0
  %v723 = vpop.f32.mrb[0].mxu0
  %v724 = vpop.f32.mrb[0].mxu0
  %725 = vdwg.mxu0
  %v726 = vadd.f32 %v285, %v721
  %v727 = vxor.u32 %v726, 2147483648
  %v728 = vmul.f32 %v727, 1.442695
  %v729 = vpow.pop %v728
  %v730 = vadd.f32 %v729, 1.0
  %v731 = vrcp.pop %v730
  %v732 = vmul.f32 1.0, %v731
  %v733 = vadd.f32 %v721, %v380
  %735 = vrot.lane.b32.xlu0 %v733, 64
  %v736 = vpop.permute.xlu0 %735
  %v738 = vmul.f32 %v732, %v736
  %740 = vrot.lane.b32.xlu0 %v738, 64
  %v741 = vpop.permute.xlu0 %740
  %v743 = vadd.f32 %v285, %v741
  %v744 = vtanh.pop %v743
  %v745 = vsub.f32 1.0, %v732
  %747 = vrot.lane.b32.xlu0 %v744, 96
  %v748 = vpop.permute.xlu0 %747
  %v750 = vmul.f32 %v745, %v748
  %v751 = vmul.f32 %v732, %v587
  %v752 = vadd.f32 %v750, %v751
  %v753 = vsel %vm84, 1, 0
  %754 = vset.pattern.permute.xlu0 0
  %755 = vperm.xlu0 %754, %v753
  %v756 = vpop.permute.xlu0 %755
  %vm757 = vcmp.eq.s32.totalorder %v756, 1
  %v758 = vsel %vm757, %v752, 0.0
  %v759 = vsel %vm757, %v752, %v587
  %761 = vrot.lane.b32.xlu0 %v758, 96
  %v762 = vpop.permute.xlu0 %761
  %764 = vst.msk [vmem:[#allocation3 + $0x10] sm:$0xff] %vm327, %v762
  %v765 = vpack.c.bf16 %v678, %v678
  %767 = vrot.lane.b32.xlu0 %v765, 96
  %v768 = vpop.permute.xlu0 %767
  %v770 = vsel %vm327, %v768, 0
  %772 = vmatprep.subr.bf16.mxu0 0
  %773 = vmatpush1.bf16.msra.mxu0 %v421
  %774 = vmatprep.subr.bf16.mxu0 0
  %775 = vmatpush1.bf16.msra.mxu0 %v422
  %776 = vmatprep.subr.bf16.mxu0 0
  %777 = vmatpush1.bf16.msra.mxu0 0
  %778 = vmatprep.subr.bf16.mxu0 0
  %779 = vmatpush1.bf16.msra.mxu0 0
  %780 = vmatprep.subr.bf16.mxu0 0
  %781 = vmatpush1.bf16.msra.mxu0 0
  %782 = vmatprep.subr.bf16.mxu0 0
  %783 = vmatpush1.bf16.msra.mxu0 0
  %784 = vmatprep.subr.bf16.mxu0 0
  %785 = vmatpush1.bf16.msra.mxu0 0
  %786 = vmatprep.subr.bf16.mxu0 0
  %787 = vmatpush1.bf16.msra.mxu0 0
  %788 = vmatprep.subr.bf16.mxu0 0
  %789 = vmatpush1.bf16.msra.mxu0 0
  %790 = vmatprep.subr.bf16.mxu0 0
  %791 = vmatpush1.bf16.msra.mxu0 0
  %792 = vmatprep.subr.bf16.mxu0 0
  %793 = vmatpush1.bf16.msra.mxu0 0
  %794 = vmatprep.subr.bf16.mxu0 0
  %795 = vmatpush1.bf16.msra.mxu0 0
  %796 = vmatprep.subr.bf16.mxu0 0
  %797 = vmatpush1.bf16.msra.mxu0 0
  %798 = vmatprep.subr.bf16.mxu0 0
  %799 = vmatpush1.bf16.msra.mxu0 0
  %800 = vmatprep.subr.bf16.mxu0 0
  %801 = vmatpush1.bf16.msra.mxu0 0
  %802 = vmatprep.subr.bf16.mxu0 0
  %803 = vmatpush1.bf16.msra.mxu0 0
  %804 = vmatprep.mubr.bf16.mxu0 0
  %805 = vmatmul.mubr.bf16.gmra.mrb[0].mxu0 %v770
  %v806 = vpop.f32.mrb[0].mxu0
  %v807 = vadd.f32 0.0, %v806
  %v808 = vpop.f32.mrb[0].mxu0
  %v809 = vpop.f32.mrb[0].mxu0
  %v810 = vpop.f32.mrb[0].mxu0
  %811 = vdwg.mxu0
  %v812 = vadd.f32 %v189, %v807
  %v813 = vxor.u32 %v812, 2147483648
  %v814 = vmul.f32 %v813, 1.442695
  %v815 = vpow.pop %v814
  %v816 = vadd.f32 %v815, 1.0
  %v817 = vrcp.pop %v816
  %v818 = vmul.f32 1.0, %v817
  %v819 = vadd.f32 %v807, %v474
  %821 = vrot.lane.b32.xlu0 %v819, 64
  %v822 = vpop.permute.xlu0 %821
  %v824 = vmul.f32 %v818, %v822
  %826 = vrot.lane.b32.xlu0 %v824, 64
  %v827 = vpop.permute.xlu0 %826
  %v829 = vadd.f32 %v189, %v827
  %v830 = vtanh.pop %v829
  %v831 = vsub.f32 1.0, %v818
  %833 = vrot.lane.b32.xlu0 %v830, 96
  %v834 = vpop.permute.xlu0 %833
  %v836 = vmul.f32 %v831, %v834
  %v837 = vmul.f32 %v818, %v678
  %v838 = vadd.f32 %v836, %v837
  %v839 = vsel %vm76, 1, 0
  %840 = vset.pattern.permute.xlu0 0
  %841 = vperm.xlu0 %840, %v839
  %v842 = vpop.permute.xlu0 %841
  %vm843 = vcmp.eq.s32.totalorder %v842, 1
  %v844 = vsel %vm843, %v838, 0.0
  %846 = vrot.lane.b32.xlu0 %v844, 96
  %v847 = vpop.permute.xlu0 %846
  %849 = vst.msk [vmem:[#allocation2 + $0x10] sm:$0xff] %vm327, %v847
  %v850 = vsel %vm843, %v838, %v678
  %v851 = vpack.c.bf16 %v759, %v759
  %853 = vrot.lane.b32.xlu0 %v851, 96
  %v854 = vpop.permute.xlu0 %853
  %v856 = vsel %vm327, %v854, 0
  %858 = vmatprep.subr.bf16.mxu0 0
  %859 = vmatpush1.bf16.msra.mxu0 %v323
  %860 = vmatprep.subr.bf16.mxu0 0
  %861 = vmatpush1.bf16.msra.mxu0 %v324
  %862 = vmatprep.subr.bf16.mxu0 0
  %863 = vmatpush1.bf16.msra.mxu0 0
  %864 = vmatprep.subr.bf16.mxu0 0
  %865 = vmatpush1.bf16.msra.mxu0 0
  %866 = vmatprep.subr.bf16.mxu0 0
  %867 = vmatpush1.bf16.msra.mxu0 0
  %868 = vmatprep.subr.bf16.mxu0 0
  %869 = vmatpush1.bf16.msra.mxu0 0
  %870 = vmatprep.subr.bf16.mxu0 0
  %871 = vmatpush1.bf16.msra.mxu0 0
  %872 = vmatprep.subr.bf16.mxu0 0
  %873 = vmatpush1.bf16.msra.mxu0 0
  %874 = vmatprep.subr.bf16.mxu0 0
  %875 = vmatpush1.bf16.msra.mxu0 0
  %876 = vmatprep.subr.bf16.mxu0 0
  %877 = vmatpush1.bf16.msra.mxu0 0
  %878 = vmatprep.subr.bf16.mxu0 0
  %879 = vmatpush1.bf16.msra.mxu0 0
  %880 = vmatprep.subr.bf16.mxu0 0
  %881 = vmatpush1.bf16.msra.mxu0 0
  %882 = vmatprep.subr.bf16.mxu0 0
  %883 = vmatpush1.bf16.msra.mxu0 0
  %884 = vmatprep.subr.bf16.mxu0 0
  %885 = vmatpush1.bf16.msra.mxu0 0
  %886 = vmatprep.subr.bf16.mxu0 0
  %887 = vmatpush1.bf16.msra.mxu0 0
  %888 = vmatprep.subr.bf16.mxu0 0
  %889 = vmatpush1.bf16.msra.mxu0 0
  %890 = vmatprep.mubr.bf16.mxu0 0
  %891 = vmatmul.mubr.bf16.gmra.mrb[0].mxu0 %v856
  %v892 = vpop.f32.mrb[0].mxu0
  %v893 = vadd.f32 0.0, %v892
  %v894 = vpop.f32.mrb[0].mxu0
  %v895 = vpop.f32.mrb[0].mxu0
  %v896 = vpop.f32.mrb[0].mxu0
  %897 = vdwg.mxu0
  %v898 = vadd.f32 %v288, %v893
  %v899 = vxor.u32 %v898, 2147483648
  %v900 = vmul.f32 %v899, 1.442695
  %v901 = vpow.pop %v900
  %v902 = vadd.f32 %v901, 1.0
  %v903 = vrcp.pop %v902
  %v904 = vmul.f32 1.0, %v903
  %v905 = vadd.f32 %v893, %v380
  %907 = vrot.lane.b32.xlu0 %v905, 64
  %v908 = vpop.permute.xlu0 %907
  %v910 = vmul.f32 %v904, %v908
  %912 = vrot.lane.b32.xlu0 %v910, 64
  %v913 = vpop.permute.xlu0 %912
  %v915 = vadd.f32 %v288, %v913
  %v916 = vtanh.pop %v915
  %v917 = vsub.f32 1.0, %v904
  %919 = vrot.lane.b32.xlu0 %v916, 96
  %v920 = vpop.permute.xlu0 %919
  %v922 = vmul.f32 %v917, %v920
  %v923 = vmul.f32 %v904, %v759
  %v924 = vadd.f32 %v922, %v923
  %v925 = vsel %vm85, 1, 0
  %926 = vset.pattern.permute.xlu0 0
  %927 = vperm.xlu0 %926, %v925
  %v928 = vpop.permute.xlu0 %927
  %vm929 = vcmp.eq.s32.totalorder %v928, 1
  %v930 = vsel %vm929, %v924, 0.0
  %932 = vrot.lane.b32.xlu0 %v930, 96
  %v933 = vpop.permute.xlu0 %932
  %935 = vst.msk [vmem:[#allocation3 + $0x18] sm:$0xff] %vm327, %v933
  %v936 = vpack.c.bf16 %v850, %v850
  %938 = vrot.lane.b32.xlu0 %v936, 96
  %v939 = vpop.permute.xlu0 %938
  %v941 = vsel %vm327, %v939, 0
  %943 = vmatprep.subr.bf16.mxu0 0
  %944 = vmatpush1.bf16.msra.mxu0 %v421
  %945 = vmatprep.subr.bf16.mxu0 0
  %946 = vmatpush1.bf16.msra.mxu0 %v422
  %947 = vmatprep.subr.bf16.mxu0 0
  %948 = vmatpush1.bf16.msra.mxu0 0
  %949 = vmatprep.subr.bf16.mxu0 0
  %950 = vmatpush1.bf16.msra.mxu0 0
  %951 = vmatprep.subr.bf16.mxu0 0
  %952 = vmatpush1.bf16.msra.mxu0 0
  %953 = vmatprep.subr.bf16.mxu0 0
  %954 = vmatpush1.bf16.msra.mxu0 0
  %955 = vmatprep.subr.bf16.mxu0 0
  %956 = vmatpush1.bf16.msra.mxu0 0
  %957 = vmatprep.subr.bf16.mxu0 0
  %958 = vmatpush1.bf16.msra.mxu0 0
  %959 = vmatprep.subr.bf16.mxu0 0
  %960 = vmatpush1.bf16.msra.mxu0 0
  %961 = vmatprep.subr.bf16.mxu0 0
  %962 = vmatpush1.bf16.msra.mxu0 0
  %963 = vmatprep.subr.bf16.mxu0 0
  %964 = vmatpush1.bf16.msra.mxu0 0
  %965 = vmatprep.subr.bf16.mxu0 0
  %966 = vmatpush1.bf16.msra.mxu0 0
  %967 = vmatprep.subr.bf16.mxu0 0
  %968 = vmatpush1.bf16.msra.mxu0 0
  %969 = vmatprep.subr.bf16.mxu0 0
  %970 = vmatpush1.bf16.msra.mxu0 0
  %971 = vmatprep.subr.bf16.mxu0 0
  %972 = vmatpush1.bf16.msra.mxu0 0
  %973 = vmatprep.subr.bf16.mxu0 0
  %974 = vmatpush1.bf16.msra.mxu0 0
  %975 = vmatprep.mubr.bf16.mxu0 0
  %976 = vmatmul.mubr.bf16.gmra.mrb[0].mxu0 %v941
  %v977 = vpop.f32.mrb[0].mxu0
  %v978 = vadd.f32 0.0, %v977
  %v979 = vpop.f32.mrb[0].mxu0
  %v980 = vpop.f32.mrb[0].mxu0
  %v981 = vpop.f32.mrb[0].mxu0
  %982 = vdwg.mxu0
  %v983 = vadd.f32 %v192, %v978
  %v984 = vxor.u32 %v983, 2147483648
  %v985 = vmul.f32 %v984, 1.442695
  %v986 = vpow.pop %v985
  %v987 = vadd.f32 %v986, 1.0
  %v988 = vrcp.pop %v987
  %v989 = vmul.f32 1.0, %v988
  %v990 = vadd.f32 %v978, %v474
  %992 = vrot.lane.b32.xlu0 %v990, 64
  %v993 = vpop.permute.xlu0 %992
  %v995 = vmul.f32 %v989, %v993
  %997 = vrot.lane.b32.xlu0 %v995, 64
  %v998 = vpop.permute.xlu0 %997
  %v1000 = vadd.f32 %v192, %v998
  %v1001 = vtanh.pop %v1000
  %v1002 = vsub.f32 1.0, %v989
  %1004 = vrot.lane.b32.xlu0 %v1001, 96
  %v1005 = vpop.permute.xlu0 %1004
  %v1007 = vmul.f32 %v1002, %v1005
  %v1008 = vmul.f32 %v989, %v850
  %v1009 = vadd.f32 %v1007, %v1008
  %v1010 = vsel %vm77, 1, 0
  %1011 = vset.pattern.permute.xlu0 0
  %1012 = vperm.xlu0 %1011, %v1010
  %v1013 = vpop.permute.xlu0 %1012
  %vm1014 = vcmp.eq.s32.totalorder %v1013, 1
  %v1015 = vsel %vm1014, %v1009, 0.0
  %1017 = vrot.lane.b32.xlu0 %v1015, 96
  %v1018 = vpop.permute.xlu0 %1017
  %1020 = vst.msk [vmem:[#allocation2 + $0x18] sm:$0xff] %vm327, %v1018
  %v1021 = vsel %vm1014, %v1009, %v850
  %v1022 = vpack.c.bf16 %v1021, %v1021
  %1024 = vrot.lane.b32.xlu0 %v1022, 96
  %v1025 = vpop.permute.xlu0 %1024
  %v1027 = vsel %vm327, %v1025, 0
  %1029 = vmatprep.subr.bf16.mxu0 0
  %1030 = vmatpush1.bf16.msra.mxu0 %v421
  %1031 = vmatprep.subr.bf16.mxu0 0
  %1032 = vmatpush1.bf16.msra.mxu0 %v422
  %1033 = vmatprep.subr.bf16.mxu0 0
  %1034 = vmatpush1.bf16.msra.mxu0 0
  %1035 = vmatprep.subr.bf16.mxu0 0
  %1036 = vmatpush1.bf16.msra.mxu0 0
  %1037 = vmatprep.subr.bf16.mxu0 0
  %1038 = vmatpush1.bf16.msra.mxu0 0
  %1039 = vmatprep.subr.bf16.mxu0 0
  %1040 = vmatpush1.bf16.msra.mxu0 0
  %1041 = vmatprep.subr.bf16.mxu0 0
  %1042 = vmatpush1.bf16.msra.mxu0 0
  %1043 = vmatprep.subr.bf16.mxu0 0
  %1044 = vmatpush1.bf16.msra.mxu0 0
  %1045 = vmatprep.subr.bf16.mxu0 0
  %1046 = vmatpush1.bf16.msra.mxu0 0
  %1047 = vmatprep.subr.bf16.mxu0 0
  %1048 = vmatpush1.bf16.msra.mxu0 0
  %1049 = vmatprep.subr.bf16.mxu0 0
  %1050 = vmatpush1.bf16.msra.mxu0 0
  %1051 = vmatprep.subr.bf16.mxu0 0
  %1052 = vmatpush1.bf16.msra.mxu0 0
  %1053 = vmatprep.subr.bf16.mxu0 0
  %1054 = vmatpush1.bf16.msra.mxu0 0
  %1055 = vmatprep.subr.bf16.mxu0 0
  %1056 = vmatpush1.bf16.msra.mxu0 0
  %1057 = vmatprep.subr.bf16.mxu0 0
  %1058 = vmatpush1.bf16.msra.mxu0 0
  %1059 = vmatprep.subr.bf16.mxu0 0
  %1060 = vmatpush1.bf16.msra.mxu0 0
  %1061 = vmatprep.mubr.bf16.mxu0 0
  %1062 = vmatmul.mubr.bf16.gmra.mrb[0].mxu0 %v1027
  %v1063 = vpop.f32.mrb[0].mxu0
  %v1064 = vadd.f32 0.0, %v1063
  %v1065 = vpop.f32.mrb[0].mxu0
  %v1066 = vpop.f32.mrb[0].mxu0
  %v1067 = vpop.f32.mrb[0].mxu0
  %1068 = vdwg.mxu0
  %v1069 = vadd.f32 %v197, %v1064
  %v1070 = vxor.u32 %v1069, 2147483648
  %v1071 = vmul.f32 %v1070, 1.442695
  %v1072 = vpow.pop %v1071
  %v1073 = vadd.f32 %v1072, 1.0
  %v1074 = vrcp.pop %v1073
  %v1075 = vmul.f32 1.0, %v1074
  %v1076 = vadd.f32 %v1064, %v474
  %1078 = vrot.lane.b32.xlu0 %v1076, 64
  %v1079 = vpop.permute.xlu0 %1078
  %v1081 = vmul.f32 %v1075, %v1079
  %1083 = vrot.lane.b32.xlu0 %v1081, 64
  %v1084 = vpop.permute.xlu0 %1083
  %v1086 = vadd.f32 %v197, %v1084
  %v1087 = vtanh.pop %v1086
  %v1088 = vsub.f32 1.0, %v1075
  %1090 = vrot.lane.b32.xlu0 %v1087, 96
  %v1091 = vpop.permute.xlu0 %1090
  %v1093 = vmul.f32 %v1088, %v1091
  %v1094 = vmul.f32 %v1075, %v1021
  %v1095 = vadd.f32 %v1093, %v1094
  %v1096 = vsel %vm78, 1, 0
  %1097 = vset.pattern.permute.xlu0 0
  %1098 = vperm.xlu0 %1097, %v1096
  %v1099 = vpop.permute.xlu0 %1098
  %vm1100 = vcmp.eq.s32.totalorder %v1099, 1
  %v1101 = vsel %vm1100, %v1095, 0.0
  %1103 = vrot.lane.b32.xlu0 %v1101, 96
  %v1104 = vpop.permute.xlu0 %1103
  %1106 = vst.msk [vmem:[#allocation2 + $0x20] sm:$0xff] %vm327, %v1104
  %v1107 = vsel %vm1100, %v1095, %v1021
  %v1108 = vpack.c.bf16 %v1107, %v1107
  %1110 = vrot.lane.b32.xlu0 %v1108, 96
  %v1111 = vpop.permute.xlu0 %1110
  %v1113 = vsel %vm327, %v1111, 0
  %1115 = vmatprep.subr.bf16.mxu0 0
  %1116 = vmatpush1.bf16.msra.mxu0 %v421
  %1117 = vmatprep.subr.bf16.mxu0 0
  %1118 = vmatpush1.bf16.msra.mxu0 %v422
  %1119 = vmatprep.subr.bf16.mxu0 0
  %1120 = vmatpush1.bf16.msra.mxu0 0
  %1121 = vmatprep.subr.bf16.mxu0 0
  %1122 = vmatpush1.bf16.msra.mxu0 0
  %1123 = vmatprep.subr.bf16.mxu0 0
  %1124 = vmatpush1.bf16.msra.mxu0 0
  %1125 = vmatprep.subr.bf16.mxu0 0
  %1126 = vmatpush1.bf16.msra.mxu0 0
  %1127 = vmatprep.subr.bf16.mxu0 0
  %1128 = vmatpush1.bf16.msra.mxu0 0
  %1129 = vmatprep.subr.bf16.mxu0 0
  %1130 = vmatpush1.bf16.msra.mxu0 0
  %1131 = vmatprep.subr.bf16.mxu0 0
  %1132 = vmatpush1.bf16.msra.mxu0 0
  %1133 = vmatprep.subr.bf16.mxu0 0
  %1134 = vmatpush1.bf16.msra.mxu0 0
  %1135 = vmatprep.subr.bf16.mxu0 0
  %1136 = vmatpush1.bf16.msra.mxu0 0
  %1137 = vmatprep.subr.bf16.mxu0 0
  %1138 = vmatpush1.bf16.msra.mxu0 0
  %1139 = vmatprep.subr.bf16.mxu0 0
  %1140 = vmatpush1.bf16.msra.mxu0 0
  %1141 = vmatprep.subr.bf16.mxu0 0
  %1142 = vmatpush1.bf16.msra.mxu0 0
  %1143 = vmatprep.subr.bf16.mxu0 0
  %1144 = vmatpush1.bf16.msra.mxu0 0
  %1145 = vmatprep.subr.bf16.mxu0 0
  %1146 = vmatpush1.bf16.msra.mxu0 0
  %1147 = vmatprep.mubr.bf16.mxu0 0
  %1148 = vmatmul.mubr.bf16.gmra.mrb[0].mxu0 %v1113
  %v1149 = vpop.f32.mrb[0].mxu0
  %v1150 = vadd.f32 0.0, %v1149
  %v1151 = vpop.f32.mrb[0].mxu0
  %v1152 = vpop.f32.mrb[0].mxu0
  %v1153 = vpop.f32.mrb[0].mxu0
  %1154 = vdwg.mxu0
  %v1155 = vadd.f32 %v200, %v1150
  %v1156 = vxor.u32 %v1155, 2147483648
  %v1157 = vmul.f32 %v1156, 1.442695
  %v1158 = vpow.pop %v1157
  %v1159 = vadd.f32 %v1158, 1.0
  %v1160 = vrcp.pop %v1159
  %v1161 = vmul.f32 1.0, %v1160
  %v1162 = vadd.f32 %v1150, %v474
  %1164 = vrot.lane.b32.xlu0 %v1162, 64
  %v1165 = vpop.permute.xlu0 %1164
  %v1167 = vmul.f32 %v1161, %v1165
  %1169 = vrot.lane.b32.xlu0 %v1167, 64
  %v1170 = vpop.permute.xlu0 %1169
  %v1172 = vadd.f32 %v200, %v1170
  %v1173 = vtanh.pop %v1172
  %v1174 = vsub.f32 1.0, %v1161
  %1176 = vrot.lane.b32.xlu0 %v1173, 96
  %v1177 = vpop.permute.xlu0 %1176
  %v1179 = vmul.f32 %v1174, %v1177
  %v1180 = vmul.f32 %v1161, %v1107
  %v1181 = vadd.f32 %v1179, %v1180
  %v1182 = vsel %vm79, 1, 0
  %1183 = vset.pattern.permute.xlu0 0
  %1184 = vperm.xlu0 %1183, %v1182
  %v1185 = vpop.permute.xlu0 %1184
  %vm1186 = vcmp.eq.s32.totalorder %v1185, 1
  %v1187 = vsel %vm1186, %v1181, 0.0
  %1189 = vrot.lane.b32.xlu0 %v1187, 96
  %v1190 = vpop.permute.xlu0 %1189
  %1192 = vst.msk [vmem:[#allocation2 + $0x28] sm:$0xff] %vm327, %v1190
  %v1193 = vsel %vm1186, %v1181, %v1107
  %v1194 = vpack.c.bf16 %v1193, %v1193
  %1196 = vrot.lane.b32.xlu0 %v1194, 96
  %v1197 = vpop.permute.xlu0 %1196
  %v1199 = vsel %vm327, %v1197, 0
  %1201 = vmatprep.subr.bf16.mxu0 0
  %1202 = vmatpush1.bf16.msra.mxu0 %v421
  %1203 = vmatprep.subr.bf16.mxu0 0
  %1204 = vmatpush1.bf16.msra.mxu0 %v422
  %1205 = vmatprep.subr.bf16.mxu0 0
  %1206 = vmatpush1.bf16.msra.mxu0 0
  %1207 = vmatprep.subr.bf16.mxu0 0
  %1208 = vmatpush1.bf16.msra.mxu0 0
  %1209 = vmatprep.subr.bf16.mxu0 0
  %1210 = vmatpush1.bf16.msra.mxu0 0
  %1211 = vmatprep.subr.bf16.mxu0 0
  %1212 = vmatpush1.bf16.msra.mxu0 0
  %1213 = vmatprep.subr.bf16.mxu0 0
  %1214 = vmatpush1.bf16.msra.mxu0 0
  %1215 = vmatprep.subr.bf16.mxu0 0
  %1216 = vmatpush1.bf16.msra.mxu0 0
  %1217 = vmatprep.subr.bf16.mxu0 0
  %1218 = vmatpush1.bf16.msra.mxu0 0
  %1219 = vmatprep.subr.bf16.mxu0 0
  %1220 = vmatpush1.bf16.msra.mxu0 0
  %1221 = vmatprep.subr.bf16.mxu0 0
  %1222 = vmatpush1.bf16.msra.mxu0 0
  %1223 = vmatprep.subr.bf16.mxu0 0
  %1224 = vmatpush1.bf16.msra.mxu0 0
  %1225 = vmatprep.subr.bf16.mxu0 0
  %1226 = vmatpush1.bf16.msra.mxu0 0
  %1227 = vmatprep.subr.bf16.mxu0 0
  %1228 = vmatpush1.bf16.msra.mxu0 0
  %1229 = vmatprep.subr.bf16.mxu0 0
  %1230 = vmatpush1.bf16.msra.mxu0 0
  %1231 = vmatprep.subr.bf16.mxu0 0
  %1232 = vmatpush1.bf16.msra.mxu0 0
  %1233 = vmatprep.mubr.bf16.mxu0 0
  %1234 = vmatmul.mubr.bf16.gmra.mrb[0].mxu0 %v1199
  %v1235 = vpop.f32.mrb[0].mxu0
  %v1236 = vadd.f32 0.0, %v1235
  %v1237 = vpop.f32.mrb[0].mxu0
  %v1238 = vpop.f32.mrb[0].mxu0
  %v1239 = vpop.f32.mrb[0].mxu0
  %1240 = vdwg.mxu0
  %v1241 = vadd.f32 %v205, %v1236
  %v1242 = vxor.u32 %v1241, 2147483648
  %v1243 = vmul.f32 %v1242, 1.442695
  %v1244 = vpow.pop %v1243
  %v1245 = vadd.f32 %v1244, 1.0
  %v1246 = vrcp.pop %v1245
  %v1247 = vmul.f32 1.0, %v1246
  %v1248 = vadd.f32 %v1236, %v474
  %1250 = vrot.lane.b32.xlu0 %v1248, 64
  %v1251 = vpop.permute.xlu0 %1250
  %v1253 = vmul.f32 %v1247, %v1251
  %1255 = vrot.lane.b32.xlu0 %v1253, 64
  %v1256 = vpop.permute.xlu0 %1255
  %v1258 = vadd.f32 %v205, %v1256
  %v1259 = vtanh.pop %v1258
  %v1260 = vsub.f32 1.0, %v1247
  %1262 = vrot.lane.b32.xlu0 %v1259, 96
  %v1263 = vpop.permute.xlu0 %1262
  %v1265 = vmul.f32 %v1260, %v1263
  %v1266 = vmul.f32 %v1247, %v1193
  %v1267 = vadd.f32 %v1265, %v1266
  %v1268 = vsel %vm80, 1, 0
  %1269 = vset.pattern.permute.xlu0 0
  %1270 = vperm.xlu0 %1269, %v1268
  %v1271 = vpop.permute.xlu0 %1270
  %vm1272 = vcmp.eq.s32.totalorder %v1271, 1
  %v1273 = vsel %vm1272, %v1267, 0.0
  %1275 = vrot.lane.b32.xlu0 %v1273, 96
  %v1276 = vpop.permute.xlu0 %1275
  %1278 = vst.msk [vmem:[#allocation2 + $0x30] sm:$0xff] %vm327, %v1276
  %v1279 = vsel %vm1272, %v1267, %v1193
  %v1280 = vpack.c.bf16 %v1279, %v1279
  %1282 = vrot.lane.b32.xlu0 %v1280, 96
  %v1283 = vpop.permute.xlu0 %1282
  %v1285 = vsel %vm327, %v1283, 0
  %1287 = vmatprep.subr.bf16.mxu0 0
  %1288 = vmatpush1.bf16.msra.mxu0 %v421
  %1289 = vmatprep.subr.bf16.mxu0 0
  %1290 = vmatpush1.bf16.msra.mxu0 %v422
  %1291 = vmatprep.subr.bf16.mxu0 0
  %1292 = vmatpush1.bf16.msra.mxu0 0
  %1293 = vmatprep.subr.bf16.mxu0 0
  %1294 = vmatpush1.bf16.msra.mxu0 0
  %1295 = vmatprep.subr.bf16.mxu0 0
  %1296 = vmatpush1.bf16.msra.mxu0 0
  %1297 = vmatprep.subr.bf16.mxu0 0
  %1298 = vmatpush1.bf16.msra.mxu0 0
  %1299 = vmatprep.subr.bf16.mxu0 0
  %1300 = vmatpush1.bf16.msra.mxu0 0
  %1301 = vmatprep.subr.bf16.mxu0 0
  %1302 = vmatpush1.bf16.msra.mxu0 0
  %1303 = vmatprep.subr.bf16.mxu0 0
  %1304 = vmatpush1.bf16.msra.mxu0 0
  %1305 = vmatprep.subr.bf16.mxu0 0
  %1306 = vmatpush1.bf16.msra.mxu0 0
  %1307 = vmatprep.subr.bf16.mxu0 0
  %1308 = vmatpush1.bf16.msra.mxu0 0
  %1309 = vmatprep.subr.bf16.mxu0 0
  %1310 = vmatpush1.bf16.msra.mxu0 0
  %1311 = vmatprep.subr.bf16.mxu0 0
  %1312 = vmatpush1.bf16.msra.mxu0 0
  %1313 = vmatprep.subr.bf16.mxu0 0
  %1314 = vmatpush1.bf16.msra.mxu0 0
  %1315 = vmatprep.subr.bf16.mxu0 0
  %1316 = vmatpush1.bf16.msra.mxu0 0
  %1317 = vmatprep.subr.bf16.mxu0 0
  %1318 = vmatpush1.bf16.msra.mxu0 0
  %1319 = vmatprep.mubr.bf16.mxu0 0
  %1320 = vmatmul.mubr.bf16.gmra.mrb[0].mxu0 %v1285
  %v1321 = vpop.f32.mrb[0].mxu0
  %v1322 = vadd.f32 0.0, %v1321
  %v1323 = vpop.f32.mrb[0].mxu0
  %v1324 = vpop.f32.mrb[0].mxu0
  %v1325 = vpop.f32.mrb[0].mxu0
  %1326 = vdwg.mxu0
  %v1327 = vadd.f32 %v208, %v1322
  %v1328 = vxor.u32 %v1327, 2147483648
  %v1329 = vmul.f32 %v1328, 1.442695
  %v1330 = vpow.pop %v1329
  %v1331 = vadd.f32 %v1330, 1.0
  %v1332 = vrcp.pop %v1331
  %v1333 = vmul.f32 1.0, %v1332
  %v1334 = vadd.f32 %v1322, %v474
  %1336 = vrot.lane.b32.xlu0 %v1334, 64
  %v1337 = vpop.permute.xlu0 %1336
  %v1339 = vmul.f32 %v1333, %v1337
  %1341 = vrot.lane.b32.xlu0 %v1339, 64
  %v1342 = vpop.permute.xlu0 %1341
  %v1344 = vadd.f32 %v208, %v1342
  %v1345 = vtanh.pop %v1344
  %v1346 = vsub.f32 1.0, %v1333
  %1348 = vrot.lane.b32.xlu0 %v1345, 96
  %v1349 = vpop.permute.xlu0 %1348
  %v1351 = vmul.f32 %v1346, %v1349
  %v1352 = vmul.f32 %v1333, %v1279
  %v1353 = vadd.f32 %v1351, %v1352
  %v1354 = vsel %vm81, 1, 0
  %1355 = vset.pattern.permute.xlu0 0
  %1356 = vperm.xlu0 %1355, %v1354
  %v1357 = vpop.permute.xlu0 %1356
  %vm1358 = vcmp.eq.s32.totalorder %v1357, 1
  %v1359 = vsel %vm1358, %v1353, 0.0
  %1361 = vrot.lane.b32.xlu0 %v1359, 96
  %v1362 = vpop.permute.xlu0 %1361
  %1364 = vst.msk [vmem:[#allocation2 + $0x38] sm:$0xff] %vm327, %v1362
  %v1365 = vld [vmem:[#allocation2] sm:$0xff]
  %v1366 = vld [vmem:[#allocation2 + $0x8] sm:$0xff]
  %v1367 = vld [vmem:[#allocation2 + $0x10] sm:$0xff]
  %v1368 = vld [vmem:[#allocation2 + $0x18] sm:$0xff]
  %v1369 = vld [vmem:[#allocation2 + $0x20] sm:$0xff]
  %v1370 = vld [vmem:[#allocation2 + $0x28] sm:$0xff]
  %v1371 = vld [vmem:[#allocation2 + $0x30] sm:$0xff]
  %v1372 = vld [vmem:[#allocation2 + $0x38] sm:$0xff]
  %v1373 = vpack.c.bf16 %v1366, %v1365
  %v1374 = vpack.c.bf16 %v1368, %v1367
  %v1375 = vpack.c.bf16 %v1370, %v1369
  %v1376 = vpack.c.bf16 %v1372, %v1371
  %v1377 = vld [vmem:[#allocation3] sm:$0xff]
  %v1378 = vld [vmem:[#allocation3 + $0x8] sm:$0xff]
  %v1379 = vld [vmem:[#allocation3 + $0x10] sm:$0xff]
  %v1380 = vld [vmem:[#allocation3 + $0x18] sm:$0xff]
  %v1381 = vpack.c.bf16 %v1378, %v1377
  %v1382 = vpack.c.bf16 %v1380, %v1379
  %v1383 = vld [vmem:[%s8] sm:$0xf]
  %v1384 = vld [vmem:[%s8 + $0x4] sm:$0xf]
  %v1385 = vld [vmem:[%s8 + $0x8] sm:$0xf]
  %v1386 = vld [vmem:[%s8 + $0xc] sm:$0xf]
  %v1387 = vld [vmem:[%s10] sm:$0x1]
  %v1389 = vlaneseq
  %v1390 = vshrl.u32 %v1389, 7
  %v1391 = vsub.s32 0, %v1390
  %v1392 = vrot.slane %v1387, %v1391
  %v1398 = vunpack.c.l.b16 %v1383
  %v1399 = vunpack.c.l.b16 %v1384
  %v1400 = vunpack.c.l.b16 %v1385
  %v1401 = vunpack.c.l.b16 %v1386
  %v1402 = vpack.c.b16 %v1399, %v1398
  %v1403 = vpack.c.b16 %v1401, %v1400
  %v1407 = vsel %vm327, %v1373, 0
  %v1410 = vsel %vm327, %v1374, 0
  %v1413 = vsel %vm327, %v1375, 0
  %v1416 = vsel %vm327, %v1376, 0
  %1418 = vmatprep.subr.bf16.mxu0 0
  %1419 = vmatpush1.bf16.msra.mxu0 %v1402
  %1420 = vmatprep.subr.bf16.mxu0 0
  %1421 = vmatpush1.bf16.msra.mxu0 %v1403
  %1422 = vmatprep.subr.bf16.mxu0 0
  %1423 = vmatpush1.bf16.msra.mxu0 0
  %1424 = vmatprep.subr.bf16.mxu0 0
  %1425 = vmatpush1.bf16.msra.mxu0 0
  %1426 = vmatprep.subr.bf16.mxu0 0
  %1427 = vmatpush1.bf16.msra.mxu0 0
  %1428 = vmatprep.subr.bf16.mxu0 0
  %1429 = vmatpush1.bf16.msra.mxu0 0
  %1430 = vmatprep.subr.bf16.mxu0 0
  %1431 = vmatpush1.bf16.msra.mxu0 0
  %1432 = vmatprep.subr.bf16.mxu0 0
  %1433 = vmatpush1.bf16.msra.mxu0 0
  %1434 = vmatprep.subr.bf16.mxu0 0
  %1435 = vmatpush1.bf16.msra.mxu0 0
  %1436 = vmatprep.subr.bf16.mxu0 0
  %1437 = vmatpush1.bf16.msra.mxu0 0
  %1438 = vmatprep.subr.bf16.mxu0 0
  %1439 = vmatpush1.bf16.msra.mxu0 0
  %1440 = vmatprep.subr.bf16.mxu0 0
  %1441 = vmatpush1.bf16.msra.mxu0 0
  %1442 = vmatprep.subr.bf16.mxu0 0
  %1443 = vmatpush1.bf16.msra.mxu0 0
  %1444 = vmatprep.subr.bf16.mxu0 0
  %1445 = vmatpush1.bf16.msra.mxu0 0
  %1446 = vmatprep.subr.bf16.mxu0 0
  %1447 = vmatpush1.bf16.msra.mxu0 0
  %1448 = vmatprep.subr.bf16.mxu0 0
  %1449 = vmatpush1.bf16.msra.mxu0 0
  %1450 = vmatprep.mubr.bf16.mxu0 0
  %1451 = vmatmul.mubr.bf16.gmra.mrb[0].mxu0 %v1407
  %v1452 = vpop.f32.mrb[0].mxu0
  %v1453 = vadd.f32 %v1392, %v1452
  %v1454 = vpop.f32.mrb[0].mxu0
  %v1455 = vpop.f32.mrb[0].mxu0
  %v1456 = vadd.f32 %v1392, %v1455
  %v1457 = vpop.f32.mrb[0].mxu0
  %1458 = vmatprep.mubr.bf16.mxu0 0
  %1459 = vmatmul.mubr.bf16.gmra.mrb[0].mxu0 %v1410
  %v1460 = vpop.f32.mrb[0].mxu0
  %v1461 = vadd.f32 %v1392, %v1460
  %v1462 = vpop.f32.mrb[0].mxu0
  %v1463 = vpop.f32.mrb[0].mxu0
  %v1464 = vadd.f32 %v1392, %v1463
  %v1465 = vpop.f32.mrb[0].mxu0
  %1466 = vmatprep.mubr.bf16.mxu0 0
  %1467 = vmatmul.mubr.bf16.gmra.mrb[0].mxu0 %v1413
  %v1468 = vpop.f32.mrb[0].mxu0
  %v1469 = vadd.f32 %v1392, %v1468
  %v1470 = vpop.f32.mrb[0].mxu0
  %v1471 = vpop.f32.mrb[0].mxu0
  %v1472 = vadd.f32 %v1392, %v1471
  %v1473 = vpop.f32.mrb[0].mxu0
  %1474 = vmatprep.mubr.bf16.mxu0 0
  %1475 = vmatmul.mubr.bf16.gmra.mrb[0].mxu0 %v1416
  %v1476 = vpop.f32.mrb[0].mxu0
  %v1477 = vadd.f32 %v1392, %v1476
  %v1478 = vpop.f32.mrb[0].mxu0
  %v1479 = vpop.f32.mrb[0].mxu0
  %v1480 = vadd.f32 %v1392, %v1479
  %v1481 = vpop.f32.mrb[0].mxu0
  %1482 = vdwg.mxu0
  %v1483 = vld [vmem:[%s16] sm:$0xf]
  %v1484 = vld [vmem:[%s16 + $0x4] sm:$0xf]
  %v1485 = vld [vmem:[%s16 + $0x8] sm:$0xf]
  %v1486 = vld [vmem:[%s16 + $0xc] sm:$0xf]
  %v1487 = vld [vmem:[%s18] sm:$0x1]
  %v1489 = vlaneseq
  %v1490 = vshrl.u32 %v1489, 7
  %v1491 = vsub.s32 0, %v1490
  %v1492 = vrot.slane %v1487, %v1491
  %v1498 = vunpack.c.l.b16 %v1483
  %v1499 = vunpack.c.l.b16 %v1484
  %v1500 = vunpack.c.l.b16 %v1485
  %v1501 = vunpack.c.l.b16 %v1486
  %v1502 = vpack.c.b16 %v1499, %v1498
  %v1503 = vpack.c.b16 %v1501, %v1500
  %v1507 = vsel %vm327, %v1381, 0
  %v1510 = vsel %vm327, %v1382, 0
  %1512 = vmatprep.subr.bf16.mxu0 0
  %1513 = vmatpush1.bf16.msra.mxu0 %v1502
  %1514 = vmatprep.subr.bf16.mxu0 0
  %1515 = vmatpush1.bf16.msra.mxu0 %v1503
  %1516 = vmatprep.subr.bf16.mxu0 0
  %1517 = vmatpush1.bf16.msra.mxu0 0
  %1518 = vmatprep.subr.bf16.mxu0 0
  %1519 = vmatpush1.bf16.msra.mxu0 0
  %1520 = vmatprep.subr.bf16.mxu0 0
  %1521 = vmatpush1.bf16.msra.mxu0 0
  %1522 = vmatprep.subr.bf16.mxu0 0
  %1523 = vmatpush1.bf16.msra.mxu0 0
  %1524 = vmatprep.subr.bf16.mxu0 0
  %1525 = vmatpush1.bf16.msra.mxu0 0
  %1526 = vmatprep.subr.bf16.mxu0 0
  %1527 = vmatpush1.bf16.msra.mxu0 0
  %1528 = vmatprep.subr.bf16.mxu0 0
  %1529 = vmatpush1.bf16.msra.mxu0 0
  %1530 = vmatprep.subr.bf16.mxu0 0
  %1531 = vmatpush1.bf16.msra.mxu0 0
  %1532 = vmatprep.subr.bf16.mxu0 0
  %1533 = vmatpush1.bf16.msra.mxu0 0
  %1534 = vmatprep.subr.bf16.mxu0 0
  %1535 = vmatpush1.bf16.msra.mxu0 0
  %1536 = vmatprep.subr.bf16.mxu0 0
  %1537 = vmatpush1.bf16.msra.mxu0 0
  %1538 = vmatprep.subr.bf16.mxu0 0
  %1539 = vmatpush1.bf16.msra.mxu0 0
  %1540 = vmatprep.subr.bf16.mxu0 0
  %1541 = vmatpush1.bf16.msra.mxu0 0
  %1542 = vmatprep.subr.bf16.mxu0 0
  %1543 = vmatpush1.bf16.msra.mxu0 0
  %1544 = vmatprep.mubr.bf16.mxu0 0
  %1545 = vmatmul.mubr.bf16.gmra.mrb[0].mxu0 %v1507
  %v1546 = vpop.f32.mrb[0].mxu0
  %v1547 = vadd.f32 %v1492, %v1546
  %v1548 = vpop.f32.mrb[0].mxu0
  %v1549 = vpop.f32.mrb[0].mxu0
  %v1550 = vadd.f32 %v1492, %v1549
  %v1551 = vpop.f32.mrb[0].mxu0
  %1552 = vmatprep.mubr.bf16.mxu0 0
  %1553 = vmatmul.mubr.bf16.gmra.mrb[0].mxu0 %v1510
  %v1554 = vpop.f32.mrb[0].mxu0
  %v1555 = vadd.f32 %v1492, %v1554
  %v1556 = vpop.f32.mrb[0].mxu0
  %v1557 = vpop.f32.mrb[0].mxu0
  %v1558 = vadd.f32 %v1492, %v1557
  %v1559 = vpop.f32.mrb[0].mxu0
  %1560 = vdwg.mxu0
  %v1561 = vld [vmem:[%s9] sm:$0xf]
  %v1562 = vld [vmem:[%s9 + $0x4] sm:$0xf]
  %v1563 = vld [vmem:[%s9 + $0x8] sm:$0xf]
  %v1564 = vld [vmem:[%s9 + $0xc] sm:$0xf]
  %v1565 = vld [vmem:[%s17] sm:$0xf]
  %v1566 = vld [vmem:[%s17 + $0x4] sm:$0xf]
  %v1567 = vld [vmem:[%s17 + $0x8] sm:$0xf]
  %v1568 = vld [vmem:[%s17 + $0xc] sm:$0xf]
  %v1569 = vld [vmem:[%s11] sm:$0x1]
  %v1571 = vlaneseq
  %v1572 = vshrl.u32 %v1571, 7
  %v1573 = vsub.s32 0, %v1572
  %v1574 = vrot.slane %v1569, %v1573
  %v1576 = vadd.f32 %v1574, 0.0
  %v1577 = vld [vmem:[%s19] sm:$0x1]
  %v1579 = vlaneseq
  %v1580 = vshrl.u32 %v1579, 7
  %v1581 = vsub.s32 0, %v1580
  %v1582 = vrot.slane %v1577, %v1581
  %v1584 = vadd.f32 %v1582, 0.0
  %v1589 = vunpack.c.l.b16 %v1565
  %v1590 = vunpack.c.l.b16 %v1566
  %v1591 = vunpack.c.l.b16 %v1567
  %v1592 = vunpack.c.l.b16 %v1568
  %v1593 = vpack.c.b16 %v1590, %v1589
  %v1594 = vpack.c.b16 %v1592, %v1591
  %1597 = vmatprep.subr.bf16.mxu0 0
  %1598 = vmatpush1.bf16.msra.mxu0 %v1593
  %1599 = vmatprep.subr.bf16.mxu0 0
  %1600 = vmatpush1.bf16.msra.mxu0 %v1594
  %1601 = vmatprep.subr.bf16.mxu0 0
  %1602 = vmatpush1.bf16.msra.mxu0 0
  %1603 = vmatprep.subr.bf16.mxu0 0
  %1604 = vmatpush1.bf16.msra.mxu0 0
  %1605 = vmatprep.subr.bf16.mxu0 0
  %1606 = vmatpush1.bf16.msra.mxu0 0
  %1607 = vmatprep.subr.bf16.mxu0 0
  %1608 = vmatpush1.bf16.msra.mxu0 0
  %1609 = vmatprep.subr.bf16.mxu0 0
  %1610 = vmatpush1.bf16.msra.mxu0 0
  %1611 = vmatprep.subr.bf16.mxu0 0
  %1612 = vmatpush1.bf16.msra.mxu0 0
  %1613 = vmatprep.subr.bf16.mxu0 0
  %1614 = vmatpush1.bf16.msra.mxu0 0
  %1615 = vmatprep.subr.bf16.mxu0 0
  %1616 = vmatpush1.bf16.msra.mxu0 0
  %1617 = vmatprep.subr.bf16.mxu0 0
  %1618 = vmatpush1.bf16.msra.mxu0 0
  %1619 = vmatprep.subr.bf16.mxu0 0
  %1620 = vmatpush1.bf16.msra.mxu0 0
  %1621 = vmatprep.subr.bf16.mxu0 0
  %1622 = vmatpush1.bf16.msra.mxu0 0
  %1623 = vmatprep.subr.bf16.mxu0 0
  %1624 = vmatpush1.bf16.msra.mxu0 0
  %1625 = vmatprep.subr.bf16.mxu0 0
  %1626 = vmatpush1.bf16.msra.mxu0 0
  %1627 = vmatprep.subr.bf16.mxu0 0
  %1628 = vmatpush1.bf16.msra.mxu0 0
  %1629 = vmatprep.mubr.bf16.mxu0 0
  %1630 = vmatmul.mubr.bf16.gmra.mrb[0].mxu0 %v329
  %v1631 = vpop.f32.mrb[0].mxu0
  %v1632 = vadd.f32 0.0, %v1631
  %v1633 = vpop.f32.mrb[0].mxu0
  %v1634 = vpop.f32.mrb[0].mxu0
  %v1635 = vpop.f32.mrb[0].mxu0
  %1636 = vdwg.mxu0
  %v1637 = vadd.f32 %v1547, %v1632
  %v1638 = vxor.u32 %v1637, 2147483648
  %v1639 = vmul.f32 %v1638, 1.442695
  %v1640 = vpow.pop %v1639
  %v1641 = vadd.f32 %v1640, 1.0
  %v1642 = vrcp.pop %v1641
  %v1643 = vmul.f32 1.0, %v1642
  %1645 = vrot.lane.b32.xlu0 %v1584, 64
  %v1646 = vpop.permute.xlu0 %1645
  %v1648 = vadd.f32 %v1632, %v1646
  %1650 = vrot.lane.b32.xlu0 %v1648, 64
  %v1651 = vpop.permute.xlu0 %1650
  %v1653 = vmul.f32 %v1643, %v1651
  %1655 = vrot.lane.b32.xlu0 %v1653, 64
  %v1656 = vpop.permute.xlu0 %1655
  %v1658 = vadd.f32 %v1547, %v1656
  %v1659 = vtanh.pop %v1658
  %v1660 = vsub.f32 1.0, %v1643
  %1662 = vrot.lane.b32.xlu0 %v1659, 96
  %v1663 = vpop.permute.xlu0 %1662
  %v1665 = vmul.f32 %v1660, %v1663
  %v1666 = vmul.f32 %v1643, 0.0
  %v1667 = vadd.f32 %v1665, %v1666
  %v1668 = vsel %vm406, %v1667, 0.0
  %v1673 = vunpack.c.l.b16 %v1561
  %v1674 = vunpack.c.l.b16 %v1562
  %v1675 = vunpack.c.l.b16 %v1563
  %v1676 = vunpack.c.l.b16 %v1564
  %v1677 = vpack.c.b16 %v1674, %v1673
  %v1678 = vpack.c.b16 %v1676, %v1675
  %1681 = vmatprep.subr.bf16.mxu0 0
  %1682 = vmatpush1.bf16.msra.mxu0 %v1677
  %1683 = vmatprep.subr.bf16.mxu0 0
  %1684 = vmatpush1.bf16.msra.mxu0 %v1678
  %1685 = vmatprep.subr.bf16.mxu0 0
  %1686 = vmatpush1.bf16.msra.mxu0 0
  %1687 = vmatprep.subr.bf16.mxu0 0
  %1688 = vmatpush1.bf16.msra.mxu0 0
  %1689 = vmatprep.subr.bf16.mxu0 0
  %1690 = vmatpush1.bf16.msra.mxu0 0
  %1691 = vmatprep.subr.bf16.mxu0 0
  %1692 = vmatpush1.bf16.msra.mxu0 0
  %1693 = vmatprep.subr.bf16.mxu0 0
  %1694 = vmatpush1.bf16.msra.mxu0 0
  %1695 = vmatprep.subr.bf16.mxu0 0
  %1696 = vmatpush1.bf16.msra.mxu0 0
  %1697 = vmatprep.subr.bf16.mxu0 0
  %1698 = vmatpush1.bf16.msra.mxu0 0
  %1699 = vmatprep.subr.bf16.mxu0 0
  %1700 = vmatpush1.bf16.msra.mxu0 0
  %1701 = vmatprep.subr.bf16.mxu0 0
  %1702 = vmatpush1.bf16.msra.mxu0 0
  %1703 = vmatprep.subr.bf16.mxu0 0
  %1704 = vmatpush1.bf16.msra.mxu0 0
  %1705 = vmatprep.subr.bf16.mxu0 0
  %1706 = vmatpush1.bf16.msra.mxu0 0
  %1707 = vmatprep.subr.bf16.mxu0 0
  %1708 = vmatpush1.bf16.msra.mxu0 0
  %1709 = vmatprep.subr.bf16.mxu0 0
  %1710 = vmatpush1.bf16.msra.mxu0 0
  %1711 = vmatprep.subr.bf16.mxu0 0
  %1712 = vmatpush1.bf16.msra.mxu0 0
  %1713 = vmatprep.mubr.bf16.mxu0 0
  %1714 = vmatmul.mubr.bf16.gmra.mrb[0].mxu0 %v329
  %v1715 = vpop.f32.mrb[0].mxu0
  %v1716 = vadd.f32 0.0, %v1715
  %v1717 = vpop.f32.mrb[0].mxu0
  %v1718 = vpop.f32.mrb[0].mxu0
  %v1719 = vpop.f32.mrb[0].mxu0
  %1720 = vdwg.mxu0
  %v1721 = vadd.f32 %v1453, %v1716
  %v1722 = vxor.u32 %v1721, 2147483648
  %v1723 = vmul.f32 %v1722, 1.442695
  %v1724 = vpow.pop %v1723
  %v1725 = vadd.f32 %v1724, 1.0
  %v1726 = vrcp.pop %v1725
  %v1727 = vmul.f32 1.0, %v1726
  %1729 = vrot.lane.b32.xlu0 %v1576, 64
  %v1730 = vpop.permute.xlu0 %1729
  %v1732 = vadd.f32 %v1716, %v1730
  %1734 = vrot.lane.b32.xlu0 %v1732, 64
  %v1735 = vpop.permute.xlu0 %1734
  %v1737 = vmul.f32 %v1727, %v1735
  %1739 = vrot.lane.b32.xlu0 %v1737, 64
  %v1740 = vpop.permute.xlu0 %1739
  %v1742 = vadd.f32 %v1453, %v1740
  %v1743 = vtanh.pop %v1742
  %v1744 = vsub.f32 1.0, %v1727
  %1746 = vrot.lane.b32.xlu0 %v1743, 96
  %v1747 = vpop.permute.xlu0 %1746
  %v1749 = vmul.f32 %v1744, %v1747
  %v1750 = vmul.f32 %v1727, 0.0
  %v1751 = vadd.f32 %v1749, %v1750
  %v1752 = vadd.f32 %v1751, %v1668
  %v1753 = vsel %vm500, %v1752, 0.0
  %1755 = vrot.lane.b32.xlu0 %v1753, 96
  %v1756 = vpop.permute.xlu0 %1755
  %1758 = vst.msk [vmem:[#allocation4] sm:$0xff] %vm327, %v1756
  %v1759 = vsel %vm500, %v1751, 0.0
  %v1760 = vpack.c.bf16 %v1668, %v1668
  %1762 = vrot.lane.b32.xlu0 %v1760, 96
  %v1763 = vpop.permute.xlu0 %1762
  %v1765 = vsel %vm327, %v1763, 0
  %1767 = vmatprep.subr.bf16.mxu0 0
  %1768 = vmatpush1.bf16.msra.mxu0 %v1593
  %1769 = vmatprep.subr.bf16.mxu0 0
  %1770 = vmatpush1.bf16.msra.mxu0 %v1594
  %1771 = vmatprep.subr.bf16.mxu0 0
  %1772 = vmatpush1.bf16.msra.mxu0 0
  %1773 = vmatprep.subr.bf16.mxu0 0
  %1774 = vmatpush1.bf16.msra.mxu0 0
  %1775 = vmatprep.subr.bf16.mxu0 0
  %1776 = vmatpush1.bf16.msra.mxu0 0
  %1777 = vmatprep.subr.bf16.mxu0 0
  %1778 = vmatpush1.bf16.msra.mxu0 0
  %1779 = vmatprep.subr.bf16.mxu0 0
  %1780 = vmatpush1.bf16.msra.mxu0 0
  %1781 = vmatprep.subr.bf16.mxu0 0
  %1782 = vmatpush1.bf16.msra.mxu0 0
  %1783 = vmatprep.subr.bf16.mxu0 0
  %1784 = vmatpush1.bf16.msra.mxu0 0
  %1785 = vmatprep.subr.bf16.mxu0 0
  %1786 = vmatpush1.bf16.msra.mxu0 0
  %1787 = vmatprep.subr.bf16.mxu0 0
  %1788 = vmatpush1.bf16.msra.mxu0 0
  %1789 = vmatprep.subr.bf16.mxu0 0
  %1790 = vmatpush1.bf16.msra.mxu0 0
  %1791 = vmatprep.subr.bf16.mxu0 0
  %1792 = vmatpush1.bf16.msra.mxu0 0
  %1793 = vmatprep.subr.bf16.mxu0 0
  %1794 = vmatpush1.bf16.msra.mxu0 0
  %1795 = vmatprep.subr.bf16.mxu0 0
  %1796 = vmatpush1.bf16.msra.mxu0 0
  %1797 = vmatprep.subr.bf16.mxu0 0
  %1798 = vmatpush1.bf16.msra.mxu0 0
  %1799 = vmatprep.mubr.bf16.mxu0 0
  %1800 = vmatmul.mubr.bf16.gmra.mrb[0].mxu0 %v1765
  %v1801 = vpop.f32.mrb[0].mxu0
  %v1802 = vadd.f32 0.0, %v1801
  %v1803 = vpop.f32.mrb[0].mxu0
  %v1804 = vpop.f32.mrb[0].mxu0
  %v1805 = vpop.f32.mrb[0].mxu0
  %1806 = vdwg.mxu0
  %v1807 = vadd.f32 %v1550, %v1802
  %v1808 = vxor.u32 %v1807, 2147483648
  %v1809 = vmul.f32 %v1808, 1.442695
  %v1810 = vpow.pop %v1809
  %v1811 = vadd.f32 %v1810, 1.0
  %v1812 = vrcp.pop %v1811
  %v1813 = vmul.f32 1.0, %v1812
  %v1814 = vadd.f32 %v1802, %v1646
  %1816 = vrot.lane.b32.xlu0 %v1814, 64
  %v1817 = vpop.permute.xlu0 %1816
  %v1819 = vmul.f32 %v1813, %v1817
  %1821 = vrot.lane.b32.xlu0 %v1819, 64
  %v1822 = vpop.permute.xlu0 %1821
  %v1824 = vadd.f32 %v1550, %v1822
  %v1825 = vtanh.pop %v1824
  %v1826 = vsub.f32 1.0, %v1813
  %1828 = vrot.lane.b32.xlu0 %v1825, 96
  %v1829 = vpop.permute.xlu0 %1828
  %v1831 = vmul.f32 %v1826, %v1829
  %v1832 = vmul.f32 %v1813, %v1668
  %v1833 = vadd.f32 %v1831, %v1832
  %v1834 = vsel %vm585, %v1833, 0.0
  %v1835 = vsel %vm585, %v1833, %v1668
  %v1836 = vpack.c.bf16 %v1759, %v1759
  %1838 = vrot.lane.b32.xlu0 %v1836, 96
  %v1839 = vpop.permute.xlu0 %1838
  %v1841 = vsel %vm327, %v1839, 0
  %1843 = vmatprep.subr.bf16.mxu0 0
  %1844 = vmatpush1.bf16.msra.mxu0 %v1677
  %1845 = vmatprep.subr.bf16.mxu0 0
  %1846 = vmatpush1.bf16.msra.mxu0 %v1678
  %1847 = vmatprep.subr.bf16.mxu0 0
  %1848 = vmatpush1.bf16.msra.mxu0 0
  %1849 = vmatprep.subr.bf16.mxu0 0
  %1850 = vmatpush1.bf16.msra.mxu0 0
  %1851 = vmatprep.subr.bf16.mxu0 0
  %1852 = vmatpush1.bf16.msra.mxu0 0
  %1853 = vmatprep.subr.bf16.mxu0 0
  %1854 = vmatpush1.bf16.msra.mxu0 0
  %1855 = vmatprep.subr.bf16.mxu0 0
  %1856 = vmatpush1.bf16.msra.mxu0 0
  %1857 = vmatprep.subr.bf16.mxu0 0
  %1858 = vmatpush1.bf16.msra.mxu0 0
  %1859 = vmatprep.subr.bf16.mxu0 0
  %1860 = vmatpush1.bf16.msra.mxu0 0
  %1861 = vmatprep.subr.bf16.mxu0 0
  %1862 = vmatpush1.bf16.msra.mxu0 0
  %1863 = vmatprep.subr.bf16.mxu0 0
  %1864 = vmatpush1.bf16.msra.mxu0 0
  %1865 = vmatprep.subr.bf16.mxu0 0
  %1866 = vmatpush1.bf16.msra.mxu0 0
  %1867 = vmatprep.subr.bf16.mxu0 0
  %1868 = vmatpush1.bf16.msra.mxu0 0
  %1869 = vmatprep.subr.bf16.mxu0 0
  %1870 = vmatpush1.bf16.msra.mxu0 0
  %1871 = vmatprep.subr.bf16.mxu0 0
  %1872 = vmatpush1.bf16.msra.mxu0 0
  %1873 = vmatprep.subr.bf16.mxu0 0
  %1874 = vmatpush1.bf16.msra.mxu0 0
  %1875 = vmatprep.mubr.bf16.mxu0 0
  %1876 = vmatmul.mubr.bf16.gmra.mrb[0].mxu0 %v1841
  %v1877 = vpop.f32.mrb[0].mxu0
  %v1878 = vadd.f32 0.0, %v1877
  %v1879 = vpop.f32.mrb[0].mxu0
  %v1880 = vpop.f32.mrb[0].mxu0
  %v1881 = vpop.f32.mrb[0].mxu0
  %1882 = vdwg.mxu0
  %v1883 = vadd.f32 %v1456, %v1878
  %v1884 = vxor.u32 %v1883, 2147483648
  %v1885 = vmul.f32 %v1884, 1.442695
  %v1886 = vpow.pop %v1885
  %v1887 = vadd.f32 %v1886, 1.0
  %v1888 = vrcp.pop %v1887
  %v1889 = vmul.f32 1.0, %v1888
  %v1890 = vadd.f32 %v1878, %v1730
  %1892 = vrot.lane.b32.xlu0 %v1890, 64
  %v1893 = vpop.permute.xlu0 %1892
  %v1895 = vmul.f32 %v1889, %v1893
  %1897 = vrot.lane.b32.xlu0 %v1895, 64
  %v1898 = vpop.permute.xlu0 %1897
  %v1900 = vadd.f32 %v1456, %v1898
  %v1901 = vtanh.pop %v1900
  %v1902 = vsub.f32 1.0, %v1889
  %1904 = vrot.lane.b32.xlu0 %v1901, 96
  %v1905 = vpop.permute.xlu0 %1904
  %v1907 = vmul.f32 %v1902, %v1905
  %v1908 = vmul.f32 %v1889, %v1759
  %v1909 = vadd.f32 %v1907, %v1908
  %v1910 = vadd.f32 %v1909, %v1668
  %v1911 = vsel %vm671, %v1910, 0.0
  %1913 = vrot.lane.b32.xlu0 %v1911, 96
  %v1914 = vpop.permute.xlu0 %1913
  %1916 = vst.msk [vmem:[#allocation4 + $0x8] sm:$0xff] %vm327, %v1914
  %v1917 = vsel %vm671, %v1909, %v1759
  %v1918 = vpack.c.bf16 %v1835, %v1835
  %1920 = vrot.lane.b32.xlu0 %v1918, 96
  %v1921 = vpop.permute.xlu0 %1920
  %v1923 = vsel %vm327, %v1921, 0
  %1925 = vmatprep.subr.bf16.mxu0 0
  %1926 = vmatpush1.bf16.msra.mxu0 %v1593
  %1927 = vmatprep.subr.bf16.mxu0 0
  %1928 = vmatpush1.bf16.msra.mxu0 %v1594
  %1929 = vmatprep.subr.bf16.mxu0 0
  %1930 = vmatpush1.bf16.msra.mxu0 0
  %1931 = vmatprep.subr.bf16.mxu0 0
  %1932 = vmatpush1.bf16.msra.mxu0 0
  %1933 = vmatprep.subr.bf16.mxu0 0
  %1934 = vmatpush1.bf16.msra.mxu0 0
  %1935 = vmatprep.subr.bf16.mxu0 0
  %1936 = vmatpush1.bf16.msra.mxu0 0
  %1937 = vmatprep.subr.bf16.mxu0 0
  %1938 = vmatpush1.bf16.msra.mxu0 0
  %1939 = vmatprep.subr.bf16.mxu0 0
  %1940 = vmatpush1.bf16.msra.mxu0 0
  %1941 = vmatprep.subr.bf16.mxu0 0
  %1942 = vmatpush1.bf16.msra.mxu0 0
  %1943 = vmatprep.subr.bf16.mxu0 0
  %1944 = vmatpush1.bf16.msra.mxu0 0
  %1945 = vmatprep.subr.bf16.mxu0 0
  %1946 = vmatpush1.bf16.msra.mxu0 0
  %1947 = vmatprep.subr.bf16.mxu0 0
  %1948 = vmatpush1.bf16.msra.mxu0 0
  %1949 = vmatprep.subr.bf16.mxu0 0
  %1950 = vmatpush1.bf16.msra.mxu0 0
  %1951 = vmatprep.subr.bf16.mxu0 0
  %1952 = vmatpush1.bf16.msra.mxu0 0
  %1953 = vmatprep.subr.bf16.mxu0 0
  %1954 = vmatpush1.bf16.msra.mxu0 0
  %1955 = vmatprep.subr.bf16.mxu0 0
  %1956 = vmatpush1.bf16.msra.mxu0 0
  %1957 = vmatprep.mubr.bf16.mxu0 0
  %1958 = vmatmul.mubr.bf16.gmra.mrb[0].mxu0 %v1923
  %v1959 = vpop.f32.mrb[0].mxu0
  %v1960 = vadd.f32 0.0, %v1959
  %v1961 = vpop.f32.mrb[0].mxu0
  %v1962 = vpop.f32.mrb[0].mxu0
  %v1963 = vpop.f32.mrb[0].mxu0
  %1964 = vdwg.mxu0
  %v1965 = vadd.f32 %v1555, %v1960
  %v1966 = vxor.u32 %v1965, 2147483648
  %v1967 = vmul.f32 %v1966, 1.442695
  %v1968 = vpow.pop %v1967
  %v1969 = vadd.f32 %v1968, 1.0
  %v1970 = vrcp.pop %v1969
  %v1971 = vmul.f32 1.0, %v1970
  %v1972 = vadd.f32 %v1960, %v1646
  %1974 = vrot.lane.b32.xlu0 %v1972, 64
  %v1975 = vpop.permute.xlu0 %1974
  %v1977 = vmul.f32 %v1971, %v1975
  %1979 = vrot.lane.b32.xlu0 %v1977, 64
  %v1980 = vpop.permute.xlu0 %1979
  %v1982 = vadd.f32 %v1555, %v1980
  %v1983 = vtanh.pop %v1982
  %v1984 = vsub.f32 1.0, %v1971
  %1986 = vrot.lane.b32.xlu0 %v1983, 96
  %v1987 = vpop.permute.xlu0 %1986
  %v1989 = vmul.f32 %v1984, %v1987
  %v1990 = vmul.f32 %v1971, %v1835
  %v1991 = vadd.f32 %v1989, %v1990
  %v1992 = vsel %vm757, %v1991, 0.0
  %v1993 = vsel %vm757, %v1991, %v1835
  %v1994 = vpack.c.bf16 %v1917, %v1917
  %1996 = vrot.lane.b32.xlu0 %v1994, 96
  %v1997 = vpop.permute.xlu0 %1996
  %v1999 = vsel %vm327, %v1997, 0
  %2001 = vmatprep.subr.bf16.mxu0 0
  %2002 = vmatpush1.bf16.msra.mxu0 %v1677
  %2003 = vmatprep.subr.bf16.mxu0 0
  %2004 = vmatpush1.bf16.msra.mxu0 %v1678
  %2005 = vmatprep.subr.bf16.mxu0 0
  %2006 = vmatpush1.bf16.msra.mxu0 0
  %2007 = vmatprep.subr.bf16.mxu0 0
  %2008 = vmatpush1.bf16.msra.mxu0 0
  %2009 = vmatprep.subr.bf16.mxu0 0
  %2010 = vmatpush1.bf16.msra.mxu0 0
  %2011 = vmatprep.subr.bf16.mxu0 0
  %2012 = vmatpush1.bf16.msra.mxu0 0
  %2013 = vmatprep.subr.bf16.mxu0 0
  %2014 = vmatpush1.bf16.msra.mxu0 0
  %2015 = vmatprep.subr.bf16.mxu0 0
  %2016 = vmatpush1.bf16.msra.mxu0 0
  %2017 = vmatprep.subr.bf16.mxu0 0
  %2018 = vmatpush1.bf16.msra.mxu0 0
  %2019 = vmatprep.subr.bf16.mxu0 0
  %2020 = vmatpush1.bf16.msra.mxu0 0
  %2021 = vmatprep.subr.bf16.mxu0 0
  %2022 = vmatpush1.bf16.msra.mxu0 0
  %2023 = vmatprep.subr.bf16.mxu0 0
  %2024 = vmatpush1.bf16.msra.mxu0 0
  %2025 = vmatprep.subr.bf16.mxu0 0
  %2026 = vmatpush1.bf16.msra.mxu0 0
  %2027 = vmatprep.subr.bf16.mxu0 0
  %2028 = vmatpush1.bf16.msra.mxu0 0
  %2029 = vmatprep.subr.bf16.mxu0 0
  %2030 = vmatpush1.bf16.msra.mxu0 0
  %2031 = vmatprep.subr.bf16.mxu0 0
  %2032 = vmatpush1.bf16.msra.mxu0 0
  %2033 = vmatprep.mubr.bf16.mxu0 0
  %2034 = vmatmul.mubr.bf16.gmra.mrb[0].mxu0 %v1999
  %v2035 = vpop.f32.mrb[0].mxu0
  %v2036 = vadd.f32 0.0, %v2035
  %v2037 = vpop.f32.mrb[0].mxu0
  %v2038 = vpop.f32.mrb[0].mxu0
  %v2039 = vpop.f32.mrb[0].mxu0
  %2040 = vdwg.mxu0
  %v2041 = vadd.f32 %v1461, %v2036
  %v2042 = vxor.u32 %v2041, 2147483648
  %v2043 = vmul.f32 %v2042, 1.442695
  %v2044 = vpow.pop %v2043
  %v2045 = vadd.f32 %v2044, 1.0
  %v2046 = vrcp.pop %v2045
  %v2047 = vmul.f32 1.0, %v2046
  %v2048 = vadd.f32 %v2036, %v1730
  %2050 = vrot.lane.b32.xlu0 %v2048, 64
  %v2051 = vpop.permute.xlu0 %2050
  %v2053 = vmul.f32 %v2047, %v2051
  %2055 = vrot.lane.b32.xlu0 %v2053, 64
  %v2056 = vpop.permute.xlu0 %2055
  %v2058 = vadd.f32 %v1461, %v2056
  %v2059 = vtanh.pop %v2058
  %v2060 = vsub.f32 1.0, %v2047
  %2062 = vrot.lane.b32.xlu0 %v2059, 96
  %v2063 = vpop.permute.xlu0 %2062
  %v2065 = vmul.f32 %v2060, %v2063
  %v2066 = vmul.f32 %v2047, %v1917
  %v2067 = vadd.f32 %v2065, %v2066
  %v2068 = vadd.f32 %v2067, %v1834
  %v2069 = vsel %vm843, %v2068, 0.0
  %2071 = vrot.lane.b32.xlu0 %v2069, 96
  %v2072 = vpop.permute.xlu0 %2071
  %2074 = vst.msk [vmem:[#allocation4 + $0x10] sm:$0xff] %vm327, %v2072
  %v2075 = vsel %vm843, %v2067, %v1917
  %v2076 = vpack.c.bf16 %v1993, %v1993
  %2078 = vrot.lane.b32.xlu0 %v2076, 96
  %v2079 = vpop.permute.xlu0 %2078
  %v2081 = vsel %vm327, %v2079, 0
  %2083 = vmatprep.subr.bf16.mxu0 0
  %2084 = vmatpush1.bf16.msra.mxu0 %v1593
  %2085 = vmatprep.subr.bf16.mxu0 0
  %2086 = vmatpush1.bf16.msra.mxu0 %v1594
  %2087 = vmatprep.subr.bf16.mxu0 0
  %2088 = vmatpush1.bf16.msra.mxu0 0
  %2089 = vmatprep.subr.bf16.mxu0 0
  %2090 = vmatpush1.bf16.msra.mxu0 0
  %2091 = vmatprep.subr.bf16.mxu0 0
  %2092 = vmatpush1.bf16.msra.mxu0 0
  %2093 = vmatprep.subr.bf16.mxu0 0
  %2094 = vmatpush1.bf16.msra.mxu0 0
  %2095 = vmatprep.subr.bf16.mxu0 0
  %2096 = vmatpush1.bf16.msra.mxu0 0
  %2097 = vmatprep.subr.bf16.mxu0 0
  %2098 = vmatpush1.bf16.msra.mxu0 0
  %2099 = vmatprep.subr.bf16.mxu0 0
  %2100 = vmatpush1.bf16.msra.mxu0 0
  %2101 = vmatprep.subr.bf16.mxu0 0
  %2102 = vmatpush1.bf16.msra.mxu0 0
  %2103 = vmatprep.subr.bf16.mxu0 0
  %2104 = vmatpush1.bf16.msra.mxu0 0
  %2105 = vmatprep.subr.bf16.mxu0 0
  %2106 = vmatpush1.bf16.msra.mxu0 0
  %2107 = vmatprep.subr.bf16.mxu0 0
  %2108 = vmatpush1.bf16.msra.mxu0 0
  %2109 = vmatprep.subr.bf16.mxu0 0
  %2110 = vmatpush1.bf16.msra.mxu0 0
  %2111 = vmatprep.subr.bf16.mxu0 0
  %2112 = vmatpush1.bf16.msra.mxu0 0
  %2113 = vmatprep.subr.bf16.mxu0 0
  %2114 = vmatpush1.bf16.msra.mxu0 0
  %2115 = vmatprep.mubr.bf16.mxu0 0
  %2116 = vmatmul.mubr.bf16.gmra.mrb[0].mxu0 %v2081
  %v2117 = vpop.f32.mrb[0].mxu0
  %v2118 = vadd.f32 0.0, %v2117
  %v2119 = vpop.f32.mrb[0].mxu0
  %v2120 = vpop.f32.mrb[0].mxu0
  %v2121 = vpop.f32.mrb[0].mxu0
  %2122 = vdwg.mxu0
  %v2123 = vadd.f32 %v1558, %v2118
  %v2124 = vxor.u32 %v2123, 2147483648
  %v2125 = vmul.f32 %v2124, 1.442695
  %v2126 = vpow.pop %v2125
  %v2127 = vadd.f32 %v2126, 1.0
  %v2128 = vrcp.pop %v2127
  %v2129 = vmul.f32 1.0, %v2128
  %v2130 = vadd.f32 %v2118, %v1646
  %2132 = vrot.lane.b32.xlu0 %v2130, 64
  %v2133 = vpop.permute.xlu0 %2132
  %v2135 = vmul.f32 %v2129, %v2133
  %2137 = vrot.lane.b32.xlu0 %v2135, 64
  %v2138 = vpop.permute.xlu0 %2137
  %v2140 = vadd.f32 %v1558, %v2138
  %v2141 = vtanh.pop %v2140
  %v2142 = vsub.f32 1.0, %v2129
  %2144 = vrot.lane.b32.xlu0 %v2141, 96
  %v2145 = vpop.permute.xlu0 %2144
  %v2147 = vmul.f32 %v2142, %v2145
  %v2148 = vmul.f32 %v2129, %v1993
  %v2149 = vadd.f32 %v2147, %v2148
  %v2150 = vsel %vm929, %v2149, 0.0
  %v2151 = vpack.c.bf16 %v2075, %v2075
  %2153 = vrot.lane.b32.xlu0 %v2151, 96
  %v2154 = vpop.permute.xlu0 %2153
  %v2156 = vsel %vm327, %v2154, 0
  %2158 = vmatprep.subr.bf16.mxu0 0
  %2159 = vmatpush1.bf16.msra.mxu0 %v1677
  %2160 = vmatprep.subr.bf16.mxu0 0
  %2161 = vmatpush1.bf16.msra.mxu0 %v1678
  %2162 = vmatprep.subr.bf16.mxu0 0
  %2163 = vmatpush1.bf16.msra.mxu0 0
  %2164 = vmatprep.subr.bf16.mxu0 0
  %2165 = vmatpush1.bf16.msra.mxu0 0
  %2166 = vmatprep.subr.bf16.mxu0 0
  %2167 = vmatpush1.bf16.msra.mxu0 0
  %2168 = vmatprep.subr.bf16.mxu0 0
  %2169 = vmatpush1.bf16.msra.mxu0 0
  %2170 = vmatprep.subr.bf16.mxu0 0
  %2171 = vmatpush1.bf16.msra.mxu0 0
  %2172 = vmatprep.subr.bf16.mxu0 0
  %2173 = vmatpush1.bf16.msra.mxu0 0
  %2174 = vmatprep.subr.bf16.mxu0 0
  %2175 = vmatpush1.bf16.msra.mxu0 0
  %2176 = vmatprep.subr.bf16.mxu0 0
  %2177 = vmatpush1.bf16.msra.mxu0 0
  %2178 = vmatprep.subr.bf16.mxu0 0
  %2179 = vmatpush1.bf16.msra.mxu0 0
  %2180 = vmatprep.subr.bf16.mxu0 0
  %2181 = vmatpush1.bf16.msra.mxu0 0
  %2182 = vmatprep.subr.bf16.mxu0 0
  %2183 = vmatpush1.bf16.msra.mxu0 0
  %2184 = vmatprep.subr.bf16.mxu0 0
  %2185 = vmatpush1.bf16.msra.mxu0 0
  %2186 = vmatprep.subr.bf16.mxu0 0
  %2187 = vmatpush1.bf16.msra.mxu0 0
  %2188 = vmatprep.subr.bf16.mxu0 0
  %2189 = vmatpush1.bf16.msra.mxu0 0
  %2190 = vmatprep.mubr.bf16.mxu0 0
  %2191 = vmatmul.mubr.bf16.gmra.mrb[0].mxu0 %v2156
  %v2192 = vpop.f32.mrb[0].mxu0
  %v2193 = vadd.f32 0.0, %v2192
  %v2194 = vpop.f32.mrb[0].mxu0
  %v2195 = vpop.f32.mrb[0].mxu0
  %v2196 = vpop.f32.mrb[0].mxu0
  %2197 = vdwg.mxu0
  %v2198 = vadd.f32 %v1464, %v2193
  %v2199 = vxor.u32 %v2198, 2147483648
  %v2200 = vmul.f32 %v2199, 1.442695
  %v2201 = vpow.pop %v2200
  %v2202 = vadd.f32 %v2201, 1.0
  %v2203 = vrcp.pop %v2202
  %v2204 = vmul.f32 1.0, %v2203
  %v2205 = vadd.f32 %v2193, %v1730
  %2207 = vrot.lane.b32.xlu0 %v2205, 64
  %v2208 = vpop.permute.xlu0 %2207
  %v2210 = vmul.f32 %v2204, %v2208
  %2212 = vrot.lane.b32.xlu0 %v2210, 64
  %v2213 = vpop.permute.xlu0 %2212
  %v2215 = vadd.f32 %v1464, %v2213
  %v2216 = vtanh.pop %v2215
  %v2217 = vsub.f32 1.0, %v2204
  %2219 = vrot.lane.b32.xlu0 %v2216, 96
  %v2220 = vpop.permute.xlu0 %2219
  %v2222 = vmul.f32 %v2217, %v2220
  %v2223 = vmul.f32 %v2204, %v2075
  %v2224 = vadd.f32 %v2222, %v2223
  %v2225 = vadd.f32 %v2224, %v1834
  %v2226 = vsel %vm1014, %v2225, 0.0
  %2228 = vrot.lane.b32.xlu0 %v2226, 96
  %v2229 = vpop.permute.xlu0 %2228
  %2231 = vst.msk [vmem:[#allocation4 + $0x18] sm:$0xff] %vm327, %v2229
  %v2232 = vsel %vm1014, %v2224, %v2075
  %v2233 = vpack.c.bf16 %v2232, %v2232
  %2235 = vrot.lane.b32.xlu0 %v2233, 96
  %v2236 = vpop.permute.xlu0 %2235
  %v2238 = vsel %vm327, %v2236, 0
  %2240 = vmatprep.subr.bf16.mxu0 0
  %2241 = vmatpush1.bf16.msra.mxu0 %v1677
  %2242 = vmatprep.subr.bf16.mxu0 0
  %2243 = vmatpush1.bf16.msra.mxu0 %v1678
  %2244 = vmatprep.subr.bf16.mxu0 0
  %2245 = vmatpush1.bf16.msra.mxu0 0
  %2246 = vmatprep.subr.bf16.mxu0 0
  %2247 = vmatpush1.bf16.msra.mxu0 0
  %2248 = vmatprep.subr.bf16.mxu0 0
  %2249 = vmatpush1.bf16.msra.mxu0 0
  %2250 = vmatprep.subr.bf16.mxu0 0
  %2251 = vmatpush1.bf16.msra.mxu0 0
  %2252 = vmatprep.subr.bf16.mxu0 0
  %2253 = vmatpush1.bf16.msra.mxu0 0
  %2254 = vmatprep.subr.bf16.mxu0 0
  %2255 = vmatpush1.bf16.msra.mxu0 0
  %2256 = vmatprep.subr.bf16.mxu0 0
  %2257 = vmatpush1.bf16.msra.mxu0 0
  %2258 = vmatprep.subr.bf16.mxu0 0
  %2259 = vmatpush1.bf16.msra.mxu0 0
  %2260 = vmatprep.subr.bf16.mxu0 0
  %2261 = vmatpush1.bf16.msra.mxu0 0
  %2262 = vmatprep.subr.bf16.mxu0 0
  %2263 = vmatpush1.bf16.msra.mxu0 0
  %2264 = vmatprep.subr.bf16.mxu0 0
  %2265 = vmatpush1.bf16.msra.mxu0 0
  %2266 = vmatprep.subr.bf16.mxu0 0
  %2267 = vmatpush1.bf16.msra.mxu0 0
  %2268 = vmatprep.subr.bf16.mxu0 0
  %2269 = vmatpush1.bf16.msra.mxu0 0
  %2270 = vmatprep.subr.bf16.mxu0 0
  %2271 = vmatpush1.bf16.msra.mxu0 0
  %2272 = vmatprep.mubr.bf16.mxu0 0
  %2273 = vmatmul.mubr.bf16.gmra.mrb[0].mxu0 %v2238
  %v2274 = vpop.f32.mrb[0].mxu0
  %v2275 = vadd.f32 0.0, %v2274
  %v2276 = vpop.f32.mrb[0].mxu0
  %v2277 = vpop.f32.mrb[0].mxu0
  %v2278 = vpop.f32.mrb[0].mxu0
  %2279 = vdwg.mxu0
  %v2280 = vadd.f32 %v1469, %v2275
  %v2281 = vxor.u32 %v2280, 2147483648
  %v2282 = vmul.f32 %v2281, 1.442695
  %v2283 = vpow.pop %v2282
  %v2284 = vadd.f32 %v2283, 1.0
  %v2285 = vrcp.pop %v2284
  %v2286 = vmul.f32 1.0, %v2285
  %v2287 = vadd.f32 %v2275, %v1730
  %2289 = vrot.lane.b32.xlu0 %v2287, 64
  %v2290 = vpop.permute.xlu0 %2289
  %v2292 = vmul.f32 %v2286, %v2290
  %2294 = vrot.lane.b32.xlu0 %v2292, 64
  %v2295 = vpop.permute.xlu0 %2294
  %v2297 = vadd.f32 %v1469, %v2295
  %v2298 = vtanh.pop %v2297
  %v2299 = vsub.f32 1.0, %v2286
  %2301 = vrot.lane.b32.xlu0 %v2298, 96
  %v2302 = vpop.permute.xlu0 %2301
  %v2304 = vmul.f32 %v2299, %v2302
  %v2305 = vmul.f32 %v2286, %v2232
  %v2306 = vadd.f32 %v2304, %v2305
  %v2307 = vadd.f32 %v2306, %v1992
  %v2308 = vsel %vm1100, %v2307, 0.0
  %2310 = vrot.lane.b32.xlu0 %v2308, 96
  %v2311 = vpop.permute.xlu0 %2310
  %2313 = vst.msk [vmem:[#allocation4 + $0x20] sm:$0xff] %vm327, %v2311
  %v2314 = vsel %vm1100, %v2306, %v2232
  %v2315 = vpack.c.bf16 %v2314, %v2314
  %2317 = vrot.lane.b32.xlu0 %v2315, 96
  %v2318 = vpop.permute.xlu0 %2317
  %v2320 = vsel %vm327, %v2318, 0
  %2322 = vmatprep.subr.bf16.mxu0 0
  %2323 = vmatpush1.bf16.msra.mxu0 %v1677
  %2324 = vmatprep.subr.bf16.mxu0 0
  %2325 = vmatpush1.bf16.msra.mxu0 %v1678
  %2326 = vmatprep.subr.bf16.mxu0 0
  %2327 = vmatpush1.bf16.msra.mxu0 0
  %2328 = vmatprep.subr.bf16.mxu0 0
  %2329 = vmatpush1.bf16.msra.mxu0 0
  %2330 = vmatprep.subr.bf16.mxu0 0
  %2331 = vmatpush1.bf16.msra.mxu0 0
  %2332 = vmatprep.subr.bf16.mxu0 0
  %2333 = vmatpush1.bf16.msra.mxu0 0
  %2334 = vmatprep.subr.bf16.mxu0 0
  %2335 = vmatpush1.bf16.msra.mxu0 0
  %2336 = vmatprep.subr.bf16.mxu0 0
  %2337 = vmatpush1.bf16.msra.mxu0 0
  %2338 = vmatprep.subr.bf16.mxu0 0
  %2339 = vmatpush1.bf16.msra.mxu0 0
  %2340 = vmatprep.subr.bf16.mxu0 0
  %2341 = vmatpush1.bf16.msra.mxu0 0
  %2342 = vmatprep.subr.bf16.mxu0 0
  %2343 = vmatpush1.bf16.msra.mxu0 0
  %2344 = vmatprep.subr.bf16.mxu0 0
  %2345 = vmatpush1.bf16.msra.mxu0 0
  %2346 = vmatprep.subr.bf16.mxu0 0
  %2347 = vmatpush1.bf16.msra.mxu0 0
  %2348 = vmatprep.subr.bf16.mxu0 0
  %2349 = vmatpush1.bf16.msra.mxu0 0
  %2350 = vmatprep.subr.bf16.mxu0 0
  %2351 = vmatpush1.bf16.msra.mxu0 0
  %2352 = vmatprep.subr.bf16.mxu0 0
  %2353 = vmatpush1.bf16.msra.mxu0 0
  %2354 = vmatprep.mubr.bf16.mxu0 0
  %2355 = vmatmul.mubr.bf16.gmra.mrb[0].mxu0 %v2320
  %v2356 = vpop.f32.mrb[0].mxu0
  %v2357 = vadd.f32 0.0, %v2356
  %v2358 = vpop.f32.mrb[0].mxu0
  %v2359 = vpop.f32.mrb[0].mxu0
  %v2360 = vpop.f32.mrb[0].mxu0
  %2361 = vdwg.mxu0
  %v2362 = vadd.f32 %v1472, %v2357
  %v2363 = vxor.u32 %v2362, 2147483648
  %v2364 = vmul.f32 %v2363, 1.442695
  %v2365 = vpow.pop %v2364
  %v2366 = vadd.f32 %v2365, 1.0
  %v2367 = vrcp.pop %v2366
  %v2368 = vmul.f32 1.0, %v2367
  %v2369 = vadd.f32 %v2357, %v1730
  %2371 = vrot.lane.b32.xlu0 %v2369, 64
  %v2372 = vpop.permute.xlu0 %2371
  %v2374 = vmul.f32 %v2368, %v2372
  %2376 = vrot.lane.b32.xlu0 %v2374, 64
  %v2377 = vpop.permute.xlu0 %2376
  %v2379 = vadd.f32 %v1472, %v2377
  %v2380 = vtanh.pop %v2379
  %v2381 = vsub.f32 1.0, %v2368
  %2383 = vrot.lane.b32.xlu0 %v2380, 96
  %v2384 = vpop.permute.xlu0 %2383
  %v2386 = vmul.f32 %v2381, %v2384
  %v2387 = vmul.f32 %v2368, %v2314
  %v2388 = vadd.f32 %v2386, %v2387
  %v2389 = vadd.f32 %v2388, %v1992
  %v2390 = vsel %vm1186, %v2389, 0.0
  %2392 = vrot.lane.b32.xlu0 %v2390, 96
  %v2393 = vpop.permute.xlu0 %2392
  %2395 = vst.msk [vmem:[#allocation4 + $0x28] sm:$0xff] %vm327, %v2393
  %v2396 = vsel %vm1186, %v2388, %v2314
  %v2397 = vpack.c.bf16 %v2396, %v2396
  %2399 = vrot.lane.b32.xlu0 %v2397, 96
  %v2400 = vpop.permute.xlu0 %2399
  %v2402 = vsel %vm327, %v2400, 0
  %2404 = vmatprep.subr.bf16.mxu0 0
  %2405 = vmatpush1.bf16.msra.mxu0 %v1677
  %2406 = vmatprep.subr.bf16.mxu0 0
  %2407 = vmatpush1.bf16.msra.mxu0 %v1678
  %2408 = vmatprep.subr.bf16.mxu0 0
  %2409 = vmatpush1.bf16.msra.mxu0 0
  %2410 = vmatprep.subr.bf16.mxu0 0
  %2411 = vmatpush1.bf16.msra.mxu0 0
  %2412 = vmatprep.subr.bf16.mxu0 0
  %2413 = vmatpush1.bf16.msra.mxu0 0
  %2414 = vmatprep.subr.bf16.mxu0 0
  %2415 = vmatpush1.bf16.msra.mxu0 0
  %2416 = vmatprep.subr.bf16.mxu0 0
  %2417 = vmatpush1.bf16.msra.mxu0 0
  %2418 = vmatprep.subr.bf16.mxu0 0
  %2419 = vmatpush1.bf16.msra.mxu0 0
  %2420 = vmatprep.subr.bf16.mxu0 0
  %2421 = vmatpush1.bf16.msra.mxu0 0
  %2422 = vmatprep.subr.bf16.mxu0 0
  %2423 = vmatpush1.bf16.msra.mxu0 0
  %2424 = vmatprep.subr.bf16.mxu0 0
  %2425 = vmatpush1.bf16.msra.mxu0 0
  %2426 = vmatprep.subr.bf16.mxu0 0
  %2427 = vmatpush1.bf16.msra.mxu0 0
  %2428 = vmatprep.subr.bf16.mxu0 0
  %2429 = vmatpush1.bf16.msra.mxu0 0
  %2430 = vmatprep.subr.bf16.mxu0 0
  %2431 = vmatpush1.bf16.msra.mxu0 0
  %2432 = vmatprep.subr.bf16.mxu0 0
  %2433 = vmatpush1.bf16.msra.mxu0 0
  %2434 = vmatprep.subr.bf16.mxu0 0
  %2435 = vmatpush1.bf16.msra.mxu0 0
  %2436 = vmatprep.mubr.bf16.mxu0 0
  %2437 = vmatmul.mubr.bf16.gmra.mrb[0].mxu0 %v2402
  %v2438 = vpop.f32.mrb[0].mxu0
  %v2439 = vadd.f32 0.0, %v2438
  %v2440 = vpop.f32.mrb[0].mxu0
  %v2441 = vpop.f32.mrb[0].mxu0
  %v2442 = vpop.f32.mrb[0].mxu0
  %2443 = vdwg.mxu0
  %v2444 = vadd.f32 %v1477, %v2439
  %v2445 = vxor.u32 %v2444, 2147483648
  %v2446 = vmul.f32 %v2445, 1.442695
  %v2447 = vpow.pop %v2446
  %v2448 = vadd.f32 %v2447, 1.0
  %v2449 = vrcp.pop %v2448
  %v2450 = vmul.f32 1.0, %v2449
  %v2451 = vadd.f32 %v2439, %v1730
  %2453 = vrot.lane.b32.xlu0 %v2451, 64
  %v2454 = vpop.permute.xlu0 %2453
  %v2456 = vmul.f32 %v2450, %v2454
  %2458 = vrot.lane.b32.xlu0 %v2456, 64
  %v2459 = vpop.permute.xlu0 %2458
  %v2461 = vadd.f32 %v1477, %v2459
  %v2462 = vtanh.pop %v2461
  %v2463 = vsub.f32 1.0, %v2450
  %2465 = vrot.lane.b32.xlu0 %v2462, 96
  %v2466 = vpop.permute.xlu0 %2465
  %v2468 = vmul.f32 %v2463, %v2466
  %v2469 = vmul.f32 %v2450, %v2396
  %v2470 = vadd.f32 %v2468, %v2469
  %v2471 = vadd.f32 %v2470, %v2150
  %v2472 = vsel %vm1272, %v2471, 0.0
  %2474 = vrot.lane.b32.xlu0 %v2472, 96
  %v2475 = vpop.permute.xlu0 %2474
  %2477 = vst.msk [vmem:[#allocation4 + $0x30] sm:$0xff] %vm327, %v2475
  %v2478 = vsel %vm1272, %v2470, %v2396
  %v2479 = vpack.c.bf16 %v2478, %v2478
  %2481 = vrot.lane.b32.xlu0 %v2479, 96
  %v2482 = vpop.permute.xlu0 %2481
  %v2484 = vsel %vm327, %v2482, 0
  %2486 = vmatprep.subr.bf16.mxu0 0
  %2487 = vmatpush1.bf16.msra.mxu0 %v1677
  %2488 = vmatprep.subr.bf16.mxu0 0
  %2489 = vmatpush1.bf16.msra.mxu0 %v1678
  %2490 = vmatprep.subr.bf16.mxu0 0
  %2491 = vmatpush1.bf16.msra.mxu0 0
  %2492 = vmatprep.subr.bf16.mxu0 0
  %2493 = vmatpush1.bf16.msra.mxu0 0
  %2494 = vmatprep.subr.bf16.mxu0 0
  %2495 = vmatpush1.bf16.msra.mxu0 0
  %2496 = vmatprep.subr.bf16.mxu0 0
  %2497 = vmatpush1.bf16.msra.mxu0 0
  %2498 = vmatprep.subr.bf16.mxu0 0
  %2499 = vmatpush1.bf16.msra.mxu0 0
  %2500 = vmatprep.subr.bf16.mxu0 0
  %2501 = vmatpush1.bf16.msra.mxu0 0
  %2502 = vmatprep.subr.bf16.mxu0 0
  %2503 = vmatpush1.bf16.msra.mxu0 0
  %2504 = vmatprep.subr.bf16.mxu0 0
  %2505 = vmatpush1.bf16.msra.mxu0 0
  %2506 = vmatprep.subr.bf16.mxu0 0
  %2507 = vmatpush1.bf16.msra.mxu0 0
  %2508 = vmatprep.subr.bf16.mxu0 0
  %2509 = vmatpush1.bf16.msra.mxu0 0
  %2510 = vmatprep.subr.bf16.mxu0 0
  %2511 = vmatpush1.bf16.msra.mxu0 0
  %2512 = vmatprep.subr.bf16.mxu0 0
  %2513 = vmatpush1.bf16.msra.mxu0 0
  %2514 = vmatprep.subr.bf16.mxu0 0
  %2515 = vmatpush1.bf16.msra.mxu0 0
  %2516 = vmatprep.subr.bf16.mxu0 0
  %2517 = vmatpush1.bf16.msra.mxu0 0
  %2518 = vmatprep.mubr.bf16.mxu0 0
  %2519 = vmatmul.mubr.bf16.gmra.mrb[0].mxu0 %v2484
  %v2520 = vpop.f32.mrb[0].mxu0
  %v2521 = vadd.f32 0.0, %v2520
  %v2522 = vpop.f32.mrb[0].mxu0
  %v2523 = vpop.f32.mrb[0].mxu0
  %v2524 = vpop.f32.mrb[0].mxu0
  %2525 = vdwg.mxu0
  %v2526 = vadd.f32 %v1480, %v2521
  %v2527 = vxor.u32 %v2526, 2147483648
  %v2528 = vmul.f32 %v2527, 1.442695
  %v2529 = vpow.pop %v2528
  %v2530 = vadd.f32 %v2529, 1.0
  %v2531 = vrcp.pop %v2530
  %v2532 = vmul.f32 1.0, %v2531
  %v2533 = vadd.f32 %v2521, %v1730
  %2535 = vrot.lane.b32.xlu0 %v2533, 64
  %v2536 = vpop.permute.xlu0 %2535
  %v2538 = vmul.f32 %v2532, %v2536
  %2540 = vrot.lane.b32.xlu0 %v2538, 64
  %v2541 = vpop.permute.xlu0 %2540
  %v2543 = vadd.f32 %v1480, %v2541
  %v2544 = vtanh.pop %v2543
  %v2545 = vsub.f32 1.0, %v2532
  %2547 = vrot.lane.b32.xlu0 %v2544, 96
  %v2548 = vpop.permute.xlu0 %2547
  %v2550 = vmul.f32 %v2545, %v2548
  %v2551 = vmul.f32 %v2532, %v2478
  %v2552 = vadd.f32 %v2550, %v2551
  %v2553 = vadd.f32 %v2552, %v2150
  %v2554 = vsel %vm1358, %v2553, 0.0
  %2556 = vrot.lane.b32.xlu0 %v2554, 96
  %v2557 = vpop.permute.xlu0 %2556
  %2559 = vst.msk [vmem:[#allocation4 + $0x38] sm:$0xff] %vm327, %v2557
  %v2560 = vld [vmem:[#allocation4] sm:$0xff]
  %v2561 = vld [vmem:[#allocation4 + $0x8] sm:$0xff]
  %v2562 = vld [vmem:[#allocation4 + $0x10] sm:$0xff]
  %v2563 = vld [vmem:[#allocation4 + $0x18] sm:$0xff]
  %v2564 = vld [vmem:[#allocation4 + $0x20] sm:$0xff]
  %v2565 = vld [vmem:[#allocation4 + $0x28] sm:$0xff]
  %v2566 = vld [vmem:[#allocation4 + $0x30] sm:$0xff]
  %v2567 = vld [vmem:[#allocation4 + $0x38] sm:$0xff]
  %v2568 = vpack.c.bf16 %v2561, %v2560
  %v2569 = vpack.c.bf16 %v2563, %v2562
  %v2570 = vpack.c.bf16 %v2565, %v2564
  %v2571 = vpack.c.bf16 %v2567, %v2566
  %v2572 = vld [vmem:[%s20] sm:$0xf]
  %v2573 = vld [vmem:[%s20 + $0x4] sm:$0xf]
  %v2574 = vld [vmem:[%s20 + $0x8] sm:$0xf]
  %v2575 = vld [vmem:[%s20 + $0xc] sm:$0xf]
  %v2576 = vld [vmem:[%s21] sm:$0x1]
  %v2578 = vlaneseq
  %v2579 = vshrl.u32 %v2578, 7
  %v2580 = vsub.s32 0, %v2579
  %v2581 = vrot.slane %v2576, %v2580
  %v2587 = vunpack.c.l.b16 %v2572
  %v2588 = vunpack.c.l.b16 %v2573
  %v2589 = vunpack.c.l.b16 %v2574
  %v2590 = vunpack.c.l.b16 %v2575
  %v2591 = vpack.c.b16 %v2588, %v2587
  %v2592 = vpack.c.b16 %v2590, %v2589
  %v2596 = vsel %vm327, %v2568, 0
  %v2599 = vsel %vm327, %v2569, 0
  %v2602 = vsel %vm327, %v2570, 0
  %v2605 = vsel %vm327, %v2571, 0
  %2607 = vmatprep.subr.bf16.mxu0 0
  %2608 = vmatpush1.bf16.msra.mxu0 %v2591
  %2609 = vmatprep.subr.bf16.mxu0 0
  %2610 = vmatpush1.bf16.msra.mxu0 %v2592
  %2611 = vmatprep.subr.bf16.mxu0 0
  %2612 = vmatpush1.bf16.msra.mxu0 0
  %2613 = vmatprep.subr.bf16.mxu0 0
  %2614 = vmatpush1.bf16.msra.mxu0 0
  %2615 = vmatprep.subr.bf16.mxu0 0
  %2616 = vmatpush1.bf16.msra.mxu0 0
  %2617 = vmatprep.subr.bf16.mxu0 0
  %2618 = vmatpush1.bf16.msra.mxu0 0
  %2619 = vmatprep.subr.bf16.mxu0 0
  %2620 = vmatpush1.bf16.msra.mxu0 0
  %2621 = vmatprep.subr.bf16.mxu0 0
  %2622 = vmatpush1.bf16.msra.mxu0 0
  %2623 = vmatprep.subr.bf16.mxu0 0
  %2624 = vmatpush1.bf16.msra.mxu0 0
  %2625 = vmatprep.subr.bf16.mxu0 0
  %2626 = vmatpush1.bf16.msra.mxu0 0
  %2627 = vmatprep.subr.bf16.mxu0 0
  %2628 = vmatpush1.bf16.msra.mxu0 0
  %2629 = vmatprep.subr.bf16.mxu0 0
  %2630 = vmatpush1.bf16.msra.mxu0 0
  %2631 = vmatprep.subr.bf16.mxu0 0
  %2632 = vmatpush1.bf16.msra.mxu0 0
  %2633 = vmatprep.subr.bf16.mxu0 0
  %2634 = vmatpush1.bf16.msra.mxu0 0
  %2635 = vmatprep.subr.bf16.mxu0 0
  %2636 = vmatpush1.bf16.msra.mxu0 0
  %2637 = vmatprep.subr.bf16.mxu0 0
  %2638 = vmatpush1.bf16.msra.mxu0 0
  %2639 = vmatprep.mubr.bf16.mxu0 0
  %2640 = vmatmul.mubr.bf16.gmra.mrb[0].mxu0 %v2596
  %v2641 = vpop.f32.mrb[0].mxu0
  %v2642 = vadd.f32 %v2581, %v2641
  %v2643 = vpop.f32.mrb[0].mxu0
  %v2644 = vpop.f32.mrb[0].mxu0
  %v2645 = vadd.f32 %v2581, %v2644
  %v2646 = vpop.f32.mrb[0].mxu0
  %2647 = vmatprep.mubr.bf16.mxu0 0
  %2648 = vmatmul.mubr.bf16.gmra.mrb[0].mxu0 %v2599
  %v2649 = vpop.f32.mrb[0].mxu0
  %v2650 = vadd.f32 %v2581, %v2649
  %v2651 = vpop.f32.mrb[0].mxu0
  %v2652 = vpop.f32.mrb[0].mxu0
  %v2653 = vadd.f32 %v2581, %v2652
  %v2654 = vpop.f32.mrb[0].mxu0
  %2655 = vmatprep.mubr.bf16.mxu0 0
  %2656 = vmatmul.mubr.bf16.gmra.mrb[0].mxu0 %v2602
  %v2657 = vpop.f32.mrb[0].mxu0
  %v2658 = vadd.f32 %v2581, %v2657
  %v2659 = vpop.f32.mrb[0].mxu0
  %v2660 = vpop.f32.mrb[0].mxu0
  %v2661 = vadd.f32 %v2581, %v2660
  %v2662 = vpop.f32.mrb[0].mxu0
  %2663 = vmatprep.mubr.bf16.mxu0 0
  %2664 = vmatmul.mubr.bf16.gmra.mrb[0].mxu0 %v2605
  %v2665 = vpop.f32.mrb[0].mxu0
  %v2666 = vadd.f32 %v2581, %v2665
  %v2667 = vpop.f32.mrb[0].mxu0
  %v2668 = vpop.f32.mrb[0].mxu0
  %v2669 = vadd.f32 %v2581, %v2668
  %v2670 = vpop.f32.mrb[0].mxu0
  %2671 = vdwg.mxu0
  %2672 = vst [vmem:[%s22] sm:$0xff] %v2642
  %2673 = vst [vmem:[%s22 + $0x8] sm:$0xff] %v2645
  %2674 = vst [vmem:[%s22 + $0x10] sm:$0xff] %v2650
  %2675 = vst [vmem:[%s22 + $0x18] sm:$0xff] %v2653
  %2676 = vst [vmem:[%s22 + $0x20] sm:$0xff] %v2658
  %2677 = vst [vmem:[%s22 + $0x28] sm:$0xff] %v2661
  %2678 = vst [vmem:[%s22 + $0x30] sm:$0xff] %v2666
  %2679 = vst [vmem:[%s22 + $0x38] sm:$0xff] %v2669
  // Predicated region
  $region90: #{mt_rnn_slowfast_forward.1} parent=0 // pred_check
    _
  $region91: #{mt_rnn_slowfast_forward.1} parent=0 // pred_check_branch
    %2681 = sbr.rel (0) target = $region93
  $region92: #{mt_rnn_slowfast_forward.1} parent=0 // pred_region
    _
  $region93: #{mt_rnn_slowfast_forward.1} parent=0 // pred_fallthru
    _
  // Predicated region
  $region94: #{mt_rnn_slowfast_forward.1} parent=0 // pred_check
    _
  $region95: #{mt_rnn_slowfast_forward.1} parent=0 // pred_check_branch
    %2683 = sbr.rel (0) target = $region97
  $region96: #{mt_rnn_slowfast_forward.1} parent=0 // pred_region
    _
  $region97: #{mt_rnn_slowfast_forward.1} parent=0 // pred_fallthru
    _

</llo_original>
